<compile_context>
chip_gen: v5e
topology: v5e:2x2
jax: 0.10.0
libtpu: 0.0.40
codegen_flags: <defaults>
</compile_context>

<pallas_src>
import jax
import jax.numpy as jnp
from jax import lax
from jax.experimental import pallas as pl
from jax.experimental.pallas import tpu as pltpu

CONV_CFG = ((4, 8, 1), (8, 16, 1), (16, 32, 0))   # (Cin, Cout, padding) per block
N_CHANNEL = 32                                    # flattened feature size
NUM_CLASSES = 10
H_IN = W_IN = 16
MAX_TB = 32                                       # images per grid step (VMEM ~ a few MiB)


# ---------------------------------------------------------------------------
# In-kernel helpers
# ---------------------------------------------------------------------------
def _maxpool2x2(y2d, n, h, w, c):
    """2x2/2 max pool. y2d: (n*h*w, c), rows in (b, h, w) row-major order.
    Returns (n*h/2, w/2, c) with the leading rows in (b, h') order."""
    y = y2d.reshape(n * h // 2, 2, w, c)           # leading-dim split only
    hp = jnp.maximum(y[:, 0], y[:, 1])             # pool along H -> (n*h/2, w, c)
    t = pltpu.einshape("awc->wac", hp)             # bring W to the front (XLU)
    t = t.reshape(w // 2, 2, n * h // 2, c)        # leading-dim split only
    wp = jnp.maximum(t[:, 0], t[:, 1])             # pool along W -> (w/2, n*h/2, c)
    return pltpu.einshape("wac->awc", wp)          # (n*h/2, w/2, c)


def _cifar_fused_kernel(x_ref, w1_ref, b1_ref, w2_ref, b2_ref, w3_ref, b3_ref,
                        fcw_ref, fcb_ref, o_ref, pad2_ref):
    """Whole CIFAR forward for a block of tb images, entirely VMEM-resident.

    x_ref   : (tb, 18, 18, 4) f32   layer-1 input, already zero-padded
    w*_ref  : (9*Cin, Cout)   bf16  im2col-flattened conv weights (dy, dx, cin)
    b*_ref  : (1, Cout)       f32
    fcw_ref : (32, 10) bf16,  fcb_ref : (1, 10) f32
    o_ref   : (tb, 10) f32
    pad2_ref: VMEM scratch (tb, 10, 10, 8) f32  (zero-padded layer-2 input)
    """
    tb = x_ref.shape[0]

    def conv_gemm(patches, w_ref, b_ref):
        # im2col GEMM on the MXU (bf16 operands, f32 accumulate) + bias + ReLU.
        y = jnp.dot(patches.astype(jnp.bfloat16), w_ref[...],
                    preferred_element_type=jnp.float32)
        return jnp.maximum(y + b_ref[...], 0.0)

    # ---- block 1: conv 4->8 (padding pre-applied), ReLU, 2x2 maxpool -------
    cols1 = [x_ref[:, dy:dy + 16, dx:dx + 16, :].reshape(tb * 256, 4)
             for dy in range(3) for dx in range(3)]
    y1 = conv_gemm(jnp.concatenate(cols1, axis=1), w1_ref, b1_ref)  # (tb*256, 8)
    p1 = _maxpool2x2(y1, tb, 16, 16, 8).reshape(tb, 8, 8, 8)

    # ---- block 2: conv 8->16 (pad=1 via resident VMEM frame), ReLU, pool ---
    @pl.when(pl.program_id(0) == 0)
    def _():                                       # zero border once; interior is
        pad2_ref[...] = jnp.zeros(pad2_ref.shape, pad2_ref.dtype)  # overwritten
    pad2_ref[:, 1:9, 1:9, :] = p1
    cols2 = [pad2_ref[:, dy:dy + 8, dx:dx + 8, :].reshape(tb * 64, 8)
             for dy in range(3) for dx in range(3)]
    y2 = conv_gemm(jnp.concatenate(cols2, axis=1), w2_ref, b2_ref)  # (tb*64, 16)
    p2 = _maxpool2x2(y2, tb, 8, 8, 16).reshape(tb, 4, 4, 16)

    # ---- block 3: conv 16->32 (pad=0), ReLU, 2x2 maxpool -> 1x1 ------------
    cols3 = [p2[:, dy:dy + 2, dx:dx + 2, :].reshape(tb * 4, 16)
             for dy in range(3) for dx in range(3)]
    y3 = conv_gemm(jnp.concatenate(cols3, axis=1), w3_ref, b3_ref)  # (tb*4, 32)
    feat = _maxpool2x2(y3, tb, 2, 2, 32).reshape(tb, N_CHANNEL)     # (tb, 32)

    # ---- classifier (flatten at 1x1 spatial == the channel vector) ---------
    o_ref[...] = jnp.dot(feat.astype(jnp.bfloat16), fcw_ref[...],
                         preferred_element_type=jnp.float32) + fcb_ref[...]


# ---------------------------------------------------------------------------
# Wrapper: one pallas_call for the whole forward pass
# ---------------------------------------------------------------------------
def _prep_conv_weights(params):
    wcols, biases = [], []
    for (w, b) in params["convs"]:
        cout, cin = w.shape[0], w.shape[1]
        wcol = jnp.transpose(w, (2, 3, 1, 0)).reshape(9 * cin, cout)  # (dy,dx,cin) rows
        wcols.append(wcol.astype(jnp.bfloat16))
        biases.append(b.reshape(1, cout).astype(jnp.float32))
    return wcols, biases


@jax.jit
def cifar_forward(x_nchw, params):
    B = x_nchw.shape[0]
    # NCHW (PyTorch) -> NHWC, zero-pad once for the first conv (tiny XLA prolog).
    x = jnp.transpose(x_nchw, (0, 2, 3, 1)).astype(jnp.float32)
    xp = jnp.pad(x, ((0, 0), (1, 1), (1, 1), (0, 0)))

    tb = B if B <= MAX_TB else MAX_TB             # images per grid step
    b_pad = -(-B // tb) * tb
    if b_pad != B:
        xp = jnp.pad(xp, ((0, b_pad - B), (0, 0), (0, 0), (0, 0)))

    (w1, w2, w3), (b1, b2, b3) = _prep_conv_weights(params)
    fcw = jnp.transpose(params["fc_w"]).astype(jnp.bfloat16)          # (32, 10)
    fcb = params["fc_b"].reshape(1, NUM_CLASSES).astype(jnp.float32)

    const = lambda i: (0, 0)                      # weights resident across steps
    out = pl.pallas_call(
        _cifar_fused_kernel,
        out_shape=jax.ShapeDtypeStruct((b_pad, NUM_CLASSES), jnp.float32),
        grid=(b_pad // tb,),
        in_specs=[
            pl.BlockSpec((tb, H_IN + 2, W_IN + 2, 4), lambda i: (i, 0, 0, 0)),
            pl.BlockSpec((36, 8), const),   pl.BlockSpec((1, 8), const),
            pl.BlockSpec((72, 16), const),  pl.BlockSpec((1, 16), const),
            pl.BlockSpec((144, 32), const), pl.BlockSpec((1, 32), const),
            pl.BlockSpec((N_CHANNEL, NUM_CLASSES), const),
            pl.BlockSpec((1, NUM_CLASSES), const),
        ],
        out_specs=pl.BlockSpec((tb, NUM_CLASSES), lambda i: (i, 0)),
        scratch_shapes=[pltpu.VMEM((tb, 10, 10, 8), jnp.float32)],
        compiler_params=pltpu.CompilerParams(dimension_semantics=("parallel",)),
    )(xp, w1, b1, w2, b2, w3, b3, fcw, fcb)
    return out[:B]


# ---------------------------------------------------------------------------
# Deterministic params (PyTorch-style U(-1/sqrt(fan_in), 1/sqrt(fan_in)))
# ---------------------------------------------------------------------------
def init_params(key):
    convs = []
    for cin, cout, _ in CONV_CFG:
        key, kw, kb = jax.random.split(key, 3)
        bound = 1.0 / (cin * 9) ** 0.5
        w = jax.random.uniform(kw, (cout, cin, 3, 3), jnp.float32, -bound, bound)
        b = jax.random.uniform(kb, (cout,), jnp.float32, -bound, bound)
        convs.append((w, b))
    key, kw, kb = jax.random.split(key, 3)
    bound = 1.0 / N_CHANNEL ** 0.5
    fc_w = jax.random.uniform(kw, (NUM_CLASSES, N_CHANNEL), jnp.float32, -bound, bound)
    fc_b = jax.random.uniform(kb, (NUM_CLASSES,), jnp.float32, -bound, bound)
    return {"convs": convs, "fc_w": fc_w, "fc_b": fc_b}


# ---------------------------------------------------------------------------
# Pure-JAX reference (same bf16-operand / f32-accumulate numerics)
# ---------------------------------------------------------------------------
def ref_forward(x_nchw, params):
    x = x_nchw.astype(jnp.float32)
    for (w, b), (_, _, pad) in zip(params["convs"], CONV_CFG):
        y = lax.conv_general_dilated(
            x.astype(jnp.bfloat16), w.astype(jnp.bfloat16), (1, 1),
            [(pad, pad), (pad, pad)],
            dimension_numbers=("NCHW", "OIHW", "NCHW"),
            preferred_element_type=jnp.float32)
        x = jnp.maximum(y + b[None, :, None, None], 0.0)
        x = lax.reduce_window(x, -jnp.inf, lax.max,
                              (1, 1, 2, 2), (1, 1, 2, 2), "VALID")
    x = x.reshape(x.shape[0], -1)                          # NCHW flatten
    return jnp.dot(x.astype(jnp.bfloat16),
                   params["fc_w"].T.astype(jnp.bfloat16),
                   preferred_element_type=jnp.float32) + params["fc_b"]


if __name__ == "__main__":
    key = jax.random.PRNGKey(0)
    kx, kp = jax.random.split(key)
    x = jax.random.normal(kx, (2, 4, 16, 16), jnp.float32)   # NCHW, like PyTorch
    params = init_params(kp)

    out = cifar_forward(x, params)
    jax.block_until_ready(out)
    assert out.shape == (2, NUM_CLASSES), out.shape

    ref = ref_forward(x, params)
    err = float(jnp.max(jnp.abs(out - ref)))
    assert jnp.allclose(out, ref, atol=5e-3, rtol=5e-3), err
    print("KERNEL_OK")
</pallas_src>

<mosaic_0001>
module attributes {stable_mosaic.version = 11 : i64} {
  func.func @_cifar_fused_kernel(%arg0: i32, %arg1: memref<2x18x18x4xf32, #tpu.memory_space<vmem>>, %arg2: memref<36x8xbf16, #tpu.memory_space<vmem>>, %arg3: memref<1x8xf32, #tpu.memory_space<vmem>>, %arg4: memref<72x16xbf16, #tpu.memory_space<vmem>>, %arg5: memref<1x16xf32, #tpu.memory_space<vmem>>, %arg6: memref<144x32xbf16, #tpu.memory_space<vmem>>, %arg7: memref<1x32xf32, #tpu.memory_space<vmem>>, %arg8: memref<32x10xbf16, #tpu.memory_space<vmem>>, %arg9: memref<1x10xf32, #tpu.memory_space<vmem>>, %arg10: memref<2x10xf32, #tpu.memory_space<vmem>>, %arg11: memref<2x10x10x8xf32, #tpu.memory_space<vmem>>) attributes {dimension_semantics = [#tpu.dimension_semantics<parallel>], iteration_bounds = array<i64: 1>, scalar_prefetch = 0 : i64, scratch_operands = 1 : i64, tpu.core_type = #tpu.core_type<tc>, window_params = [{transform_indices = @transform_0, window_bounds = array<i64: 2, 18, 18, 4>}, {pipeline_mode = #tpu.pipeline_mode<synchronous>, transform_indices = @transform_1, window_bounds = array<i64: 36, 8>}, {pipeline_mode = #tpu.pipeline_mode<synchronous>, transform_indices = @transform_2, window_bounds = array<i64: 1, 8>}, {pipeline_mode = #tpu.pipeline_mode<synchronous>, transform_indices = @transform_3, window_bounds = array<i64: 72, 16>}, {pipeline_mode = #tpu.pipeline_mode<synchronous>, transform_indices = @transform_4, window_bounds = array<i64: 1, 16>}, {pipeline_mode = #tpu.pipeline_mode<synchronous>, transform_indices = @transform_5, window_bounds = array<i64: 144, 32>}, {pipeline_mode = #tpu.pipeline_mode<synchronous>, transform_indices = @transform_6, window_bounds = array<i64: 1, 32>}, {pipeline_mode = #tpu.pipeline_mode<synchronous>, transform_indices = @transform_7, window_bounds = array<i64: 32, 10>}, {pipeline_mode = #tpu.pipeline_mode<synchronous>, transform_indices = @transform_8, window_bounds = array<i64: 1, 10>}, {transform_indices = @transform_9, window_bounds = array<i64: 2, 10>}]} {
    %c0 = arith.constant 0 : index
    %c0_0 = arith.constant 0 : index
    %c0_1 = arith.constant 0 : index
    %c0_2 = arith.constant 0 : index
    %0 = vector.load %arg1[%c0, %c0_0, %c0_1, %c0_2] : memref<2x18x18x4xf32, #tpu.memory_space<vmem>>, vector<2x16x16x4xf32>
    %1 = vector.shape_cast %0 : vector<2x16x16x4xf32> to vector<512x4xf32>
    %c0_3 = arith.constant 0 : index
    %c0_4 = arith.constant 0 : index
    %c1 = arith.constant 1 : index
    %c0_5 = arith.constant 0 : index
    %2 = vector.load %arg1[%c0_3, %c0_4, %c1, %c0_5] : memref<2x18x18x4xf32, #tpu.memory_space<vmem>>, vector<2x16x16x4xf32>
    %3 = vector.shape_cast %2 : vector<2x16x16x4xf32> to vector<512x4xf32>
    %c0_6 = arith.constant 0 : index
    %c0_7 = arith.constant 0 : index
    %c2 = arith.constant 2 : index
    %c0_8 = arith.constant 0 : index
    %4 = vector.load %arg1[%c0_6, %c0_7, %c2, %c0_8] : memref<2x18x18x4xf32, #tpu.memory_space<vmem>>, vector<2x16x16x4xf32>
    %5 = vector.shape_cast %4 : vector<2x16x16x4xf32> to vector<512x4xf32>
    %c0_9 = arith.constant 0 : index
    %c1_10 = arith.constant 1 : index
    %c0_11 = arith.constant 0 : index
    %c0_12 = arith.constant 0 : index
    %6 = vector.load %arg1[%c0_9, %c1_10, %c0_11, %c0_12] : memref<2x18x18x4xf32, #tpu.memory_space<vmem>>, vector<2x16x16x4xf32>
    %7 = vector.shape_cast %6 : vector<2x16x16x4xf32> to vector<512x4xf32>
    %c0_13 = arith.constant 0 : index
    %c1_14 = arith.constant 1 : index
    %c1_15 = arith.constant 1 : index
    %c0_16 = arith.constant 0 : index
    %8 = vector.load %arg1[%c0_13, %c1_14, %c1_15, %c0_16] : memref<2x18x18x4xf32, #tpu.memory_space<vmem>>, vector<2x16x16x4xf32>
    %9 = vector.shape_cast %8 : vector<2x16x16x4xf32> to vector<512x4xf32>
    %c0_17 = arith.constant 0 : index
    %c1_18 = arith.constant 1 : index
    %c2_19 = arith.constant 2 : index
    %c0_20 = arith.constant 0 : index
    %10 = vector.load %arg1[%c0_17, %c1_18, %c2_19, %c0_20] : memref<2x18x18x4xf32, #tpu.memory_space<vmem>>, vector<2x16x16x4xf32>
    %11 = vector.shape_cast %10 : vector<2x16x16x4xf32> to vector<512x4xf32>
    %c0_21 = arith.constant 0 : index
    %c2_22 = arith.constant 2 : index
    %c0_23 = arith.constant 0 : index
    %c0_24 = arith.constant 0 : index
    %12 = vector.load %arg1[%c0_21, %c2_22, %c0_23, %c0_24] : memref<2x18x18x4xf32, #tpu.memory_space<vmem>>, vector<2x16x16x4xf32>
    %13 = vector.shape_cast %12 : vector<2x16x16x4xf32> to vector<512x4xf32>
    %c0_25 = arith.constant 0 : index
    %c2_26 = arith.constant 2 : index
    %c1_27 = arith.constant 1 : index
    %c0_28 = arith.constant 0 : index
    %14 = vector.load %arg1[%c0_25, %c2_26, %c1_27, %c0_28] : memref<2x18x18x4xf32, #tpu.memory_space<vmem>>, vector<2x16x16x4xf32>
    %15 = vector.shape_cast %14 : vector<2x16x16x4xf32> to vector<512x4xf32>
    %c0_29 = arith.constant 0 : index
    %c2_30 = arith.constant 2 : index
    %c2_31 = arith.constant 2 : index
    %c0_32 = arith.constant 0 : index
    %16 = vector.load %arg1[%c0_29, %c2_30, %c2_31, %c0_32] : memref<2x18x18x4xf32, #tpu.memory_space<vmem>>, vector<2x16x16x4xf32>
    %17 = vector.shape_cast %16 : vector<2x16x16x4xf32> to vector<512x4xf32>
    %18 = tpu.concatenate %1, %3, %5, %7, %9, %11, %13, %15, %17 in 1 : vector<512x4xf32>, vector<512x4xf32>, vector<512x4xf32>, vector<512x4xf32>, vector<512x4xf32>, vector<512x4xf32>, vector<512x4xf32>, vector<512x4xf32>, vector<512x4xf32> -> vector<512x36xf32>
    %19 = arith.truncf %18 : vector<512x36xf32> to vector<512x36xbf16>
    %c0_33 = arith.constant 0 : index
    %c0_34 = arith.constant 0 : index
    %20 = vector.load %arg2[%c0_33, %c0_34] : memref<36x8xbf16, #tpu.memory_space<vmem>>, vector<36x8xbf16>
    %cst = arith.constant dense<0.000000e+00> : vector<512x8xf32>
    %21 = tpu.matmul %19, %20, %cst {dimension_numbers = #tpu.dot_dimension_numbers<[1], [0], [0], [1], [0, 0, 1, 1], [], []>} : vector<512x36xbf16>, vector<36x8xbf16>, vector<512x8xf32> -> vector<512x8xf32>
    %c0_35 = arith.constant 0 : index
    %c0_36 = arith.constant 0 : index
    %22 = vector.load %arg3[%c0_35, %c0_36] : memref<1x8xf32, #tpu.memory_space<vmem>>, vector<1x8xf32>
    %23 = vector.broadcast %22 : vector<1x8xf32> to vector<512x8xf32>
    %24 = arith.addf %21, %23 : vector<512x8xf32>
    %cst_37 = arith.constant 0.000000e+00 : f32
    %25 = vector.broadcast %cst_37 : f32 to vector<512x8xf32>
    %26 = arith.maximumf %24, %25 : vector<512x8xf32>
    %27 = vector.shape_cast %26 : vector<512x8xf32> to vector<16x2x16x8xf32>
    %28 = vector.extract_strided_slice %27 {offsets = [0, 0, 0, 0], sizes = [16, 1, 16, 8], strides = [1, 1, 1, 1]} : vector<16x2x16x8xf32> to vector<16x1x16x8xf32>
    %29 = vector.shape_cast %28 : vector<16x1x16x8xf32> to vector<16x16x8xf32>
    %30 = vector.extract_strided_slice %27 {offsets = [0, 1, 0, 0], sizes = [16, 1, 16, 8], strides = [1, 1, 1, 1]} : vector<16x2x16x8xf32> to vector<16x1x16x8xf32>
    %31 = vector.shape_cast %30 : vector<16x1x16x8xf32> to vector<16x16x8xf32>
    %32 = arith.maximumf %29, %31 : vector<16x16x8xf32>
    %33 = tpu.transpose %32, [1, 0, 2] : vector<16x16x8xf32> -> vector<16x16x8xf32>
    %34 = vector.shape_cast %33 : vector<16x16x8xf32> to vector<8x2x16x8xf32>
    %35 = vector.extract_strided_slice %34 {offsets = [0, 0, 0, 0], sizes = [8, 1, 16, 8], strides = [1, 1, 1, 1]} : vector<8x2x16x8xf32> to vector<8x1x16x8xf32>
    %36 = vector.shape_cast %35 : vector<8x1x16x8xf32> to vector<8x16x8xf32>
    %37 = vector.extract_strided_slice %34 {offsets = [0, 1, 0, 0], sizes = [8, 1, 16, 8], strides = [1, 1, 1, 1]} : vector<8x2x16x8xf32> to vector<8x1x16x8xf32>
    %38 = vector.shape_cast %37 : vector<8x1x16x8xf32> to vector<8x16x8xf32>
    %39 = arith.maximumf %36, %38 : vector<8x16x8xf32>
    %40 = tpu.transpose %39, [1, 0, 2] : vector<8x16x8xf32> -> vector<16x8x8xf32>
    %41 = vector.shape_cast %40 : vector<16x8x8xf32> to vector<2x8x8x8xf32>
    %c0_i32 = arith.constant 0 : i32
    %42 = arith.cmpi eq, %arg0, %c0_i32 : i32
    %43 = arith.extui %42 : i1 to i32
    %c0_i32_38 = arith.constant 0 : i32
    %44 = arith.cmpi ne, %43, %c0_i32_38 : i32
    scf.if %44 {
      %cst_98 = arith.constant 0.000000e+00 : f32
      %137 = vector.broadcast %cst_98 : f32 to vector<2x10x10x8xf32>
      %c0_99 = arith.constant 0 : index
      %c0_100 = arith.constant 0 : index
      %c0_101 = arith.constant 0 : index
      %c0_102 = arith.constant 0 : index
      %138 = vector.load %arg11[%c0_99, %c0_100, %c0_101, %c0_102] : memref<2x10x10x8xf32, #tpu.memory_space<vmem>>, vector<2x10x10x8xf32>
      tpu.vector_store %arg11[%c0_99, %c0_100, %c0_101, %c0_102], %137 {strides = array<i32>} : memref<2x10x10x8xf32, #tpu.memory_space<vmem>>, vector<2x10x10x8xf32>,
    } else {
    }
    %c0_39 = arith.constant 0 : index
    %c1_40 = arith.constant 1 : index
    %c1_41 = arith.constant 1 : index
    %c0_42 = arith.constant 0 : index
    %45 = vector.load %arg11[%c0_39, %c1_40, %c1_41, %c0_42] : memref<2x10x10x8xf32, #tpu.memory_space<vmem>>, vector<2x8x8x8xf32>
    tpu.vector_store %arg11[%c0_39, %c1_40, %c1_41, %c0_42], %41 {strides = array<i32>} : memref<2x10x10x8xf32, #tpu.memory_space<vmem>>, vector<2x8x8x8xf32>,
    %c0_43 = arith.constant 0 : index
    %c0_44 = arith.constant 0 : index
    %c0_45 = arith.constant 0 : index
    %c0_46 = arith.constant 0 : index
    %46 = vector.load %arg11[%c0_43, %c0_44, %c0_45, %c0_46] : memref<2x10x10x8xf32, #tpu.memory_space<vmem>>, vector<2x8x8x8xf32>
    %47 = vector.shape_cast %46 : vector<2x8x8x8xf32> to vector<128x8xf32>
    %c0_47 = arith.constant 0 : index
    %c0_48 = arith.constant 0 : index
    %c1_49 = arith.constant 1 : index
    %c0_50 = arith.constant 0 : index
    %48 = vector.load %arg11[%c0_47, %c0_48, %c1_49, %c0_50] : memref<2x10x10x8xf32, #tpu.memory_space<vmem>>, vector<2x8x8x8xf32>
    %49 = vector.shape_cast %48 : vector<2x8x8x8xf32> to vector<128x8xf32>
    %c0_51 = arith.constant 0 : index
    %c0_52 = arith.constant 0 : index
    %c2_53 = arith.constant 2 : index
    %c0_54 = arith.constant 0 : index
    %50 = vector.load %arg11[%c0_51, %c0_52, %c2_53, %c0_54] : memref<2x10x10x8xf32, #tpu.memory_space<vmem>>, vector<2x8x8x8xf32>
    %51 = vector.shape_cast %50 : vector<2x8x8x8xf32> to vector<128x8xf32>
    %c0_55 = arith.constant 0 : index
    %c1_56 = arith.constant 1 : index
    %c0_57 = arith.constant 0 : index
    %c0_58 = arith.constant 0 : index
    %52 = vector.load %arg11[%c0_55, %c1_56, %c0_57, %c0_58] : memref<2x10x10x8xf32, #tpu.memory_space<vmem>>, vector<2x8x8x8xf32>
    %53 = vector.shape_cast %52 : vector<2x8x8x8xf32> to vector<128x8xf32>
    %c0_59 = arith.constant 0 : index
    %c1_60 = arith.constant 1 : index
    %c1_61 = arith.constant 1 : index
    %c0_62 = arith.constant 0 : index
    %54 = vector.load %arg11[%c0_59, %c1_60, %c1_61, %c0_62] : memref<2x10x10x8xf32, #tpu.memory_space<vmem>>, vector<2x8x8x8xf32>
    %55 = vector.shape_cast %54 : vector<2x8x8x8xf32> to vector<128x8xf32>
    %c0_63 = arith.constant 0 : index
    %c1_64 = arith.constant 1 : index
    %c2_65 = arith.constant 2 : index
    %c0_66 = arith.constant 0 : index
    %56 = vector.load %arg11[%c0_63, %c1_64, %c2_65, %c0_66] : memref<2x10x10x8xf32, #tpu.memory_space<vmem>>, vector<2x8x8x8xf32>
    %57 = vector.shape_cast %56 : vector<2x8x8x8xf32> to vector<128x8xf32>
    %c0_67 = arith.constant 0 : index
    %c2_68 = arith.constant 2 : index
    %c0_69 = arith.constant 0 : index
    %c0_70 = arith.constant 0 : index
    %58 = vector.load %arg11[%c0_67, %c2_68, %c0_69, %c0_70] : memref<2x10x10x8xf32, #tpu.memory_space<vmem>>, vector<2x8x8x8xf32>
    %59 = vector.shape_cast %58 : vector<2x8x8x8xf32> to vector<128x8xf32>
    %c0_71 = arith.constant 0 : index
    %c2_72 = arith.constant 2 : index
    %c1_73 = arith.constant 1 : index
    %c0_74 = arith.constant 0 : index
    %60 = vector.load %arg11[%c0_71, %c2_72, %c1_73, %c0_74] : memref<2x10x10x8xf32, #tpu.memory_space<vmem>>, vector<2x8x8x8xf32>
    %61 = vector.shape_cast %60 : vector<2x8x8x8xf32> to vector<128x8xf32>
    %c0_75 = arith.constant 0 : index
    %c2_76 = arith.constant 2 : index
    %c2_77 = arith.constant 2 : index
    %c0_78 = arith.constant 0 : index
    %62 = vector.load %arg11[%c0_75, %c2_76, %c2_77, %c0_78] : memref<2x10x10x8xf32, #tpu.memory_space<vmem>>, vector<2x8x8x8xf32>
    %63 = vector.shape_cast %62 : vector<2x8x8x8xf32> to vector<128x8xf32>
    %64 = tpu.concatenate %47, %49, %51, %53, %55, %57, %59, %61, %63 in 1 : vector<128x8xf32>, vector<128x8xf32>, vector<128x8xf32>, vector<128x8xf32>, vector<128x8xf32>, vector<128x8xf32>, vector<128x8xf32>, vector<128x8xf32>, vector<128x8xf32> -> vector<128x72xf32>
    %65 = arith.truncf %64 : vector<128x72xf32> to vector<128x72xbf16>
    %c0_79 = arith.constant 0 : index
    %c0_80 = arith.constant 0 : index
    %66 = vector.load %arg4[%c0_79, %c0_80] : memref<72x16xbf16, #tpu.memory_space<vmem>>, vector<72x16xbf16>
    %cst_81 = arith.constant dense<0.000000e+00> : vector<128x16xf32>
    %67 = tpu.matmul %65, %66, %cst_81 {dimension_numbers = #tpu.dot_dimension_numbers<[1], [0], [0], [1], [0, 0, 1, 1], [], []>} : vector<128x72xbf16>, vector<72x16xbf16>, vector<128x16xf32> -> vector<128x16xf32>
    %c0_82 = arith.constant 0 : index
    %c0_83 = arith.constant 0 : index
    %68 = vector.load %arg5[%c0_82, %c0_83] : memref<1x16xf32, #tpu.memory_space<vmem>>, vector<1x16xf32>
    %69 = vector.broadcast %68 : vector<1x16xf32> to vector<128x16xf32>
    %70 = arith.addf %67, %69 : vector<128x16xf32>
    %cst_84 = arith.constant 0.000000e+00 : f32
    %71 = vector.broadcast %cst_84 : f32 to vector<128x16xf32>
    %72 = arith.maximumf %70, %71 : vector<128x16xf32>
    %73 = vector.shape_cast %72 : vector<128x16xf32> to vector<8x2x8x16xf32>
    %74 = vector.extract_strided_slice %73 {offsets = [0, 0, 0, 0], sizes = [8, 1, 8, 16], strides = [1, 1, 1, 1]} : vector<8x2x8x16xf32> to vector<8x1x8x16xf32>
    %75 = vector.shape_cast %74 : vector<8x1x8x16xf32> to vector<8x8x16xf32>
    %76 = vector.extract_strided_slice %73 {offsets = [0, 1, 0, 0], sizes = [8, 1, 8, 16], strides = [1, 1, 1, 1]} : vector<8x2x8x16xf32> to vector<8x1x8x16xf32>
    %77 = vector.shape_cast %76 : vector<8x1x8x16xf32> to vector<8x8x16xf32>
    %78 = arith.maximumf %75, %77 : vector<8x8x16xf32>
    %79 = tpu.transpose %78, [1, 0, 2] : vector<8x8x16xf32> -> vector<8x8x16xf32>
    %80 = vector.shape_cast %79 : vector<8x8x16xf32> to vector<4x2x8x16xf32>
    %81 = vector.extract_strided_slice %80 {offsets = [0, 0, 0, 0], sizes = [4, 1, 8, 16], strides = [1, 1, 1, 1]} : vector<4x2x8x16xf32> to vector<4x1x8x16xf32>
    %82 = vector.shape_cast %81 : vector<4x1x8x16xf32> to vector<4x8x16xf32>
    %83 = vector.extract_strided_slice %80 {offsets = [0, 1, 0, 0], sizes = [4, 1, 8, 16], strides = [1, 1, 1, 1]} : vector<4x2x8x16xf32> to vector<4x1x8x16xf32>
    %84 = vector.shape_cast %83 : vector<4x1x8x16xf32> to vector<4x8x16xf32>
    %85 = arith.maximumf %82, %84 : vector<4x8x16xf32>
    %86 = tpu.transpose %85, [1, 0, 2] : vector<4x8x16xf32> -> vector<8x4x16xf32>
    %87 = vector.shape_cast %86 : vector<8x4x16xf32> to vector<2x4x4x16xf32>
    %88 = vector.extract_strided_slice %87 {offsets = [0, 0, 0, 0], sizes = [2, 2, 2, 16], strides = [1, 1, 1, 1]} : vector<2x4x4x16xf32> to vector<2x2x2x16xf32>
    %89 = vector.shape_cast %88 : vector<2x2x2x16xf32> to vector<8x16xf32>
    %90 = vector.extract_strided_slice %87 {offsets = [0, 0, 1, 0], sizes = [2, 2, 2, 16], strides = [1, 1, 1, 1]} : vector<2x4x4x16xf32> to vector<2x2x2x16xf32>
    %91 = vector.shape_cast %90 : vector<2x2x2x16xf32> to vector<8x16xf32>
    %92 = vector.extract_strided_slice %87 {offsets = [0, 0, 2, 0], sizes = [2, 2, 2, 16], strides = [1, 1, 1, 1]} : vector<2x4x4x16xf32> to vector<2x2x2x16xf32>
    %93 = vector.shape_cast %92 : vector<2x2x2x16xf32> to vector<8x16xf32>
    %94 = vector.extract_strided_slice %87 {offsets = [0, 1, 0, 0], sizes = [2, 2, 2, 16], strides = [1, 1, 1, 1]} : vector<2x4x4x16xf32> to vector<2x2x2x16xf32>
    %95 = vector.shape_cast %94 : vector<2x2x2x16xf32> to vector<8x16xf32>
    %96 = vector.extract_strided_slice %87 {offsets = [0, 1, 1, 0], sizes = [2, 2, 2, 16], strides = [1, 1, 1, 1]} : vector<2x4x4x16xf32> to vector<2x2x2x16xf32>
    %97 = vector.shape_cast %96 : vector<2x2x2x16xf32> to vector<8x16xf32>
    %98 = vector.extract_strided_slice %87 {offsets = [0, 1, 2, 0], sizes = [2, 2, 2, 16], strides = [1, 1, 1, 1]} : vector<2x4x4x16xf32> to vector<2x2x2x16xf32>
    %99 = vector.shape_cast %98 : vector<2x2x2x16xf32> to vector<8x16xf32>
    %100 = vector.extract_strided_slice %87 {offsets = [0, 2, 0, 0], sizes = [2, 2, 2, 16], strides = [1, 1, 1, 1]} : vector<2x4x4x16xf32> to vector<2x2x2x16xf32>
    %101 = vector.shape_cast %100 : vector<2x2x2x16xf32> to vector<8x16xf32>
    %102 = vector.extract_strided_slice %87 {offsets = [0, 2, 1, 0], sizes = [2, 2, 2, 16], strides = [1, 1, 1, 1]} : vector<2x4x4x16xf32> to vector<2x2x2x16xf32>
    %103 = vector.shape_cast %102 : vector<2x2x2x16xf32> to vector<8x16xf32>
    %104 = vector.extract_strided_slice %87 {offsets = [0, 2, 2, 0], sizes = [2, 2, 2, 16], strides = [1, 1, 1, 1]} : vector<2x4x4x16xf32> to vector<2x2x2x16xf32>
    %105 = vector.shape_cast %104 : vector<2x2x2x16xf32> to vector<8x16xf32>
    %106 = tpu.concatenate %89, %91, %93, %95, %97, %99, %101, %103, %105 in 1 : vector<8x16xf32>, vector<8x16xf32>, vector<8x16xf32>, vector<8x16xf32>, vector<8x16xf32>, vector<8x16xf32>, vector<8x16xf32>, vector<8x16xf32>, vector<8x16xf32> -> vector<8x144xf32>
    %107 = arith.truncf %106 : vector<8x144xf32> to vector<8x144xbf16>
    %c0_85 = arith.constant 0 : index
    %c0_86 = arith.constant 0 : index
    %108 = vector.load %arg6[%c0_85, %c0_86] : memref<144x32xbf16, #tpu.memory_space<vmem>>, vector<144x32xbf16>
    %cst_87 = arith.constant dense<0.000000e+00> : vector<8x32xf32>
    %109 = tpu.matmul %107, %108, %cst_87 {dimension_numbers = #tpu.dot_dimension_numbers<[1], [0], [0], [1], [0, 0, 1, 1], [], []>} : vector<8x144xbf16>, vector<144x32xbf16>, vector<8x32xf32> -> vector<8x32xf32>
    %c0_88 = arith.constant 0 : index
    %c0_89 = arith.constant 0 : index
    %110 = vector.load %arg7[%c0_88, %c0_89] : memref<1x32xf32, #tpu.memory_space<vmem>>, vector<1x32xf32>
    %111 = vector.broadcast %110 : vector<1x32xf32> to vector<8x32xf32>
    %112 = arith.addf %109, %111 : vector<8x32xf32>
    %cst_90 = arith.constant 0.000000e+00 : f32
    %113 = vector.broadcast %cst_90 : f32 to vector<8x32xf32>
    %114 = arith.maximumf %112, %113 : vector<8x32xf32>
    %115 = vector.shape_cast %114 : vector<8x32xf32> to vector<2x2x2x32xf32>
    %116 = vector.extract_strided_slice %115 {offsets = [0, 0, 0, 0], sizes = [2, 1, 2, 32], strides = [1, 1, 1, 1]} : vector<2x2x2x32xf32> to vector<2x1x2x32xf32>
    %117 = vector.shape_cast %116 : vector<2x1x2x32xf32> to vector<2x2x32xf32>
    %118 = vector.extract_strided_slice %115 {offsets = [0, 1, 0, 0], sizes = [2, 1, 2, 32], strides = [1, 1, 1, 1]} : vector<2x2x2x32xf32> to vector<2x1x2x32xf32>
    %119 = vector.shape_cast %118 : vector<2x1x2x32xf32> to vector<2x2x32xf32>
    %120 = arith.maximumf %117, %119 : vector<2x2x32xf32>
    %121 = tpu.transpose %120, [1, 0, 2] : vector<2x2x32xf32> -> vector<2x2x32xf32>
    %122 = vector.shape_cast %121 : vector<2x2x32xf32> to vector<1x2x2x32xf32>
    %123 = vector.extract_strided_slice %122 {offsets = [0, 0, 0, 0], sizes = [1, 1, 2, 32], strides = [1, 1, 1, 1]} : vector<1x2x2x32xf32> to vector<1x1x2x32xf32>
    %124 = vector.shape_cast %123 : vector<1x1x2x32xf32> to vector<1x2x32xf32>
    %125 = vector.extract_strided_slice %122 {offsets = [0, 1, 0, 0], sizes = [1, 1, 2, 32], strides = [1, 1, 1, 1]} : vector<1x2x2x32xf32> to vector<1x1x2x32xf32>
    %126 = vector.shape_cast %125 : vector<1x1x2x32xf32> to vector<1x2x32xf32>
    %127 = arith.maximumf %124, %126 : vector<1x2x32xf32>
    %128 = tpu.transpose %127, [1, 0, 2] : vector<1x2x32xf32> -> vector<2x1x32xf32>
    %129 = vector.shape_cast %128 : vector<2x1x32xf32> to vector<2x32xf32>
    %130 = arith.truncf %129 : vector<2x32xf32> to vector<2x32xbf16>
    %c0_91 = arith.constant 0 : index
    %c0_92 = arith.constant 0 : index
    %131 = vector.load %arg8[%c0_91, %c0_92] : memref<32x10xbf16, #tpu.memory_space<vmem>>, vector<32x10xbf16>
    %cst_93 = arith.constant dense<0.000000e+00> : vector<2x10xf32>
    %132 = tpu.matmul %130, %131, %cst_93 {dimension_numbers = #tpu.dot_dimension_numbers<[1], [0], [0], [1], [0, 0, 1, 1], [], []>} : vector<2x32xbf16>, vector<32x10xbf16>, vector<2x10xf32> -> vector<2x10xf32>
    %c0_94 = arith.constant 0 : index
    %c0_95 = arith.constant 0 : index
    %133 = vector.load %arg9[%c0_94, %c0_95] : memref<1x10xf32, #tpu.memory_space<vmem>>, vector<1x10xf32>
    %134 = vector.broadcast %133 : vector<1x10xf32> to vector<2x10xf32>
    %135 = arith.addf %132, %134 : vector<2x10xf32>
    %c0_96 = arith.constant 0 : index
    %c0_97 = arith.constant 0 : index
    %136 = vector.load %arg10[%c0_96, %c0_97] : memref<2x10xf32, #tpu.memory_space<vmem>>, vector<2x10xf32>
    tpu.vector_store %arg10[%c0_96, %c0_97], %135 {strides = array<i32>} : memref<2x10xf32, #tpu.memory_space<vmem>>, vector<2x10xf32>,
    return
  }
  func.func @transform_0(%arg0: i32) -> (i32, i32, i32, i32) {
    %c0_i32 = arith.constant 0 : i32
    %c0_i32_0 = arith.constant 0 : i32
    %c0_i32_1 = arith.constant 0 : i32
    %c0_i32_2 = arith.constant 0 : i32
    return %arg0, %c0_i32, %c0_i32_0, %c0_i32_1 : i32, i32, i32, i32
  }
  func.func @transform_1(%arg0: i32) -> (i32, i32) {
    %c0_i32 = arith.constant 0 : i32
    %c0_i32_0 = arith.constant 0 : i32
    %c0_i32_1 = arith.constant 0 : i32
    return %c0_i32, %c0_i32_0 : i32, i32
  }
  func.func @transform_2(%arg0: i32) -> (i32, i32) {
    %c0_i32 = arith.constant 0 : i32
    %c0_i32_0 = arith.constant 0 : i32
    %c0_i32_1 = arith.constant 0 : i32
    return %c0_i32, %c0_i32_0 : i32, i32
  }
  func.func @transform_3(%arg0: i32) -> (i32, i32) {
    %c0_i32 = arith.constant 0 : i32
    %c0_i32_0 = arith.constant 0 : i32
    %c0_i32_1 = arith.constant 0 : i32
    return %c0_i32, %c0_i32_0 : i32, i32
  }
  func.func @transform_4(%arg0: i32) -> (i32, i32) {
    %c0_i32 = arith.constant 0 : i32
    %c0_i32_0 = arith.constant 0 : i32
    %c0_i32_1 = arith.constant 0 : i32
    return %c0_i32, %c0_i32_0 : i32, i32
  }
  func.func @transform_5(%arg0: i32) -> (i32, i32) {
    %c0_i32 = arith.constant 0 : i32
    %c0_i32_0 = arith.constant 0 : i32
    %c0_i32_1 = arith.constant 0 : i32
    return %c0_i32, %c0_i32_0 : i32, i32
  }
  func.func @transform_6(%arg0: i32) -> (i32, i32) {
    %c0_i32 = arith.constant 0 : i32
    %c0_i32_0 = arith.constant 0 : i32
    %c0_i32_1 = arith.constant 0 : i32
    return %c0_i32, %c0_i32_0 : i32, i32
  }
  func.func @transform_7(%arg0: i32) -> (i32, i32) {
    %c0_i32 = arith.constant 0 : i32
    %c0_i32_0 = arith.constant 0 : i32
    %c0_i32_1 = arith.constant 0 : i32
    return %c0_i32, %c0_i32_0 : i32, i32
  }
  func.func @transform_8(%arg0: i32) -> (i32, i32) {
    %c0_i32 = arith.constant 0 : i32
    %c0_i32_0 = arith.constant 0 : i32
    %c0_i32_1 = arith.constant 0 : i32
    return %c0_i32, %c0_i32_0 : i32, i32
  }
  func.func @transform_9(%arg0: i32) -> (i32, i32) {
    %c0_i32 = arith.constant 0 : i32
    %c0_i32_0 = arith.constant 0 : i32
    return %arg0, %c0_i32 : i32, i32
  }
}

</mosaic_0001>

<llo_original>
// kernel: cifar_forward.1
$region0: #{cifar_forward.1}
  #allocation0 [shape = 'u32[]', space=smem, size = 0x4, offset = 0x4, fixed_abs, tag = 'smem constant byte address 0x4 - core index']
  #allocation1 [shape = 'u32[72,128]{1,0:T(1,128)}', space=vmem, size = 0x9000, scoped, tag = 'internal scratch']
  #allocation2 [shape = 'f32[2,10,10,8]{3,2,1,0:T(8,128)}', space=vmem, size = 0x28000, scoped, tag = 'scratch operand']
  %s0 = inlined_call_operand.vmem [shape: f32[2,18,18,4], index: 0, kind: input, shape index: {}]
  %s1 = inlined_call_operand.vmem [shape: bf16[36,8], index: 1, kind: input, shape index: {}]
  %s2 = inlined_call_operand.vmem [shape: f32[1,8], index: 2, kind: input, shape index: {}]
  %s3 = inlined_call_operand.vmem [shape: bf16[72,16], index: 3, kind: input, shape index: {}]
  %s4 = inlined_call_operand.vmem [shape: f32[1,16], index: 4, kind: input, shape index: {}]
  %s5 = inlined_call_operand.vmem [shape: bf16[144,32], index: 5, kind: input, shape index: {}]
  %s6 = inlined_call_operand.vmem [shape: f32[1,32], index: 6, kind: input, shape index: {}]
  %s7 = inlined_call_operand.vmem [shape: bf16[32,10], index: 7, kind: input, shape index: {}]
  %s8 = inlined_call_operand.vmem [shape: f32[1,10], index: 8, kind: input, shape index: {}]
  %s9 = inlined_call_operand.hbm [shape: f32[2,10], index: 9, kind: output, shape index: {}]
  %s10 = sld [smem:[#allocation0]]
  $region50: #{cifar_forward.1} parent=0
    _
  %s12 = ssub.s32 1, %s10
  %s13 = scalar_select 0, %s12, %s10
  $region1: #{cifar_forward.1} parent=0
    #allocation3 [shape = 'u8[1024]{0}', space=vmem, size = 0x400, scoped, tag = 'output window, operand 0, single buffered']
    #allocation4 [shape = 's32[1]{0}', space=sflag, size = 0x4, scoped, tag = 'scoped memory for cifar_forward.1']
    %14 = vsyncpa [#allocation4], 0
    // Predicated region
    $region2: #{cifar_forward.1} parent=1 // pred_check
      _
    $region3: #{cifar_forward.1} parent=1 // pred_check_branch
      %16 = sbr.rel (0) target = $region5
    $region4: #{cifar_forward.1} parent=1 // pred_region
      _
    $region5: #{cifar_forward.1} parent=1 // pred_fallthru
      _
    // Predicated region
    $region6: #{cifar_forward.1} parent=1 // pred_check
      _
    $region7: #{cifar_forward.1} parent=1 // pred_check_branch
      %18 = sbr.rel (0) target = $region9
    $region8: #{cifar_forward.1} parent=1 // pred_region
      _
    $region9: #{cifar_forward.1} parent=1 // pred_fallthru
      _
    // Predicated region
    $region10: #{cifar_forward.1} parent=1 // pred_check
      _
    $region11: #{cifar_forward.1} parent=1 // pred_check_branch
      %20 = sbr.rel (0) target = $region13
    $region12: #{cifar_forward.1} parent=1 // pred_region
      _
    $region13: #{cifar_forward.1} parent=1 // pred_fallthru
      _
    // Predicated region
    $region14: #{cifar_forward.1} parent=1 // pred_check
      _
    $region15: #{cifar_forward.1} parent=1 // pred_check_branch
      %22 = sbr.rel (0) target = $region17
    $region16: #{cifar_forward.1} parent=1 // pred_region
      _
    $region17: #{cifar_forward.1} parent=1 // pred_fallthru
      _
    // Predicated region
    $region18: #{cifar_forward.1} parent=1 // pred_check
      _
    $region19: #{cifar_forward.1} parent=1 // pred_check_branch
      %24 = sbr.rel (0) target = $region21
    $region20: #{cifar_forward.1} parent=1 // pred_region
      _
    $region21: #{cifar_forward.1} parent=1 // pred_fallthru
      _
    // Predicated region
    $region22: #{cifar_forward.1} parent=1 // pred_check
      _
    $region23: #{cifar_forward.1} parent=1 // pred_check_branch
      %26 = sbr.rel (0) target = $region25
    $region24: #{cifar_forward.1} parent=1 // pred_region
      _
    $region25: #{cifar_forward.1} parent=1 // pred_fallthru
      _
    // Predicated region
    $region26: #{cifar_forward.1} parent=1 // pred_check
      _
    $region27: #{cifar_forward.1} parent=1 // pred_check_branch
      %28 = sbr.rel (0) target = $region29
    $region28: #{cifar_forward.1} parent=1 // pred_region
      _
    $region29: #{cifar_forward.1} parent=1 // pred_fallthru
      _
    // Predicated region
    $region30: #{cifar_forward.1} parent=1 // pred_check
      _
    $region31: #{cifar_forward.1} parent=1 // pred_check_branch
      %30 = sbr.rel (0) target = $region33
    $region32: #{cifar_forward.1} parent=1 // pred_region
      _
    $region33: #{cifar_forward.1} parent=1 // pred_fallthru
      _
    // Predicated region
    $region34: #{cifar_forward.1} parent=1 // pred_check
      _
    $region35: #{cifar_forward.1} parent=1 // pred_check_branch
      %32 = sbr.rel (0) target = $region37
    $region36: #{cifar_forward.1} parent=1 // pred_region
      _
    $region37: #{cifar_forward.1} parent=1 // pred_fallthru
      _
    %v34 = vld [vmem:[%s0] sm:$0xff]
    %v35 = vld [vmem:[%s0 + $0x8] sm:$0xff]
    %v36 = vld [vmem:[%s0 + $0x18] sm:$0xff]
    %v37 = vld [vmem:[%s0 + $0x20] sm:$0xff]
    %v38 = vld [vmem:[%s0 + $0x30] sm:$0xff]
    %v39 = vld [vmem:[%s0 + $0x38] sm:$0xff]
    %v40 = vld [vmem:[%s0 + $0x48] sm:$0xff]
    %v41 = vld [vmem:[%s0 + $0x50] sm:$0xff]
    %v42 = vld [vmem:[%s0 + $0x60] sm:$0xff]
    %v43 = vld [vmem:[%s0 + $0x68] sm:$0xff]
    %v44 = vld [vmem:[%s0 + $0x78] sm:$0xff]
    %v45 = vld [vmem:[%s0 + $0x80] sm:$0xff]
    %v46 = vld [vmem:[%s0 + $0x90] sm:$0xff]
    %v47 = vld [vmem:[%s0 + $0x98] sm:$0xff]
    %v48 = vld [vmem:[%s0 + $0xa8] sm:$0xff]
    %v49 = vld [vmem:[%s0 + $0xb0] sm:$0xff]
    %v50 = vld [vmem:[%s0 + $0xc0] sm:$0xff]
    %v51 = vld [vmem:[%s0 + $0xc8] sm:$0xff]
    %v52 = vld [vmem:[%s0 + $0xd8] sm:$0xff]
    %v53 = vld [vmem:[%s0 + $0xe0] sm:$0xff]
    %v54 = vld [vmem:[%s0 + $0xf0] sm:$0xff]
    %v55 = vld [vmem:[%s0 + $0xf8] sm:$0xff]
    %v56 = vld [vmem:[%s0 + $0x108] sm:$0xff]
    %v57 = vld [vmem:[%s0 + $0x110] sm:$0xff]
    %v58 = vld [vmem:[%s0 + $0x120] sm:$0xff]
    %v59 = vld [vmem:[%s0 + $0x128] sm:$0xff]
    %v60 = vld [vmem:[%s0 + $0x138] sm:$0xff]
    %v61 = vld [vmem:[%s0 + $0x140] sm:$0xff]
    %v62 = vld [vmem:[%s0 + $0x150] sm:$0xff]
    %v63 = vld [vmem:[%s0 + $0x158] sm:$0xff]
    %v64 = vld [vmem:[%s0 + $0x168] sm:$0xff]
    %v65 = vld [vmem:[%s0 + $0x170] sm:$0xff]
    %v66 = vld [vmem:[%s0 + $0x1b0] sm:$0xff]
    %v67 = vld [vmem:[%s0 + $0x1b8] sm:$0xff]
    %v68 = vld [vmem:[%s0 + $0x1c8] sm:$0xff]
    %v69 = vld [vmem:[%s0 + $0x1d0] sm:$0xff]
    %v70 = vld [vmem:[%s0 + $0x1e0] sm:$0xff]
    %v71 = vld [vmem:[%s0 + $0x1e8] sm:$0xff]
    %v72 = vld [vmem:[%s0 + $0x1f8] sm:$0xff]
    %v73 = vld [vmem:[%s0 + $0x200] sm:$0xff]
    %v74 = vld [vmem:[%s0 + $0x210] sm:$0xff]
    %v75 = vld [vmem:[%s0 + $0x218] sm:$0xff]
    %v76 = vld [vmem:[%s0 + $0x228] sm:$0xff]
    %v77 = vld [vmem:[%s0 + $0x230] sm:$0xff]
    %v78 = vld [vmem:[%s0 + $0x240] sm:$0xff]
    %v79 = vld [vmem:[%s0 + $0x248] sm:$0xff]
    %v80 = vld [vmem:[%s0 + $0x258] sm:$0xff]
    %v81 = vld [vmem:[%s0 + $0x260] sm:$0xff]
    %v82 = vld [vmem:[%s0 + $0x270] sm:$0xff]
    %v83 = vld [vmem:[%s0 + $0x278] sm:$0xff]
    %v84 = vld [vmem:[%s0 + $0x288] sm:$0xff]
    %v85 = vld [vmem:[%s0 + $0x290] sm:$0xff]
    %v86 = vld [vmem:[%s0 + $0x2a0] sm:$0xff]
    %v87 = vld [vmem:[%s0 + $0x2a8] sm:$0xff]
    %v88 = vld [vmem:[%s0 + $0x2b8] sm:$0xff]
    %v89 = vld [vmem:[%s0 + $0x2c0] sm:$0xff]
    %v90 = vld [vmem:[%s0 + $0x2d0] sm:$0xff]
    %v91 = vld [vmem:[%s0 + $0x2d8] sm:$0xff]
    %v92 = vld [vmem:[%s0 + $0x2e8] sm:$0xff]
    %v93 = vld [vmem:[%s0 + $0x2f0] sm:$0xff]
    %v94 = vld [vmem:[%s0 + $0x300] sm:$0xff]
    %v95 = vld [vmem:[%s0 + $0x308] sm:$0xff]
    %v96 = vld [vmem:[%s0 + $0x318] sm:$0xff]
    %v97 = vld [vmem:[%s0 + $0x320] sm:$0xff]
    %v98 = vld [vmem:[%s0 + $0x1] sm:$0xff]
    %v99 = vld [vmem:[%s0 + $0x9] sm:$0xff]
    %v100 = vld [vmem:[%s0 + $0x19] sm:$0xff]
    %v101 = vld [vmem:[%s0 + $0x21] sm:$0xff]
    %v102 = vld [vmem:[%s0 + $0x31] sm:$0xff]
    %v103 = vld [vmem:[%s0 + $0x39] sm:$0xff]
    %v104 = vld [vmem:[%s0 + $0x49] sm:$0xff]
    %v105 = vld [vmem:[%s0 + $0x51] sm:$0xff]
    %v106 = vld [vmem:[%s0 + $0x61] sm:$0xff]
    %v107 = vld [vmem:[%s0 + $0x69] sm:$0xff]
    %v108 = vld [vmem:[%s0 + $0x79] sm:$0xff]
    %v109 = vld [vmem:[%s0 + $0x81] sm:$0xff]
    %v110 = vld [vmem:[%s0 + $0x91] sm:$0xff]
    %v111 = vld [vmem:[%s0 + $0x99] sm:$0xff]
    %v112 = vld [vmem:[%s0 + $0xa9] sm:$0xff]
    %v113 = vld [vmem:[%s0 + $0xb1] sm:$0xff]
    %v114 = vld [vmem:[%s0 + $0xc1] sm:$0xff]
    %v115 = vld [vmem:[%s0 + $0xc9] sm:$0xff]
    %v116 = vld [vmem:[%s0 + $0xd9] sm:$0xff]
    %v117 = vld [vmem:[%s0 + $0xe1] sm:$0xff]
    %v118 = vld [vmem:[%s0 + $0xf1] sm:$0xff]
    %v119 = vld [vmem:[%s0 + $0xf9] sm:$0xff]
    %v120 = vld [vmem:[%s0 + $0x109] sm:$0xff]
    %v121 = vld [vmem:[%s0 + $0x111] sm:$0xff]
    %v122 = vld [vmem:[%s0 + $0x121] sm:$0xff]
    %v123 = vld [vmem:[%s0 + $0x129] sm:$0xff]
    %v124 = vld [vmem:[%s0 + $0x139] sm:$0xff]
    %v125 = vld [vmem:[%s0 + $0x141] sm:$0xff]
    %v126 = vld [vmem:[%s0 + $0x151] sm:$0xff]
    %v127 = vld [vmem:[%s0 + $0x159] sm:$0xff]
    %v128 = vld [vmem:[%s0 + $0x169] sm:$0xff]
    %v129 = vld [vmem:[%s0 + $0x171] sm:$0xff]
    %v130 = vld [vmem:[%s0 + $0x1b1] sm:$0xff]
    %v131 = vld [vmem:[%s0 + $0x1b9] sm:$0xff]
    %v132 = vld [vmem:[%s0 + $0x1c9] sm:$0xff]
    %v133 = vld [vmem:[%s0 + $0x1d1] sm:$0xff]
    %v134 = vld [vmem:[%s0 + $0x1e1] sm:$0xff]
    %v135 = vld [vmem:[%s0 + $0x1e9] sm:$0xff]
    %v136 = vld [vmem:[%s0 + $0x1f9] sm:$0xff]
    %v137 = vld [vmem:[%s0 + $0x201] sm:$0xff]
    %v138 = vld [vmem:[%s0 + $0x211] sm:$0xff]
    %v139 = vld [vmem:[%s0 + $0x219] sm:$0xff]
    %v140 = vld [vmem:[%s0 + $0x229] sm:$0xff]
    %v141 = vld [vmem:[%s0 + $0x231] sm:$0xff]
    %v142 = vld [vmem:[%s0 + $0x241] sm:$0xff]
    %v143 = vld [vmem:[%s0 + $0x249] sm:$0xff]
    %v144 = vld [vmem:[%s0 + $0x259] sm:$0xff]
    %v145 = vld [vmem:[%s0 + $0x261] sm:$0xff]
    %v146 = vld [vmem:[%s0 + $0x271] sm:$0xff]
    %v147 = vld [vmem:[%s0 + $0x279] sm:$0xff]
    %v148 = vld [vmem:[%s0 + $0x289] sm:$0xff]
    %v149 = vld [vmem:[%s0 + $0x291] sm:$0xff]
    %v150 = vld [vmem:[%s0 + $0x2a1] sm:$0xff]
    %v151 = vld [vmem:[%s0 + $0x2a9] sm:$0xff]
    %v152 = vld [vmem:[%s0 + $0x2b9] sm:$0xff]
    %v153 = vld [vmem:[%s0 + $0x2c1] sm:$0xff]
    %v154 = vld [vmem:[%s0 + $0x2d1] sm:$0xff]
    %v155 = vld [vmem:[%s0 + $0x2d9] sm:$0xff]
    %v156 = vld [vmem:[%s0 + $0x2e9] sm:$0xff]
    %v157 = vld [vmem:[%s0 + $0x2f1] sm:$0xff]
    %v158 = vld [vmem:[%s0 + $0x301] sm:$0xff]
    %v159 = vld [vmem:[%s0 + $0x309] sm:$0xff]
    %v160 = vld [vmem:[%s0 + $0x319] sm:$0xff]
    %v161 = vld [vmem:[%s0 + $0x321] sm:$0xff]
    %v162 = vld [vmem:[%s0 + $0x2] sm:$0xff]
    %v163 = vld [vmem:[%s0 + $0xa] sm:$0xff]
    %v164 = vld [vmem:[%s0 + $0x1a] sm:$0xff]
    %v165 = vld [vmem:[%s0 + $0x22] sm:$0xff]
    %v166 = vld [vmem:[%s0 + $0x32] sm:$0xff]
    %v167 = vld [vmem:[%s0 + $0x3a] sm:$0xff]
    %v168 = vld [vmem:[%s0 + $0x4a] sm:$0xff]
    %v169 = vld [vmem:[%s0 + $0x52] sm:$0xff]
    %v170 = vld [vmem:[%s0 + $0x62] sm:$0xff]
    %v171 = vld [vmem:[%s0 + $0x6a] sm:$0xff]
    %v172 = vld [vmem:[%s0 + $0x7a] sm:$0xff]
    %v173 = vld [vmem:[%s0 + $0x82] sm:$0xff]
    %v174 = vld [vmem:[%s0 + $0x92] sm:$0xff]
    %v175 = vld [vmem:[%s0 + $0x9a] sm:$0xff]
    %v176 = vld [vmem:[%s0 + $0xaa] sm:$0xff]
    %v177 = vld [vmem:[%s0 + $0xb2] sm:$0xff]
    %v178 = vld [vmem:[%s0 + $0xc2] sm:$0xff]
    %v179 = vld [vmem:[%s0 + $0xca] sm:$0xff]
    %v180 = vld [vmem:[%s0 + $0xda] sm:$0xff]
    %v181 = vld [vmem:[%s0 + $0xe2] sm:$0xff]
    %v182 = vld [vmem:[%s0 + $0xf2] sm:$0xff]
    %v183 = vld [vmem:[%s0 + $0xfa] sm:$0xff]
    %v184 = vld [vmem:[%s0 + $0x10a] sm:$0xff]
    %v185 = vld [vmem:[%s0 + $0x112] sm:$0xff]
    %v186 = vld [vmem:[%s0 + $0x122] sm:$0xff]
    %v187 = vld [vmem:[%s0 + $0x12a] sm:$0xff]
    %v188 = vld [vmem:[%s0 + $0x13a] sm:$0xff]
    %v189 = vld [vmem:[%s0 + $0x142] sm:$0xff]
    %v190 = vld [vmem:[%s0 + $0x152] sm:$0xff]
    %v191 = vld [vmem:[%s0 + $0x15a] sm:$0xff]
    %v192 = vld [vmem:[%s0 + $0x16a] sm:$0xff]
    %v193 = vld [vmem:[%s0 + $0x172] sm:$0xff]
    %v194 = vld [vmem:[%s0 + $0x1b2] sm:$0xff]
    %v195 = vld [vmem:[%s0 + $0x1ba] sm:$0xff]
    %v196 = vld [vmem:[%s0 + $0x1ca] sm:$0xff]
    %v197 = vld [vmem:[%s0 + $0x1d2] sm:$0xff]
    %v198 = vld [vmem:[%s0 + $0x1e2] sm:$0xff]
    %v199 = vld [vmem:[%s0 + $0x1ea] sm:$0xff]
    %v200 = vld [vmem:[%s0 + $0x1fa] sm:$0xff]
    %v201 = vld [vmem:[%s0 + $0x202] sm:$0xff]
    %v202 = vld [vmem:[%s0 + $0x212] sm:$0xff]
    %v203 = vld [vmem:[%s0 + $0x21a] sm:$0xff]
    %v204 = vld [vmem:[%s0 + $0x22a] sm:$0xff]
    %v205 = vld [vmem:[%s0 + $0x232] sm:$0xff]
    %v206 = vld [vmem:[%s0 + $0x242] sm:$0xff]
    %v207 = vld [vmem:[%s0 + $0x24a] sm:$0xff]
    %v208 = vld [vmem:[%s0 + $0x25a] sm:$0xff]
    %v209 = vld [vmem:[%s0 + $0x262] sm:$0xff]
    %v210 = vld [vmem:[%s0 + $0x272] sm:$0xff]
    %v211 = vld [vmem:[%s0 + $0x27a] sm:$0xff]
    %v212 = vld [vmem:[%s0 + $0x28a] sm:$0xff]
    %v213 = vld [vmem:[%s0 + $0x292] sm:$0xff]
    %v214 = vld [vmem:[%s0 + $0x2a2] sm:$0xff]
    %v215 = vld [vmem:[%s0 + $0x2aa] sm:$0xff]
    %v216 = vld [vmem:[%s0 + $0x2ba] sm:$0xff]
    %v217 = vld [vmem:[%s0 + $0x2c2] sm:$0xff]
    %v218 = vld [vmem:[%s0 + $0x2d2] sm:$0xff]
    %v219 = vld [vmem:[%s0 + $0x2da] sm:$0xff]
    %v220 = vld [vmem:[%s0 + $0x2ea] sm:$0xff]
    %v221 = vld [vmem:[%s0 + $0x2f2] sm:$0xff]
    %v222 = vld [vmem:[%s0 + $0x302] sm:$0xff]
    %v223 = vld [vmem:[%s0 + $0x30a] sm:$0xff]
    %v224 = vld [vmem:[%s0 + $0x31a] sm:$0xff]
    %v225 = vld [vmem:[%s0 + $0x322] sm:$0xff]
    %s226 = scalar_lea.vmem %s0, 24
    %v227 = vld [vmem:[%s226] sm:$0xff]
    %v228 = vld [vmem:[%s226 + $0x8] sm:$0xff]
    %v229 = vld [vmem:[%s226 + $0x18] sm:$0xff]
    %v230 = vld [vmem:[%s226 + $0x20] sm:$0xff]
    %v231 = vld [vmem:[%s226 + $0x30] sm:$0xff]
    %v232 = vld [vmem:[%s226 + $0x38] sm:$0xff]
    %v233 = vld [vmem:[%s226 + $0x48] sm:$0xff]
    %v234 = vld [vmem:[%s226 + $0x50] sm:$0xff]
    %v235 = vld [vmem:[%s226 + $0x60] sm:$0xff]
    %v236 = vld [vmem:[%s226 + $0x68] sm:$0xff]
    %v237 = vld [vmem:[%s226 + $0x78] sm:$0xff]
    %v238 = vld [vmem:[%s226 + $0x80] sm:$0xff]
    %v239 = vld [vmem:[%s226 + $0x90] sm:$0xff]
    %v240 = vld [vmem:[%s226 + $0x98] sm:$0xff]
    %v241 = vld [vmem:[%s226 + $0xa8] sm:$0xff]
    %v242 = vld [vmem:[%s226 + $0xb0] sm:$0xff]
    %v243 = vld [vmem:[%s226 + $0xc0] sm:$0xff]
    %v244 = vld [vmem:[%s226 + $0xc8] sm:$0xff]
    %v245 = vld [vmem:[%s226 + $0xd8] sm:$0xff]
    %v246 = vld [vmem:[%s226 + $0xe0] sm:$0xff]
    %v247 = vld [vmem:[%s226 + $0xf0] sm:$0xff]
    %v248 = vld [vmem:[%s226 + $0xf8] sm:$0xff]
    %v249 = vld [vmem:[%s226 + $0x108] sm:$0xff]
    %v250 = vld [vmem:[%s226 + $0x110] sm:$0xff]
    %v251 = vld [vmem:[%s226 + $0x120] sm:$0xff]
    %v252 = vld [vmem:[%s226 + $0x128] sm:$0xff]
    %v253 = vld [vmem:[%s226 + $0x138] sm:$0xff]
    %v254 = vld [vmem:[%s226 + $0x140] sm:$0xff]
    %v255 = vld [vmem:[%s226 + $0x150] sm:$0xff]
    %v256 = vld [vmem:[%s226 + $0x158] sm:$0xff]
    %v257 = vld [vmem:[%s226 + $0x168] sm:$0xff]
    %v258 = vld [vmem:[%s226 + $0x170] sm:$0xff]
    %v259 = vld [vmem:[%s226 + $0x1b0] sm:$0xff]
    %v260 = vld [vmem:[%s226 + $0x1b8] sm:$0xff]
    %v261 = vld [vmem:[%s226 + $0x1c8] sm:$0xff]
    %v262 = vld [vmem:[%s226 + $0x1d0] sm:$0xff]
    %v263 = vld [vmem:[%s226 + $0x1e0] sm:$0xff]
    %v264 = vld [vmem:[%s226 + $0x1e8] sm:$0xff]
    %v265 = vld [vmem:[%s226 + $0x1f8] sm:$0xff]
    %v266 = vld [vmem:[%s226 + $0x200] sm:$0xff]
    %v267 = vld [vmem:[%s226 + $0x210] sm:$0xff]
    %v268 = vld [vmem:[%s226 + $0x218] sm:$0xff]
    %v269 = vld [vmem:[%s226 + $0x228] sm:$0xff]
    %v270 = vld [vmem:[%s226 + $0x230] sm:$0xff]
    %v271 = vld [vmem:[%s226 + $0x240] sm:$0xff]
    %v272 = vld [vmem:[%s226 + $0x248] sm:$0xff]
    %v273 = vld [vmem:[%s226 + $0x258] sm:$0xff]
    %v274 = vld [vmem:[%s226 + $0x260] sm:$0xff]
    %v275 = vld [vmem:[%s226 + $0x270] sm:$0xff]
    %v276 = vld [vmem:[%s226 + $0x278] sm:$0xff]
    %v277 = vld [vmem:[%s226 + $0x288] sm:$0xff]
    %v278 = vld [vmem:[%s226 + $0x290] sm:$0xff]
    %v279 = vld [vmem:[%s226 + $0x2a0] sm:$0xff]
    %v280 = vld [vmem:[%s226 + $0x2a8] sm:$0xff]
    %v281 = vld [vmem:[%s226 + $0x2b8] sm:$0xff]
    %v282 = vld [vmem:[%s226 + $0x2c0] sm:$0xff]
    %v283 = vld [vmem:[%s226 + $0x2d0] sm:$0xff]
    %v284 = vld [vmem:[%s226 + $0x2d8] sm:$0xff]
    %v285 = vld [vmem:[%s226 + $0x2e8] sm:$0xff]
    %v286 = vld [vmem:[%s226 + $0x2f0] sm:$0xff]
    %v287 = vld [vmem:[%s226 + $0x300] sm:$0xff]
    %v288 = vld [vmem:[%s226 + $0x308] sm:$0xff]
    %v289 = vld [vmem:[%s226 + $0x318] sm:$0xff]
    %v290 = vld [vmem:[%s226 + $0x320] sm:$0xff]
    %v291 = vld [vmem:[%s226 + $0x1] sm:$0xff]
    %v292 = vld [vmem:[%s226 + $0x9] sm:$0xff]
    %v293 = vld [vmem:[%s226 + $0x19] sm:$0xff]
    %v294 = vld [vmem:[%s226 + $0x21] sm:$0xff]
    %v295 = vld [vmem:[%s226 + $0x31] sm:$0xff]
    %v296 = vld [vmem:[%s226 + $0x39] sm:$0xff]
    %v297 = vld [vmem:[%s226 + $0x49] sm:$0xff]
    %v298 = vld [vmem:[%s226 + $0x51] sm:$0xff]
    %v299 = vld [vmem:[%s226 + $0x61] sm:$0xff]
    %v300 = vld [vmem:[%s226 + $0x69] sm:$0xff]
    %v301 = vld [vmem:[%s226 + $0x79] sm:$0xff]
    %v302 = vld [vmem:[%s226 + $0x81] sm:$0xff]
    %v303 = vld [vmem:[%s226 + $0x91] sm:$0xff]
    %v304 = vld [vmem:[%s226 + $0x99] sm:$0xff]
    %v305 = vld [vmem:[%s226 + $0xa9] sm:$0xff]
    %v306 = vld [vmem:[%s226 + $0xb1] sm:$0xff]
    %v307 = vld [vmem:[%s226 + $0xc1] sm:$0xff]
    %v308 = vld [vmem:[%s226 + $0xc9] sm:$0xff]
    %v309 = vld [vmem:[%s226 + $0xd9] sm:$0xff]
    %v310 = vld [vmem:[%s226 + $0xe1] sm:$0xff]
    %v311 = vld [vmem:[%s226 + $0xf1] sm:$0xff]
    %v312 = vld [vmem:[%s226 + $0xf9] sm:$0xff]
    %v313 = vld [vmem:[%s226 + $0x109] sm:$0xff]
    %v314 = vld [vmem:[%s226 + $0x111] sm:$0xff]
    %v315 = vld [vmem:[%s226 + $0x121] sm:$0xff]
    %v316 = vld [vmem:[%s226 + $0x129] sm:$0xff]
    %v317 = vld [vmem:[%s226 + $0x139] sm:$0xff]
    %v318 = vld [vmem:[%s226 + $0x141] sm:$0xff]
    %v319 = vld [vmem:[%s226 + $0x151] sm:$0xff]
    %v320 = vld [vmem:[%s226 + $0x159] sm:$0xff]
    %v321 = vld [vmem:[%s226 + $0x169] sm:$0xff]
    %v322 = vld [vmem:[%s226 + $0x171] sm:$0xff]
    %v323 = vld [vmem:[%s226 + $0x1b1] sm:$0xff]
    %v324 = vld [vmem:[%s226 + $0x1b9] sm:$0xff]
    %v325 = vld [vmem:[%s226 + $0x1c9] sm:$0xff]
    %v326 = vld [vmem:[%s226 + $0x1d1] sm:$0xff]
    %v327 = vld [vmem:[%s226 + $0x1e1] sm:$0xff]
    %v328 = vld [vmem:[%s226 + $0x1e9] sm:$0xff]
    %v329 = vld [vmem:[%s226 + $0x1f9] sm:$0xff]
    %v330 = vld [vmem:[%s226 + $0x201] sm:$0xff]
    %v331 = vld [vmem:[%s226 + $0x211] sm:$0xff]
    %v332 = vld [vmem:[%s226 + $0x219] sm:$0xff]
    %v333 = vld [vmem:[%s226 + $0x229] sm:$0xff]
    %v334 = vld [vmem:[%s226 + $0x231] sm:$0xff]
    %v335 = vld [vmem:[%s226 + $0x241] sm:$0xff]
    %v336 = vld [vmem:[%s226 + $0x249] sm:$0xff]
    %v337 = vld [vmem:[%s226 + $0x259] sm:$0xff]
    %v338 = vld [vmem:[%s226 + $0x261] sm:$0xff]
    %v339 = vld [vmem:[%s226 + $0x271] sm:$0xff]
    %v340 = vld [vmem:[%s226 + $0x279] sm:$0xff]
    %v341 = vld [vmem:[%s226 + $0x289] sm:$0xff]
    %v342 = vld [vmem:[%s226 + $0x291] sm:$0xff]
    %v343 = vld [vmem:[%s226 + $0x2a1] sm:$0xff]
    %v344 = vld [vmem:[%s226 + $0x2a9] sm:$0xff]
    %v345 = vld [vmem:[%s226 + $0x2b9] sm:$0xff]
    %v346 = vld [vmem:[%s226 + $0x2c1] sm:$0xff]
    %v347 = vld [vmem:[%s226 + $0x2d1] sm:$0xff]
    %v348 = vld [vmem:[%s226 + $0x2d9] sm:$0xff]
    %v349 = vld [vmem:[%s226 + $0x2e9] sm:$0xff]
    %v350 = vld [vmem:[%s226 + $0x2f1] sm:$0xff]
    %v351 = vld [vmem:[%s226 + $0x301] sm:$0xff]
    %v352 = vld [vmem:[%s226 + $0x309] sm:$0xff]
    %v353 = vld [vmem:[%s226 + $0x319] sm:$0xff]
    %v354 = vld [vmem:[%s226 + $0x321] sm:$0xff]
    %v355 = vld [vmem:[%s226 + $0x2] sm:$0xff]
    %v356 = vld [vmem:[%s226 + $0xa] sm:$0xff]
    %v357 = vld [vmem:[%s226 + $0x1a] sm:$0xff]
    %v358 = vld [vmem:[%s226 + $0x22] sm:$0xff]
    %v359 = vld [vmem:[%s226 + $0x32] sm:$0xff]
    %v360 = vld [vmem:[%s226 + $0x3a] sm:$0xff]
    %v361 = vld [vmem:[%s226 + $0x4a] sm:$0xff]
    %v362 = vld [vmem:[%s226 + $0x52] sm:$0xff]
    %v363 = vld [vmem:[%s226 + $0x62] sm:$0xff]
    %v364 = vld [vmem:[%s226 + $0x6a] sm:$0xff]
    %v365 = vld [vmem:[%s226 + $0x7a] sm:$0xff]
    %v366 = vld [vmem:[%s226 + $0x82] sm:$0xff]
    %v367 = vld [vmem:[%s226 + $0x92] sm:$0xff]
    %v368 = vld [vmem:[%s226 + $0x9a] sm:$0xff]
    %v369 = vld [vmem:[%s226 + $0xaa] sm:$0xff]
    %v370 = vld [vmem:[%s226 + $0xb2] sm:$0xff]
    %v371 = vld [vmem:[%s226 + $0xc2] sm:$0xff]
    %v372 = vld [vmem:[%s226 + $0xca] sm:$0xff]
    %v373 = vld [vmem:[%s226 + $0xda] sm:$0xff]
    %v374 = vld [vmem:[%s226 + $0xe2] sm:$0xff]
    %v375 = vld [vmem:[%s226 + $0xf2] sm:$0xff]
    %v376 = vld [vmem:[%s226 + $0xfa] sm:$0xff]
    %v377 = vld [vmem:[%s226 + $0x10a] sm:$0xff]
    %v378 = vld [vmem:[%s226 + $0x112] sm:$0xff]
    %v379 = vld [vmem:[%s226 + $0x122] sm:$0xff]
    %v380 = vld [vmem:[%s226 + $0x12a] sm:$0xff]
    %v381 = vld [vmem:[%s226 + $0x13a] sm:$0xff]
    %v382 = vld [vmem:[%s226 + $0x142] sm:$0xff]
    %v383 = vld [vmem:[%s226 + $0x152] sm:$0xff]
    %v384 = vld [vmem:[%s226 + $0x15a] sm:$0xff]
    %v385 = vld [vmem:[%s226 + $0x16a] sm:$0xff]
    %v386 = vld [vmem:[%s226 + $0x172] sm:$0xff]
    %v387 = vld [vmem:[%s226 + $0x1b2] sm:$0xff]
    %v388 = vld [vmem:[%s226 + $0x1ba] sm:$0xff]
    %v389 = vld [vmem:[%s226 + $0x1ca] sm:$0xff]
    %v390 = vld [vmem:[%s226 + $0x1d2] sm:$0xff]
    %v391 = vld [vmem:[%s226 + $0x1e2] sm:$0xff]
    %v392 = vld [vmem:[%s226 + $0x1ea] sm:$0xff]
    %v393 = vld [vmem:[%s226 + $0x1fa] sm:$0xff]
    %v394 = vld [vmem:[%s226 + $0x202] sm:$0xff]
    %v395 = vld [vmem:[%s226 + $0x212] sm:$0xff]
    %v396 = vld [vmem:[%s226 + $0x21a] sm:$0xff]
    %v397 = vld [vmem:[%s226 + $0x22a] sm:$0xff]
    %v398 = vld [vmem:[%s226 + $0x232] sm:$0xff]
    %v399 = vld [vmem:[%s226 + $0x242] sm:$0xff]
    %v400 = vld [vmem:[%s226 + $0x24a] sm:$0xff]
    %v401 = vld [vmem:[%s226 + $0x25a] sm:$0xff]
    %v402 = vld [vmem:[%s226 + $0x262] sm:$0xff]
    %v403 = vld [vmem:[%s226 + $0x272] sm:$0xff]
    %v404 = vld [vmem:[%s226 + $0x27a] sm:$0xff]
    %v405 = vld [vmem:[%s226 + $0x28a] sm:$0xff]
    %v406 = vld [vmem:[%s226 + $0x292] sm:$0xff]
    %v407 = vld [vmem:[%s226 + $0x2a2] sm:$0xff]
    %v408 = vld [vmem:[%s226 + $0x2aa] sm:$0xff]
    %v409 = vld [vmem:[%s226 + $0x2ba] sm:$0xff]
    %v410 = vld [vmem:[%s226 + $0x2c2] sm:$0xff]
    %v411 = vld [vmem:[%s226 + $0x2d2] sm:$0xff]
    %v412 = vld [vmem:[%s226 + $0x2da] sm:$0xff]
    %v413 = vld [vmem:[%s226 + $0x2ea] sm:$0xff]
    %v414 = vld [vmem:[%s226 + $0x2f2] sm:$0xff]
    %v415 = vld [vmem:[%s226 + $0x302] sm:$0xff]
    %v416 = vld [vmem:[%s226 + $0x30a] sm:$0xff]
    %v417 = vld [vmem:[%s226 + $0x31a] sm:$0xff]
    %v418 = vld [vmem:[%s226 + $0x322] sm:$0xff]
    %s419 = scalar_lea.vmem %s0, 48
    %v420 = vld [vmem:[%s419] sm:$0xff]
    %v421 = vld [vmem:[%s419 + $0x8] sm:$0xff]
    %v422 = vld [vmem:[%s419 + $0x18] sm:$0xff]
    %v423 = vld [vmem:[%s419 + $0x20] sm:$0xff]
    %v424 = vld [vmem:[%s419 + $0x30] sm:$0xff]
    %v425 = vld [vmem:[%s419 + $0x38] sm:$0xff]
    %v426 = vld [vmem:[%s419 + $0x48] sm:$0xff]
    %v427 = vld [vmem:[%s419 + $0x50] sm:$0xff]
    %v428 = vld [vmem:[%s419 + $0x60] sm:$0xff]
    %v429 = vld [vmem:[%s419 + $0x68] sm:$0xff]
    %v430 = vld [vmem:[%s419 + $0x78] sm:$0xff]
    %v431 = vld [vmem:[%s419 + $0x80] sm:$0xff]
    %v432 = vld [vmem:[%s419 + $0x90] sm:$0xff]
    %v433 = vld [vmem:[%s419 + $0x98] sm:$0xff]
    %v434 = vld [vmem:[%s419 + $0xa8] sm:$0xff]
    %v435 = vld [vmem:[%s419 + $0xb0] sm:$0xff]
    %v436 = vld [vmem:[%s419 + $0xc0] sm:$0xff]
    %v437 = vld [vmem:[%s419 + $0xc8] sm:$0xff]
    %v438 = vld [vmem:[%s419 + $0xd8] sm:$0xff]
    %v439 = vld [vmem:[%s419 + $0xe0] sm:$0xff]
    %v440 = vld [vmem:[%s419 + $0xf0] sm:$0xff]
    %v441 = vld [vmem:[%s419 + $0xf8] sm:$0xff]
    %v442 = vld [vmem:[%s419 + $0x108] sm:$0xff]
    %v443 = vld [vmem:[%s419 + $0x110] sm:$0xff]
    %v444 = vld [vmem:[%s419 + $0x120] sm:$0xff]
    %v445 = vld [vmem:[%s419 + $0x128] sm:$0xff]
    %v446 = vld [vmem:[%s419 + $0x138] sm:$0xff]
    %v447 = vld [vmem:[%s419 + $0x140] sm:$0xff]
    %v448 = vld [vmem:[%s419 + $0x150] sm:$0xff]
    %v449 = vld [vmem:[%s419 + $0x158] sm:$0xff]
    %v450 = vld [vmem:[%s419 + $0x168] sm:$0xff]
    %v451 = vld [vmem:[%s419 + $0x170] sm:$0xff]
    %v452 = vld [vmem:[%s419 + $0x1b0] sm:$0xff]
    %v453 = vld [vmem:[%s419 + $0x1b8] sm:$0xff]
    %v454 = vld [vmem:[%s419 + $0x1c8] sm:$0xff]
    %v455 = vld [vmem:[%s419 + $0x1d0] sm:$0xff]
    %v456 = vld [vmem:[%s419 + $0x1e0] sm:$0xff]
    %v457 = vld [vmem:[%s419 + $0x1e8] sm:$0xff]
    %v458 = vld [vmem:[%s419 + $0x1f8] sm:$0xff]
    %v459 = vld [vmem:[%s419 + $0x200] sm:$0xff]
    %v460 = vld [vmem:[%s419 + $0x210] sm:$0xff]
    %v461 = vld [vmem:[%s419 + $0x218] sm:$0xff]
    %v462 = vld [vmem:[%s419 + $0x228] sm:$0xff]
    %v463 = vld [vmem:[%s419 + $0x230] sm:$0xff]
    %v464 = vld [vmem:[%s419 + $0x240] sm:$0xff]
    %v465 = vld [vmem:[%s419 + $0x248] sm:$0xff]
    %v466 = vld [vmem:[%s419 + $0x258] sm:$0xff]
    %v467 = vld [vmem:[%s419 + $0x260] sm:$0xff]
    %v468 = vld [vmem:[%s419 + $0x270] sm:$0xff]
    %v469 = vld [vmem:[%s419 + $0x278] sm:$0xff]
    %v470 = vld [vmem:[%s419 + $0x288] sm:$0xff]
    %v471 = vld [vmem:[%s419 + $0x290] sm:$0xff]
    %v472 = vld [vmem:[%s419 + $0x2a0] sm:$0xff]
    %v473 = vld [vmem:[%s419 + $0x2a8] sm:$0xff]
    %v474 = vld [vmem:[%s419 + $0x2b8] sm:$0xff]
    %v475 = vld [vmem:[%s419 + $0x2c0] sm:$0xff]
    %v476 = vld [vmem:[%s419 + $0x2d0] sm:$0xff]
    %v477 = vld [vmem:[%s419 + $0x2d8] sm:$0xff]
    %v478 = vld [vmem:[%s419 + $0x2e8] sm:$0xff]
    %v479 = vld [vmem:[%s419 + $0x2f0] sm:$0xff]
    %v480 = vld [vmem:[%s419 + $0x300] sm:$0xff]
    %v481 = vld [vmem:[%s419 + $0x308] sm:$0xff]
    %v482 = vld [vmem:[%s419 + $0x318] sm:$0xff]
    %v483 = vld [vmem:[%s419 + $0x320] sm:$0xff]
    %v484 = vld [vmem:[%s419 + $0x1] sm:$0xff]
    %v485 = vld [vmem:[%s419 + $0x9] sm:$0xff]
    %v486 = vld [vmem:[%s419 + $0x19] sm:$0xff]
    %v487 = vld [vmem:[%s419 + $0x21] sm:$0xff]
    %v488 = vld [vmem:[%s419 + $0x31] sm:$0xff]
    %v489 = vld [vmem:[%s419 + $0x39] sm:$0xff]
    %v490 = vld [vmem:[%s419 + $0x49] sm:$0xff]
    %v491 = vld [vmem:[%s419 + $0x51] sm:$0xff]
    %v492 = vld [vmem:[%s419 + $0x61] sm:$0xff]
    %v493 = vld [vmem:[%s419 + $0x69] sm:$0xff]
    %v494 = vld [vmem:[%s419 + $0x79] sm:$0xff]
    %v495 = vld [vmem:[%s419 + $0x81] sm:$0xff]
    %v496 = vld [vmem:[%s419 + $0x91] sm:$0xff]
    %v497 = vld [vmem:[%s419 + $0x99] sm:$0xff]
    %v498 = vld [vmem:[%s419 + $0xa9] sm:$0xff]
    %v499 = vld [vmem:[%s419 + $0xb1] sm:$0xff]
    %v500 = vld [vmem:[%s419 + $0xc1] sm:$0xff]
    %v501 = vld [vmem:[%s419 + $0xc9] sm:$0xff]
    %v502 = vld [vmem:[%s419 + $0xd9] sm:$0xff]
    %v503 = vld [vmem:[%s419 + $0xe1] sm:$0xff]
    %v504 = vld [vmem:[%s419 + $0xf1] sm:$0xff]
    %v505 = vld [vmem:[%s419 + $0xf9] sm:$0xff]
    %v506 = vld [vmem:[%s419 + $0x109] sm:$0xff]
    %v507 = vld [vmem:[%s419 + $0x111] sm:$0xff]
    %v508 = vld [vmem:[%s419 + $0x121] sm:$0xff]
    %v509 = vld [vmem:[%s419 + $0x129] sm:$0xff]
    %v510 = vld [vmem:[%s419 + $0x139] sm:$0xff]
    %v511 = vld [vmem:[%s419 + $0x141] sm:$0xff]
    %v512 = vld [vmem:[%s419 + $0x151] sm:$0xff]
    %v513 = vld [vmem:[%s419 + $0x159] sm:$0xff]
    %v514 = vld [vmem:[%s419 + $0x169] sm:$0xff]
    %v515 = vld [vmem:[%s419 + $0x171] sm:$0xff]
    %v516 = vld [vmem:[%s419 + $0x1b1] sm:$0xff]
    %v517 = vld [vmem:[%s419 + $0x1b9] sm:$0xff]
    %v518 = vld [vmem:[%s419 + $0x1c9] sm:$0xff]
    %v519 = vld [vmem:[%s419 + $0x1d1] sm:$0xff]
    %v520 = vld [vmem:[%s419 + $0x1e1] sm:$0xff]
    %v521 = vld [vmem:[%s419 + $0x1e9] sm:$0xff]
    %v522 = vld [vmem:[%s419 + $0x1f9] sm:$0xff]
    %v523 = vld [vmem:[%s419 + $0x201] sm:$0xff]
    %v524 = vld [vmem:[%s419 + $0x211] sm:$0xff]
    %v525 = vld [vmem:[%s419 + $0x219] sm:$0xff]
    %v526 = vld [vmem:[%s419 + $0x229] sm:$0xff]
    %v527 = vld [vmem:[%s419 + $0x231] sm:$0xff]
    %v528 = vld [vmem:[%s419 + $0x241] sm:$0xff]
    %v529 = vld [vmem:[%s419 + $0x249] sm:$0xff]
    %v530 = vld [vmem:[%s419 + $0x259] sm:$0xff]
    %v531 = vld [vmem:[%s419 + $0x261] sm:$0xff]
    %v532 = vld [vmem:[%s419 + $0x271] sm:$0xff]
    %v533 = vld [vmem:[%s419 + $0x279] sm:$0xff]
    %v534 = vld [vmem:[%s419 + $0x289] sm:$0xff]
    %v535 = vld [vmem:[%s419 + $0x291] sm:$0xff]
    %v536 = vld [vmem:[%s419 + $0x2a1] sm:$0xff]
    %v537 = vld [vmem:[%s419 + $0x2a9] sm:$0xff]
    %v538 = vld [vmem:[%s419 + $0x2b9] sm:$0xff]
    %v539 = vld [vmem:[%s419 + $0x2c1] sm:$0xff]
    %v540 = vld [vmem:[%s419 + $0x2d1] sm:$0xff]
    %v541 = vld [vmem:[%s419 + $0x2d9] sm:$0xff]
    %v542 = vld [vmem:[%s419 + $0x2e9] sm:$0xff]
    %v543 = vld [vmem:[%s419 + $0x2f1] sm:$0xff]
    %v544 = vld [vmem:[%s419 + $0x301] sm:$0xff]
    %v545 = vld [vmem:[%s419 + $0x309] sm:$0xff]
    %v546 = vld [vmem:[%s419 + $0x319] sm:$0xff]
    %v547 = vld [vmem:[%s419 + $0x321] sm:$0xff]
    %v548 = vld [vmem:[%s419 + $0x2] sm:$0xff]
    %v549 = vld [vmem:[%s419 + $0xa] sm:$0xff]
    %v550 = vld [vmem:[%s419 + $0x1a] sm:$0xff]
    %v551 = vld [vmem:[%s419 + $0x22] sm:$0xff]
    %v552 = vld [vmem:[%s419 + $0x32] sm:$0xff]
    %v553 = vld [vmem:[%s419 + $0x3a] sm:$0xff]
    %v554 = vld [vmem:[%s419 + $0x4a] sm:$0xff]
    %v555 = vld [vmem:[%s419 + $0x52] sm:$0xff]
    %v556 = vld [vmem:[%s419 + $0x62] sm:$0xff]
    %v557 = vld [vmem:[%s419 + $0x6a] sm:$0xff]
    %v558 = vld [vmem:[%s419 + $0x7a] sm:$0xff]
    %v559 = vld [vmem:[%s419 + $0x82] sm:$0xff]
    %v560 = vld [vmem:[%s419 + $0x92] sm:$0xff]
    %v561 = vld [vmem:[%s419 + $0x9a] sm:$0xff]
    %v562 = vld [vmem:[%s419 + $0xaa] sm:$0xff]
    %v563 = vld [vmem:[%s419 + $0xb2] sm:$0xff]
    %v564 = vld [vmem:[%s419 + $0xc2] sm:$0xff]
    %v565 = vld [vmem:[%s419 + $0xca] sm:$0xff]
    %v566 = vld [vmem:[%s419 + $0xda] sm:$0xff]
    %v567 = vld [vmem:[%s419 + $0xe2] sm:$0xff]
    %v568 = vld [vmem:[%s419 + $0xf2] sm:$0xff]
    %v569 = vld [vmem:[%s419 + $0xfa] sm:$0xff]
    %v570 = vld [vmem:[%s419 + $0x10a] sm:$0xff]
    %v571 = vld [vmem:[%s419 + $0x112] sm:$0xff]
    %v572 = vld [vmem:[%s419 + $0x122] sm:$0xff]
    %v573 = vld [vmem:[%s419 + $0x12a] sm:$0xff]
    %v574 = vld [vmem:[%s419 + $0x13a] sm:$0xff]
    %v575 = vld [vmem:[%s419 + $0x142] sm:$0xff]
    %v576 = vld [vmem:[%s419 + $0x152] sm:$0xff]
    %v577 = vld [vmem:[%s419 + $0x15a] sm:$0xff]
    %v578 = vld [vmem:[%s419 + $0x16a] sm:$0xff]
    %v579 = vld [vmem:[%s419 + $0x172] sm:$0xff]
    %v580 = vld [vmem:[%s419 + $0x1b2] sm:$0xff]
    %v581 = vld [vmem:[%s419 + $0x1ba] sm:$0xff]
    %v582 = vld [vmem:[%s419 + $0x1ca] sm:$0xff]
    %v583 = vld [vmem:[%s419 + $0x1d2] sm:$0xff]
    %v584 = vld [vmem:[%s419 + $0x1e2] sm:$0xff]
    %v585 = vld [vmem:[%s419 + $0x1ea] sm:$0xff]
    %v586 = vld [vmem:[%s419 + $0x1fa] sm:$0xff]
    %v587 = vld [vmem:[%s419 + $0x202] sm:$0xff]
    %v588 = vld [vmem:[%s419 + $0x212] sm:$0xff]
    %v589 = vld [vmem:[%s419 + $0x21a] sm:$0xff]
    %v590 = vld [vmem:[%s419 + $0x22a] sm:$0xff]
    %v591 = vld [vmem:[%s419 + $0x232] sm:$0xff]
    %v592 = vld [vmem:[%s419 + $0x242] sm:$0xff]
    %v593 = vld [vmem:[%s419 + $0x24a] sm:$0xff]
    %v594 = vld [vmem:[%s419 + $0x25a] sm:$0xff]
    %v595 = vld [vmem:[%s419 + $0x262] sm:$0xff]
    %v596 = vld [vmem:[%s419 + $0x272] sm:$0xff]
    %v597 = vld [vmem:[%s419 + $0x27a] sm:$0xff]
    %v598 = vld [vmem:[%s419 + $0x28a] sm:$0xff]
    %v599 = vld [vmem:[%s419 + $0x292] sm:$0xff]
    %v600 = vld [vmem:[%s419 + $0x2a2] sm:$0xff]
    %v601 = vld [vmem:[%s419 + $0x2aa] sm:$0xff]
    %v602 = vld [vmem:[%s419 + $0x2ba] sm:$0xff]
    %v603 = vld [vmem:[%s419 + $0x2c2] sm:$0xff]
    %v604 = vld [vmem:[%s419 + $0x2d2] sm:$0xff]
    %v605 = vld [vmem:[%s419 + $0x2da] sm:$0xff]
    %v606 = vld [vmem:[%s419 + $0x2ea] sm:$0xff]
    %v607 = vld [vmem:[%s419 + $0x2f2] sm:$0xff]
    %v608 = vld [vmem:[%s419 + $0x302] sm:$0xff]
    %v609 = vld [vmem:[%s419 + $0x30a] sm:$0xff]
    %v610 = vld [vmem:[%s419 + $0x31a] sm:$0xff]
    %v611 = vld [vmem:[%s419 + $0x322] sm:$0xff]
    %676 = vrot.lane.b32.xlu0 %v98, 4
    %v677 = vpop.permute.xlu0 %676
    %678 = vrot.lane.b32.xlu0 %v99, 4
    %v679 = vpop.permute.xlu0 %678
    %680 = vrot.lane.b32.xlu0 %v100, 4
    %v681 = vpop.permute.xlu0 %680
    %682 = vrot.lane.b32.xlu0 %v101, 4
    %v683 = vpop.permute.xlu0 %682
    %684 = vrot.lane.b32.xlu0 %v102, 4
    %v685 = vpop.permute.xlu0 %684
    %686 = vrot.lane.b32.xlu0 %v103, 4
    %v687 = vpop.permute.xlu0 %686
    %688 = vrot.lane.b32.xlu0 %v104, 4
    %v689 = vpop.permute.xlu0 %688
    %690 = vrot.lane.b32.xlu0 %v105, 4
    %v691 = vpop.permute.xlu0 %690
    %692 = vrot.lane.b32.xlu0 %v106, 4
    %v693 = vpop.permute.xlu0 %692
    %694 = vrot.lane.b32.xlu0 %v107, 4
    %v695 = vpop.permute.xlu0 %694
    %696 = vrot.lane.b32.xlu0 %v108, 4
    %v697 = vpop.permute.xlu0 %696
    %698 = vrot.lane.b32.xlu0 %v109, 4
    %v699 = vpop.permute.xlu0 %698
    %700 = vrot.lane.b32.xlu0 %v110, 4
    %v701 = vpop.permute.xlu0 %700
    %702 = vrot.lane.b32.xlu0 %v111, 4
    %v703 = vpop.permute.xlu0 %702
    %704 = vrot.lane.b32.xlu0 %v112, 4
    %v705 = vpop.permute.xlu0 %704
    %706 = vrot.lane.b32.xlu0 %v113, 4
    %v707 = vpop.permute.xlu0 %706
    %708 = vrot.lane.b32.xlu0 %v114, 4
    %v709 = vpop.permute.xlu0 %708
    %710 = vrot.lane.b32.xlu0 %v115, 4
    %v711 = vpop.permute.xlu0 %710
    %712 = vrot.lane.b32.xlu0 %v116, 4
    %v713 = vpop.permute.xlu0 %712
    %714 = vrot.lane.b32.xlu0 %v117, 4
    %v715 = vpop.permute.xlu0 %714
    %716 = vrot.lane.b32.xlu0 %v118, 4
    %v717 = vpop.permute.xlu0 %716
    %718 = vrot.lane.b32.xlu0 %v119, 4
    %v719 = vpop.permute.xlu0 %718
    %720 = vrot.lane.b32.xlu0 %v120, 4
    %v721 = vpop.permute.xlu0 %720
    %722 = vrot.lane.b32.xlu0 %v121, 4
    %v723 = vpop.permute.xlu0 %722
    %724 = vrot.lane.b32.xlu0 %v122, 4
    %v725 = vpop.permute.xlu0 %724
    %726 = vrot.lane.b32.xlu0 %v123, 4
    %v727 = vpop.permute.xlu0 %726
    %728 = vrot.lane.b32.xlu0 %v124, 4
    %v729 = vpop.permute.xlu0 %728
    %730 = vrot.lane.b32.xlu0 %v125, 4
    %v731 = vpop.permute.xlu0 %730
    %732 = vrot.lane.b32.xlu0 %v126, 4
    %v733 = vpop.permute.xlu0 %732
    %734 = vrot.lane.b32.xlu0 %v127, 4
    %v735 = vpop.permute.xlu0 %734
    %736 = vrot.lane.b32.xlu0 %v128, 4
    %v737 = vpop.permute.xlu0 %736
    %738 = vrot.lane.b32.xlu0 %v129, 4
    %v739 = vpop.permute.xlu0 %738
    %740 = vrot.lane.b32.xlu0 %v130, 4
    %v741 = vpop.permute.xlu0 %740
    %742 = vrot.lane.b32.xlu0 %v131, 4
    %v743 = vpop.permute.xlu0 %742
    %744 = vrot.lane.b32.xlu0 %v132, 4
    %v745 = vpop.permute.xlu0 %744
    %746 = vrot.lane.b32.xlu0 %v133, 4
    %v747 = vpop.permute.xlu0 %746
    %748 = vrot.lane.b32.xlu0 %v134, 4
    %v749 = vpop.permute.xlu0 %748
    %750 = vrot.lane.b32.xlu0 %v135, 4
    %v751 = vpop.permute.xlu0 %750
    %752 = vrot.lane.b32.xlu0 %v136, 4
    %v753 = vpop.permute.xlu0 %752
    %754 = vrot.lane.b32.xlu0 %v137, 4
    %v755 = vpop.permute.xlu0 %754
    %756 = vrot.lane.b32.xlu0 %v138, 4
    %v757 = vpop.permute.xlu0 %756
    %758 = vrot.lane.b32.xlu0 %v139, 4
    %v759 = vpop.permute.xlu0 %758
    %760 = vrot.lane.b32.xlu0 %v140, 4
    %v761 = vpop.permute.xlu0 %760
    %762 = vrot.lane.b32.xlu0 %v141, 4
    %v763 = vpop.permute.xlu0 %762
    %764 = vrot.lane.b32.xlu0 %v142, 4
    %v765 = vpop.permute.xlu0 %764
    %766 = vrot.lane.b32.xlu0 %v143, 4
    %v767 = vpop.permute.xlu0 %766
    %768 = vrot.lane.b32.xlu0 %v144, 4
    %v769 = vpop.permute.xlu0 %768
    %770 = vrot.lane.b32.xlu0 %v145, 4
    %v771 = vpop.permute.xlu0 %770
    %772 = vrot.lane.b32.xlu0 %v146, 4
    %v773 = vpop.permute.xlu0 %772
    %774 = vrot.lane.b32.xlu0 %v147, 4
    %v775 = vpop.permute.xlu0 %774
    %776 = vrot.lane.b32.xlu0 %v148, 4
    %v777 = vpop.permute.xlu0 %776
    %778 = vrot.lane.b32.xlu0 %v149, 4
    %v779 = vpop.permute.xlu0 %778
    %780 = vrot.lane.b32.xlu0 %v150, 4
    %v781 = vpop.permute.xlu0 %780
    %782 = vrot.lane.b32.xlu0 %v151, 4
    %v783 = vpop.permute.xlu0 %782
    %784 = vrot.lane.b32.xlu0 %v152, 4
    %v785 = vpop.permute.xlu0 %784
    %786 = vrot.lane.b32.xlu0 %v153, 4
    %v787 = vpop.permute.xlu0 %786
    %788 = vrot.lane.b32.xlu0 %v154, 4
    %v789 = vpop.permute.xlu0 %788
    %790 = vrot.lane.b32.xlu0 %v155, 4
    %v791 = vpop.permute.xlu0 %790
    %792 = vrot.lane.b32.xlu0 %v156, 4
    %v793 = vpop.permute.xlu0 %792
    %794 = vrot.lane.b32.xlu0 %v157, 4
    %v795 = vpop.permute.xlu0 %794
    %796 = vrot.lane.b32.xlu0 %v158, 4
    %v797 = vpop.permute.xlu0 %796
    %798 = vrot.lane.b32.xlu0 %v159, 4
    %v799 = vpop.permute.xlu0 %798
    %800 = vrot.lane.b32.xlu0 %v160, 4
    %v801 = vpop.permute.xlu0 %800
    %802 = vrot.lane.b32.xlu0 %v161, 4
    %v803 = vpop.permute.xlu0 %802
    %932 = vrot.lane.b32.xlu0 %v162, 8
    %v933 = vpop.permute.xlu0 %932
    %934 = vrot.lane.b32.xlu0 %v163, 8
    %v935 = vpop.permute.xlu0 %934
    %936 = vrot.lane.b32.xlu0 %v164, 8
    %v937 = vpop.permute.xlu0 %936
    %938 = vrot.lane.b32.xlu0 %v165, 8
    %v939 = vpop.permute.xlu0 %938
    %940 = vrot.lane.b32.xlu0 %v166, 8
    %v941 = vpop.permute.xlu0 %940
    %942 = vrot.lane.b32.xlu0 %v167, 8
    %v943 = vpop.permute.xlu0 %942
    %944 = vrot.lane.b32.xlu0 %v168, 8
    %v945 = vpop.permute.xlu0 %944
    %946 = vrot.lane.b32.xlu0 %v169, 8
    %v947 = vpop.permute.xlu0 %946
    %948 = vrot.lane.b32.xlu0 %v170, 8
    %v949 = vpop.permute.xlu0 %948
    %950 = vrot.lane.b32.xlu0 %v171, 8
    %v951 = vpop.permute.xlu0 %950
    %952 = vrot.lane.b32.xlu0 %v172, 8
    %v953 = vpop.permute.xlu0 %952
    %954 = vrot.lane.b32.xlu0 %v173, 8
    %v955 = vpop.permute.xlu0 %954
    %956 = vrot.lane.b32.xlu0 %v174, 8
    %v957 = vpop.permute.xlu0 %956
    %958 = vrot.lane.b32.xlu0 %v175, 8
    %v959 = vpop.permute.xlu0 %958
    %960 = vrot.lane.b32.xlu0 %v176, 8
    %v961 = vpop.permute.xlu0 %960
    %962 = vrot.lane.b32.xlu0 %v177, 8
    %v963 = vpop.permute.xlu0 %962
    %964 = vrot.lane.b32.xlu0 %v178, 8
    %v965 = vpop.permute.xlu0 %964
    %966 = vrot.lane.b32.xlu0 %v179, 8
    %v967 = vpop.permute.xlu0 %966
    %968 = vrot.lane.b32.xlu0 %v180, 8
    %v969 = vpop.permute.xlu0 %968
    %970 = vrot.lane.b32.xlu0 %v181, 8
    %v971 = vpop.permute.xlu0 %970
    %972 = vrot.lane.b32.xlu0 %v182, 8
    %v973 = vpop.permute.xlu0 %972
    %974 = vrot.lane.b32.xlu0 %v183, 8
    %v975 = vpop.permute.xlu0 %974
    %976 = vrot.lane.b32.xlu0 %v184, 8
    %v977 = vpop.permute.xlu0 %976
    %978 = vrot.lane.b32.xlu0 %v185, 8
    %v979 = vpop.permute.xlu0 %978
    %980 = vrot.lane.b32.xlu0 %v186, 8
    %v981 = vpop.permute.xlu0 %980
    %982 = vrot.lane.b32.xlu0 %v187, 8
    %v983 = vpop.permute.xlu0 %982
    %984 = vrot.lane.b32.xlu0 %v188, 8
    %v985 = vpop.permute.xlu0 %984
    %986 = vrot.lane.b32.xlu0 %v189, 8
    %v987 = vpop.permute.xlu0 %986
    %988 = vrot.lane.b32.xlu0 %v190, 8
    %v989 = vpop.permute.xlu0 %988
    %990 = vrot.lane.b32.xlu0 %v191, 8
    %v991 = vpop.permute.xlu0 %990
    %992 = vrot.lane.b32.xlu0 %v192, 8
    %v993 = vpop.permute.xlu0 %992
    %994 = vrot.lane.b32.xlu0 %v193, 8
    %v995 = vpop.permute.xlu0 %994
    %996 = vrot.lane.b32.xlu0 %v194, 8
    %v997 = vpop.permute.xlu0 %996
    %998 = vrot.lane.b32.xlu0 %v195, 8
    %v999 = vpop.permute.xlu0 %998
    %1000 = vrot.lane.b32.xlu0 %v196, 8
    %v1001 = vpop.permute.xlu0 %1000
    %1002 = vrot.lane.b32.xlu0 %v197, 8
    %v1003 = vpop.permute.xlu0 %1002
    %1004 = vrot.lane.b32.xlu0 %v198, 8
    %v1005 = vpop.permute.xlu0 %1004
    %1006 = vrot.lane.b32.xlu0 %v199, 8
    %v1007 = vpop.permute.xlu0 %1006
    %1008 = vrot.lane.b32.xlu0 %v200, 8
    %v1009 = vpop.permute.xlu0 %1008
    %1010 = vrot.lane.b32.xlu0 %v201, 8
    %v1011 = vpop.permute.xlu0 %1010
    %1012 = vrot.lane.b32.xlu0 %v202, 8
    %v1013 = vpop.permute.xlu0 %1012
    %1014 = vrot.lane.b32.xlu0 %v203, 8
    %v1015 = vpop.permute.xlu0 %1014
    %1016 = vrot.lane.b32.xlu0 %v204, 8
    %v1017 = vpop.permute.xlu0 %1016
    %1018 = vrot.lane.b32.xlu0 %v205, 8
    %v1019 = vpop.permute.xlu0 %1018
    %1020 = vrot.lane.b32.xlu0 %v206, 8
    %v1021 = vpop.permute.xlu0 %1020
    %1022 = vrot.lane.b32.xlu0 %v207, 8
    %v1023 = vpop.permute.xlu0 %1022
    %1024 = vrot.lane.b32.xlu0 %v208, 8
    %v1025 = vpop.permute.xlu0 %1024
    %1026 = vrot.lane.b32.xlu0 %v209, 8
    %v1027 = vpop.permute.xlu0 %1026
    %1028 = vrot.lane.b32.xlu0 %v210, 8
    %v1029 = vpop.permute.xlu0 %1028
    %1030 = vrot.lane.b32.xlu0 %v211, 8
    %v1031 = vpop.permute.xlu0 %1030
    %1032 = vrot.lane.b32.xlu0 %v212, 8
    %v1033 = vpop.permute.xlu0 %1032
    %1034 = vrot.lane.b32.xlu0 %v213, 8
    %v1035 = vpop.permute.xlu0 %1034
    %1036 = vrot.lane.b32.xlu0 %v214, 8
    %v1037 = vpop.permute.xlu0 %1036
    %1038 = vrot.lane.b32.xlu0 %v215, 8
    %v1039 = vpop.permute.xlu0 %1038
    %1040 = vrot.lane.b32.xlu0 %v216, 8
    %v1041 = vpop.permute.xlu0 %1040
    %1042 = vrot.lane.b32.xlu0 %v217, 8
    %v1043 = vpop.permute.xlu0 %1042
    %1044 = vrot.lane.b32.xlu0 %v218, 8
    %v1045 = vpop.permute.xlu0 %1044
    %1046 = vrot.lane.b32.xlu0 %v219, 8
    %v1047 = vpop.permute.xlu0 %1046
    %1048 = vrot.lane.b32.xlu0 %v220, 8
    %v1049 = vpop.permute.xlu0 %1048
    %1050 = vrot.lane.b32.xlu0 %v221, 8
    %v1051 = vpop.permute.xlu0 %1050
    %1052 = vrot.lane.b32.xlu0 %v222, 8
    %v1053 = vpop.permute.xlu0 %1052
    %1054 = vrot.lane.b32.xlu0 %v223, 8
    %v1055 = vpop.permute.xlu0 %1054
    %1056 = vrot.lane.b32.xlu0 %v224, 8
    %v1057 = vpop.permute.xlu0 %1056
    %1058 = vrot.lane.b32.xlu0 %v225, 8
    %v1059 = vpop.permute.xlu0 %1058
    %1188 = vrot.lane.b32.xlu0 %v227, 12
    %v1189 = vpop.permute.xlu0 %1188
    %1190 = vrot.lane.b32.xlu0 %v228, 12
    %v1191 = vpop.permute.xlu0 %1190
    %1192 = vrot.lane.b32.xlu0 %v229, 12
    %v1193 = vpop.permute.xlu0 %1192
    %1194 = vrot.lane.b32.xlu0 %v230, 12
    %v1195 = vpop.permute.xlu0 %1194
    %1196 = vrot.lane.b32.xlu0 %v231, 12
    %v1197 = vpop.permute.xlu0 %1196
    %1198 = vrot.lane.b32.xlu0 %v232, 12
    %v1199 = vpop.permute.xlu0 %1198
    %1200 = vrot.lane.b32.xlu0 %v233, 12
    %v1201 = vpop.permute.xlu0 %1200
    %1202 = vrot.lane.b32.xlu0 %v234, 12
    %v1203 = vpop.permute.xlu0 %1202
    %1204 = vrot.lane.b32.xlu0 %v235, 12
    %v1205 = vpop.permute.xlu0 %1204
    %1206 = vrot.lane.b32.xlu0 %v236, 12
    %v1207 = vpop.permute.xlu0 %1206
    %1208 = vrot.lane.b32.xlu0 %v237, 12
    %v1209 = vpop.permute.xlu0 %1208
    %1210 = vrot.lane.b32.xlu0 %v238, 12
    %v1211 = vpop.permute.xlu0 %1210
    %1212 = vrot.lane.b32.xlu0 %v239, 12
    %v1213 = vpop.permute.xlu0 %1212
    %1214 = vrot.lane.b32.xlu0 %v240, 12
    %v1215 = vpop.permute.xlu0 %1214
    %1216 = vrot.lane.b32.xlu0 %v241, 12
    %v1217 = vpop.permute.xlu0 %1216
    %1218 = vrot.lane.b32.xlu0 %v242, 12
    %v1219 = vpop.permute.xlu0 %1218
    %1220 = vrot.lane.b32.xlu0 %v243, 12
    %v1221 = vpop.permute.xlu0 %1220
    %1222 = vrot.lane.b32.xlu0 %v244, 12
    %v1223 = vpop.permute.xlu0 %1222
    %1224 = vrot.lane.b32.xlu0 %v245, 12
    %v1225 = vpop.permute.xlu0 %1224
    %1226 = vrot.lane.b32.xlu0 %v246, 12
    %v1227 = vpop.permute.xlu0 %1226
    %1228 = vrot.lane.b32.xlu0 %v247, 12
    %v1229 = vpop.permute.xlu0 %1228
    %1230 = vrot.lane.b32.xlu0 %v248, 12
    %v1231 = vpop.permute.xlu0 %1230
    %1232 = vrot.lane.b32.xlu0 %v249, 12
    %v1233 = vpop.permute.xlu0 %1232
    %1234 = vrot.lane.b32.xlu0 %v250, 12
    %v1235 = vpop.permute.xlu0 %1234
    %1236 = vrot.lane.b32.xlu0 %v251, 12
    %v1237 = vpop.permute.xlu0 %1236
    %1238 = vrot.lane.b32.xlu0 %v252, 12
    %v1239 = vpop.permute.xlu0 %1238
    %1240 = vrot.lane.b32.xlu0 %v253, 12
    %v1241 = vpop.permute.xlu0 %1240
    %1242 = vrot.lane.b32.xlu0 %v254, 12
    %v1243 = vpop.permute.xlu0 %1242
    %1244 = vrot.lane.b32.xlu0 %v255, 12
    %v1245 = vpop.permute.xlu0 %1244
    %1246 = vrot.lane.b32.xlu0 %v256, 12
    %v1247 = vpop.permute.xlu0 %1246
    %1248 = vrot.lane.b32.xlu0 %v257, 12
    %v1249 = vpop.permute.xlu0 %1248
    %1250 = vrot.lane.b32.xlu0 %v258, 12
    %v1251 = vpop.permute.xlu0 %1250
    %1252 = vrot.lane.b32.xlu0 %v259, 12
    %v1253 = vpop.permute.xlu0 %1252
    %1254 = vrot.lane.b32.xlu0 %v260, 12
    %v1255 = vpop.permute.xlu0 %1254
    %1256 = vrot.lane.b32.xlu0 %v261, 12
    %v1257 = vpop.permute.xlu0 %1256
    %1258 = vrot.lane.b32.xlu0 %v262, 12
    %v1259 = vpop.permute.xlu0 %1258
    %1260 = vrot.lane.b32.xlu0 %v263, 12
    %v1261 = vpop.permute.xlu0 %1260
    %1262 = vrot.lane.b32.xlu0 %v264, 12
    %v1263 = vpop.permute.xlu0 %1262
    %1264 = vrot.lane.b32.xlu0 %v265, 12
    %v1265 = vpop.permute.xlu0 %1264
    %1266 = vrot.lane.b32.xlu0 %v266, 12
    %v1267 = vpop.permute.xlu0 %1266
    %1268 = vrot.lane.b32.xlu0 %v267, 12
    %v1269 = vpop.permute.xlu0 %1268
    %1270 = vrot.lane.b32.xlu0 %v268, 12
    %v1271 = vpop.permute.xlu0 %1270
    %1272 = vrot.lane.b32.xlu0 %v269, 12
    %v1273 = vpop.permute.xlu0 %1272
    %1274 = vrot.lane.b32.xlu0 %v270, 12
    %v1275 = vpop.permute.xlu0 %1274
    %1276 = vrot.lane.b32.xlu0 %v271, 12
    %v1277 = vpop.permute.xlu0 %1276
    %1278 = vrot.lane.b32.xlu0 %v272, 12
    %v1279 = vpop.permute.xlu0 %1278
    %1280 = vrot.lane.b32.xlu0 %v273, 12
    %v1281 = vpop.permute.xlu0 %1280
    %1282 = vrot.lane.b32.xlu0 %v274, 12
    %v1283 = vpop.permute.xlu0 %1282
    %1284 = vrot.lane.b32.xlu0 %v275, 12
    %v1285 = vpop.permute.xlu0 %1284
    %1286 = vrot.lane.b32.xlu0 %v276, 12
    %v1287 = vpop.permute.xlu0 %1286
    %1288 = vrot.lane.b32.xlu0 %v277, 12
    %v1289 = vpop.permute.xlu0 %1288
    %1290 = vrot.lane.b32.xlu0 %v278, 12
    %v1291 = vpop.permute.xlu0 %1290
    %1292 = vrot.lane.b32.xlu0 %v279, 12
    %v1293 = vpop.permute.xlu0 %1292
    %1294 = vrot.lane.b32.xlu0 %v280, 12
    %v1295 = vpop.permute.xlu0 %1294
    %1296 = vrot.lane.b32.xlu0 %v281, 12
    %v1297 = vpop.permute.xlu0 %1296
    %1298 = vrot.lane.b32.xlu0 %v282, 12
    %v1299 = vpop.permute.xlu0 %1298
    %1300 = vrot.lane.b32.xlu0 %v283, 12
    %v1301 = vpop.permute.xlu0 %1300
    %1302 = vrot.lane.b32.xlu0 %v284, 12
    %v1303 = vpop.permute.xlu0 %1302
    %1304 = vrot.lane.b32.xlu0 %v285, 12
    %v1305 = vpop.permute.xlu0 %1304
    %1306 = vrot.lane.b32.xlu0 %v286, 12
    %v1307 = vpop.permute.xlu0 %1306
    %1308 = vrot.lane.b32.xlu0 %v287, 12
    %v1309 = vpop.permute.xlu0 %1308
    %1310 = vrot.lane.b32.xlu0 %v288, 12
    %v1311 = vpop.permute.xlu0 %1310
    %1312 = vrot.lane.b32.xlu0 %v289, 12
    %v1313 = vpop.permute.xlu0 %1312
    %1314 = vrot.lane.b32.xlu0 %v290, 12
    %v1315 = vpop.permute.xlu0 %1314
    %1444 = vrot.lane.b32.xlu0 %v291, 16
    %v1445 = vpop.permute.xlu0 %1444
    %1446 = vrot.lane.b32.xlu0 %v292, 16
    %v1447 = vpop.permute.xlu0 %1446
    %1448 = vrot.lane.b32.xlu0 %v293, 16
    %v1449 = vpop.permute.xlu0 %1448
    %1450 = vrot.lane.b32.xlu0 %v294, 16
    %v1451 = vpop.permute.xlu0 %1450
    %1452 = vrot.lane.b32.xlu0 %v295, 16
    %v1453 = vpop.permute.xlu0 %1452
    %1454 = vrot.lane.b32.xlu0 %v296, 16
    %v1455 = vpop.permute.xlu0 %1454
    %1456 = vrot.lane.b32.xlu0 %v297, 16
    %v1457 = vpop.permute.xlu0 %1456
    %1458 = vrot.lane.b32.xlu0 %v298, 16
    %v1459 = vpop.permute.xlu0 %1458
    %1460 = vrot.lane.b32.xlu0 %v299, 16
    %v1461 = vpop.permute.xlu0 %1460
    %1462 = vrot.lane.b32.xlu0 %v300, 16
    %v1463 = vpop.permute.xlu0 %1462
    %1464 = vrot.lane.b32.xlu0 %v301, 16
    %v1465 = vpop.permute.xlu0 %1464
    %1466 = vrot.lane.b32.xlu0 %v302, 16
    %v1467 = vpop.permute.xlu0 %1466
    %1468 = vrot.lane.b32.xlu0 %v303, 16
    %v1469 = vpop.permute.xlu0 %1468
    %1470 = vrot.lane.b32.xlu0 %v304, 16
    %v1471 = vpop.permute.xlu0 %1470
    %1472 = vrot.lane.b32.xlu0 %v305, 16
    %v1473 = vpop.permute.xlu0 %1472
    %1474 = vrot.lane.b32.xlu0 %v306, 16
    %v1475 = vpop.permute.xlu0 %1474
    %1476 = vrot.lane.b32.xlu0 %v307, 16
    %v1477 = vpop.permute.xlu0 %1476
    %1478 = vrot.lane.b32.xlu0 %v308, 16
    %v1479 = vpop.permute.xlu0 %1478
    %1480 = vrot.lane.b32.xlu0 %v309, 16
    %v1481 = vpop.permute.xlu0 %1480
    %1482 = vrot.lane.b32.xlu0 %v310, 16
    %v1483 = vpop.permute.xlu0 %1482
    %1484 = vrot.lane.b32.xlu0 %v311, 16
    %v1485 = vpop.permute.xlu0 %1484
    %1486 = vrot.lane.b32.xlu0 %v312, 16
    %v1487 = vpop.permute.xlu0 %1486
    %1488 = vrot.lane.b32.xlu0 %v313, 16
    %v1489 = vpop.permute.xlu0 %1488
    %1490 = vrot.lane.b32.xlu0 %v314, 16
    %v1491 = vpop.permute.xlu0 %1490
    %1492 = vrot.lane.b32.xlu0 %v315, 16
    %v1493 = vpop.permute.xlu0 %1492
    %1494 = vrot.lane.b32.xlu0 %v316, 16
    %v1495 = vpop.permute.xlu0 %1494
    %1496 = vrot.lane.b32.xlu0 %v317, 16
    %v1497 = vpop.permute.xlu0 %1496
    %1498 = vrot.lane.b32.xlu0 %v318, 16
    %v1499 = vpop.permute.xlu0 %1498
    %1500 = vrot.lane.b32.xlu0 %v319, 16
    %v1501 = vpop.permute.xlu0 %1500
    %1502 = vrot.lane.b32.xlu0 %v320, 16
    %v1503 = vpop.permute.xlu0 %1502
    %1504 = vrot.lane.b32.xlu0 %v321, 16
    %v1505 = vpop.permute.xlu0 %1504
    %1506 = vrot.lane.b32.xlu0 %v322, 16
    %v1507 = vpop.permute.xlu0 %1506
    %1508 = vrot.lane.b32.xlu0 %v323, 16
    %v1509 = vpop.permute.xlu0 %1508
    %1510 = vrot.lane.b32.xlu0 %v324, 16
    %v1511 = vpop.permute.xlu0 %1510
    %1512 = vrot.lane.b32.xlu0 %v325, 16
    %v1513 = vpop.permute.xlu0 %1512
    %1514 = vrot.lane.b32.xlu0 %v326, 16
    %v1515 = vpop.permute.xlu0 %1514
    %1516 = vrot.lane.b32.xlu0 %v327, 16
    %v1517 = vpop.permute.xlu0 %1516
    %1518 = vrot.lane.b32.xlu0 %v328, 16
    %v1519 = vpop.permute.xlu0 %1518
    %1520 = vrot.lane.b32.xlu0 %v329, 16
    %v1521 = vpop.permute.xlu0 %1520
    %1522 = vrot.lane.b32.xlu0 %v330, 16
    %v1523 = vpop.permute.xlu0 %1522
    %1524 = vrot.lane.b32.xlu0 %v331, 16
    %v1525 = vpop.permute.xlu0 %1524
    %1526 = vrot.lane.b32.xlu0 %v332, 16
    %v1527 = vpop.permute.xlu0 %1526
    %1528 = vrot.lane.b32.xlu0 %v333, 16
    %v1529 = vpop.permute.xlu0 %1528
    %1530 = vrot.lane.b32.xlu0 %v334, 16
    %v1531 = vpop.permute.xlu0 %1530
    %1532 = vrot.lane.b32.xlu0 %v335, 16
    %v1533 = vpop.permute.xlu0 %1532
    %1534 = vrot.lane.b32.xlu0 %v336, 16
    %v1535 = vpop.permute.xlu0 %1534
    %1536 = vrot.lane.b32.xlu0 %v337, 16
    %v1537 = vpop.permute.xlu0 %1536
    %1538 = vrot.lane.b32.xlu0 %v338, 16
    %v1539 = vpop.permute.xlu0 %1538
    %1540 = vrot.lane.b32.xlu0 %v339, 16
    %v1541 = vpop.permute.xlu0 %1540
    %1542 = vrot.lane.b32.xlu0 %v340, 16
    %v1543 = vpop.permute.xlu0 %1542
    %1544 = vrot.lane.b32.xlu0 %v341, 16
    %v1545 = vpop.permute.xlu0 %1544
    %1546 = vrot.lane.b32.xlu0 %v342, 16
    %v1547 = vpop.permute.xlu0 %1546
    %1548 = vrot.lane.b32.xlu0 %v343, 16
    %v1549 = vpop.permute.xlu0 %1548
    %1550 = vrot.lane.b32.xlu0 %v344, 16
    %v1551 = vpop.permute.xlu0 %1550
    %1552 = vrot.lane.b32.xlu0 %v345, 16
    %v1553 = vpop.permute.xlu0 %1552
    %1554 = vrot.lane.b32.xlu0 %v346, 16
    %v1555 = vpop.permute.xlu0 %1554
    %1556 = vrot.lane.b32.xlu0 %v347, 16
    %v1557 = vpop.permute.xlu0 %1556
    %1558 = vrot.lane.b32.xlu0 %v348, 16
    %v1559 = vpop.permute.xlu0 %1558
    %1560 = vrot.lane.b32.xlu0 %v349, 16
    %v1561 = vpop.permute.xlu0 %1560
    %1562 = vrot.lane.b32.xlu0 %v350, 16
    %v1563 = vpop.permute.xlu0 %1562
    %1564 = vrot.lane.b32.xlu0 %v351, 16
    %v1565 = vpop.permute.xlu0 %1564
    %1566 = vrot.lane.b32.xlu0 %v352, 16
    %v1567 = vpop.permute.xlu0 %1566
    %1568 = vrot.lane.b32.xlu0 %v353, 16
    %v1569 = vpop.permute.xlu0 %1568
    %1570 = vrot.lane.b32.xlu0 %v354, 16
    %v1571 = vpop.permute.xlu0 %1570
    %1700 = vrot.lane.b32.xlu0 %v355, 20
    %v1701 = vpop.permute.xlu0 %1700
    %1702 = vrot.lane.b32.xlu0 %v356, 20
    %v1703 = vpop.permute.xlu0 %1702
    %1704 = vrot.lane.b32.xlu0 %v357, 20
    %v1705 = vpop.permute.xlu0 %1704
    %1706 = vrot.lane.b32.xlu0 %v358, 20
    %v1707 = vpop.permute.xlu0 %1706
    %1708 = vrot.lane.b32.xlu0 %v359, 20
    %v1709 = vpop.permute.xlu0 %1708
    %1710 = vrot.lane.b32.xlu0 %v360, 20
    %v1711 = vpop.permute.xlu0 %1710
    %1712 = vrot.lane.b32.xlu0 %v361, 20
    %v1713 = vpop.permute.xlu0 %1712
    %1714 = vrot.lane.b32.xlu0 %v362, 20
    %v1715 = vpop.permute.xlu0 %1714
    %1716 = vrot.lane.b32.xlu0 %v363, 20
    %v1717 = vpop.permute.xlu0 %1716
    %1718 = vrot.lane.b32.xlu0 %v364, 20
    %v1719 = vpop.permute.xlu0 %1718
    %1720 = vrot.lane.b32.xlu0 %v365, 20
    %v1721 = vpop.permute.xlu0 %1720
    %1722 = vrot.lane.b32.xlu0 %v366, 20
    %v1723 = vpop.permute.xlu0 %1722
    %1724 = vrot.lane.b32.xlu0 %v367, 20
    %v1725 = vpop.permute.xlu0 %1724
    %1726 = vrot.lane.b32.xlu0 %v368, 20
    %v1727 = vpop.permute.xlu0 %1726
    %1728 = vrot.lane.b32.xlu0 %v369, 20
    %v1729 = vpop.permute.xlu0 %1728
    %1730 = vrot.lane.b32.xlu0 %v370, 20
    %v1731 = vpop.permute.xlu0 %1730
    %1732 = vrot.lane.b32.xlu0 %v371, 20
    %v1733 = vpop.permute.xlu0 %1732
    %1734 = vrot.lane.b32.xlu0 %v372, 20
    %v1735 = vpop.permute.xlu0 %1734
    %1736 = vrot.lane.b32.xlu0 %v373, 20
    %v1737 = vpop.permute.xlu0 %1736
    %1738 = vrot.lane.b32.xlu0 %v374, 20
    %v1739 = vpop.permute.xlu0 %1738
    %1740 = vrot.lane.b32.xlu0 %v375, 20
    %v1741 = vpop.permute.xlu0 %1740
    %1742 = vrot.lane.b32.xlu0 %v376, 20
    %v1743 = vpop.permute.xlu0 %1742
    %1744 = vrot.lane.b32.xlu0 %v377, 20
    %v1745 = vpop.permute.xlu0 %1744
    %1746 = vrot.lane.b32.xlu0 %v378, 20
    %v1747 = vpop.permute.xlu0 %1746
    %1748 = vrot.lane.b32.xlu0 %v379, 20
    %v1749 = vpop.permute.xlu0 %1748
    %1750 = vrot.lane.b32.xlu0 %v380, 20
    %v1751 = vpop.permute.xlu0 %1750
    %1752 = vrot.lane.b32.xlu0 %v381, 20
    %v1753 = vpop.permute.xlu0 %1752
    %1754 = vrot.lane.b32.xlu0 %v382, 20
    %v1755 = vpop.permute.xlu0 %1754
    %1756 = vrot.lane.b32.xlu0 %v383, 20
    %v1757 = vpop.permute.xlu0 %1756
    %1758 = vrot.lane.b32.xlu0 %v384, 20
    %v1759 = vpop.permute.xlu0 %1758
    %1760 = vrot.lane.b32.xlu0 %v385, 20
    %v1761 = vpop.permute.xlu0 %1760
    %1762 = vrot.lane.b32.xlu0 %v386, 20
    %v1763 = vpop.permute.xlu0 %1762
    %1764 = vrot.lane.b32.xlu0 %v387, 20
    %v1765 = vpop.permute.xlu0 %1764
    %1766 = vrot.lane.b32.xlu0 %v388, 20
    %v1767 = vpop.permute.xlu0 %1766
    %1768 = vrot.lane.b32.xlu0 %v389, 20
    %v1769 = vpop.permute.xlu0 %1768
    %1770 = vrot.lane.b32.xlu0 %v390, 20
    %v1771 = vpop.permute.xlu0 %1770
    %1772 = vrot.lane.b32.xlu0 %v391, 20
    %v1773 = vpop.permute.xlu0 %1772
    %1774 = vrot.lane.b32.xlu0 %v392, 20
    %v1775 = vpop.permute.xlu0 %1774
    %1776 = vrot.lane.b32.xlu0 %v393, 20
    %v1777 = vpop.permute.xlu0 %1776
    %1778 = vrot.lane.b32.xlu0 %v394, 20
    %v1779 = vpop.permute.xlu0 %1778
    %1780 = vrot.lane.b32.xlu0 %v395, 20
    %v1781 = vpop.permute.xlu0 %1780
    %1782 = vrot.lane.b32.xlu0 %v396, 20
    %v1783 = vpop.permute.xlu0 %1782
    %1784 = vrot.lane.b32.xlu0 %v397, 20
    %v1785 = vpop.permute.xlu0 %1784
    %1786 = vrot.lane.b32.xlu0 %v398, 20
    %v1787 = vpop.permute.xlu0 %1786
    %1788 = vrot.lane.b32.xlu0 %v399, 20
    %v1789 = vpop.permute.xlu0 %1788
    %1790 = vrot.lane.b32.xlu0 %v400, 20
    %v1791 = vpop.permute.xlu0 %1790
    %1792 = vrot.lane.b32.xlu0 %v401, 20
    %v1793 = vpop.permute.xlu0 %1792
    %1794 = vrot.lane.b32.xlu0 %v402, 20
    %v1795 = vpop.permute.xlu0 %1794
    %1796 = vrot.lane.b32.xlu0 %v403, 20
    %v1797 = vpop.permute.xlu0 %1796
    %1798 = vrot.lane.b32.xlu0 %v404, 20
    %v1799 = vpop.permute.xlu0 %1798
    %1800 = vrot.lane.b32.xlu0 %v405, 20
    %v1801 = vpop.permute.xlu0 %1800
    %1802 = vrot.lane.b32.xlu0 %v406, 20
    %v1803 = vpop.permute.xlu0 %1802
    %1804 = vrot.lane.b32.xlu0 %v407, 20
    %v1805 = vpop.permute.xlu0 %1804
    %1806 = vrot.lane.b32.xlu0 %v408, 20
    %v1807 = vpop.permute.xlu0 %1806
    %1808 = vrot.lane.b32.xlu0 %v409, 20
    %v1809 = vpop.permute.xlu0 %1808
    %1810 = vrot.lane.b32.xlu0 %v410, 20
    %v1811 = vpop.permute.xlu0 %1810
    %1812 = vrot.lane.b32.xlu0 %v411, 20
    %v1813 = vpop.permute.xlu0 %1812
    %1814 = vrot.lane.b32.xlu0 %v412, 20
    %v1815 = vpop.permute.xlu0 %1814
    %1816 = vrot.lane.b32.xlu0 %v413, 20
    %v1817 = vpop.permute.xlu0 %1816
    %1818 = vrot.lane.b32.xlu0 %v414, 20
    %v1819 = vpop.permute.xlu0 %1818
    %1820 = vrot.lane.b32.xlu0 %v415, 20
    %v1821 = vpop.permute.xlu0 %1820
    %1822 = vrot.lane.b32.xlu0 %v416, 20
    %v1823 = vpop.permute.xlu0 %1822
    %1824 = vrot.lane.b32.xlu0 %v417, 20
    %v1825 = vpop.permute.xlu0 %1824
    %1826 = vrot.lane.b32.xlu0 %v418, 20
    %v1827 = vpop.permute.xlu0 %1826
    %1956 = vrot.lane.b32.xlu0 %v420, 24
    %v1957 = vpop.permute.xlu0 %1956
    %1958 = vrot.lane.b32.xlu0 %v421, 24
    %v1959 = vpop.permute.xlu0 %1958
    %1960 = vrot.lane.b32.xlu0 %v422, 24
    %v1961 = vpop.permute.xlu0 %1960
    %1962 = vrot.lane.b32.xlu0 %v423, 24
    %v1963 = vpop.permute.xlu0 %1962
    %1964 = vrot.lane.b32.xlu0 %v424, 24
    %v1965 = vpop.permute.xlu0 %1964
    %1966 = vrot.lane.b32.xlu0 %v425, 24
    %v1967 = vpop.permute.xlu0 %1966
    %1968 = vrot.lane.b32.xlu0 %v426, 24
    %v1969 = vpop.permute.xlu0 %1968
    %1970 = vrot.lane.b32.xlu0 %v427, 24
    %v1971 = vpop.permute.xlu0 %1970
    %1972 = vrot.lane.b32.xlu0 %v428, 24
    %v1973 = vpop.permute.xlu0 %1972
    %1974 = vrot.lane.b32.xlu0 %v429, 24
    %v1975 = vpop.permute.xlu0 %1974
    %1976 = vrot.lane.b32.xlu0 %v430, 24
    %v1977 = vpop.permute.xlu0 %1976
    %1978 = vrot.lane.b32.xlu0 %v431, 24
    %v1979 = vpop.permute.xlu0 %1978
    %1980 = vrot.lane.b32.xlu0 %v432, 24
    %v1981 = vpop.permute.xlu0 %1980
    %1982 = vrot.lane.b32.xlu0 %v433, 24
    %v1983 = vpop.permute.xlu0 %1982
    %1984 = vrot.lane.b32.xlu0 %v434, 24
    %v1985 = vpop.permute.xlu0 %1984
    %1986 = vrot.lane.b32.xlu0 %v435, 24
    %v1987 = vpop.permute.xlu0 %1986
    %1988 = vrot.lane.b32.xlu0 %v436, 24
    %v1989 = vpop.permute.xlu0 %1988
    %1990 = vrot.lane.b32.xlu0 %v437, 24
    %v1991 = vpop.permute.xlu0 %1990
    %1992 = vrot.lane.b32.xlu0 %v438, 24
    %v1993 = vpop.permute.xlu0 %1992
    %1994 = vrot.lane.b32.xlu0 %v439, 24
    %v1995 = vpop.permute.xlu0 %1994
    %1996 = vrot.lane.b32.xlu0 %v440, 24
    %v1997 = vpop.permute.xlu0 %1996
    %1998 = vrot.lane.b32.xlu0 %v441, 24
    %v1999 = vpop.permute.xlu0 %1998
    %2000 = vrot.lane.b32.xlu0 %v442, 24
    %v2001 = vpop.permute.xlu0 %2000
    %2002 = vrot.lane.b32.xlu0 %v443, 24
    %v2003 = vpop.permute.xlu0 %2002
    %2004 = vrot.lane.b32.xlu0 %v444, 24
    %v2005 = vpop.permute.xlu0 %2004
    %2006 = vrot.lane.b32.xlu0 %v445, 24
    %v2007 = vpop.permute.xlu0 %2006
    %2008 = vrot.lane.b32.xlu0 %v446, 24
    %v2009 = vpop.permute.xlu0 %2008
    %2010 = vrot.lane.b32.xlu0 %v447, 24
    %v2011 = vpop.permute.xlu0 %2010
    %2012 = vrot.lane.b32.xlu0 %v448, 24
    %v2013 = vpop.permute.xlu0 %2012
    %2014 = vrot.lane.b32.xlu0 %v449, 24
    %v2015 = vpop.permute.xlu0 %2014
    %2016 = vrot.lane.b32.xlu0 %v450, 24
    %v2017 = vpop.permute.xlu0 %2016
    %2018 = vrot.lane.b32.xlu0 %v451, 24
    %v2019 = vpop.permute.xlu0 %2018
    %2020 = vrot.lane.b32.xlu0 %v452, 24
    %v2021 = vpop.permute.xlu0 %2020
    %2022 = vrot.lane.b32.xlu0 %v453, 24
    %v2023 = vpop.permute.xlu0 %2022
    %2024 = vrot.lane.b32.xlu0 %v454, 24
    %v2025 = vpop.permute.xlu0 %2024
    %2026 = vrot.lane.b32.xlu0 %v455, 24
    %v2027 = vpop.permute.xlu0 %2026
    %2028 = vrot.lane.b32.xlu0 %v456, 24
    %v2029 = vpop.permute.xlu0 %2028
    %2030 = vrot.lane.b32.xlu0 %v457, 24
    %v2031 = vpop.permute.xlu0 %2030
    %2032 = vrot.lane.b32.xlu0 %v458, 24
    %v2033 = vpop.permute.xlu0 %2032
    %2034 = vrot.lane.b32.xlu0 %v459, 24
    %v2035 = vpop.permute.xlu0 %2034
    %2036 = vrot.lane.b32.xlu0 %v460, 24
    %v2037 = vpop.permute.xlu0 %2036
    %2038 = vrot.lane.b32.xlu0 %v461, 24
    %v2039 = vpop.permute.xlu0 %2038
    %2040 = vrot.lane.b32.xlu0 %v462, 24
    %v2041 = vpop.permute.xlu0 %2040
    %2042 = vrot.lane.b32.xlu0 %v463, 24
    %v2043 = vpop.permute.xlu0 %2042
    %2044 = vrot.lane.b32.xlu0 %v464, 24
    %v2045 = vpop.permute.xlu0 %2044
    %2046 = vrot.lane.b32.xlu0 %v465, 24
    %v2047 = vpop.permute.xlu0 %2046
    %2048 = vrot.lane.b32.xlu0 %v466, 24
    %v2049 = vpop.permute.xlu0 %2048
    %2050 = vrot.lane.b32.xlu0 %v467, 24
    %v2051 = vpop.permute.xlu0 %2050
    %2052 = vrot.lane.b32.xlu0 %v468, 24
    %v2053 = vpop.permute.xlu0 %2052
    %2054 = vrot.lane.b32.xlu0 %v469, 24
    %v2055 = vpop.permute.xlu0 %2054
    %2056 = vrot.lane.b32.xlu0 %v470, 24
    %v2057 = vpop.permute.xlu0 %2056
    %2058 = vrot.lane.b32.xlu0 %v471, 24
    %v2059 = vpop.permute.xlu0 %2058
    %2060 = vrot.lane.b32.xlu0 %v472, 24
    %v2061 = vpop.permute.xlu0 %2060
    %2062 = vrot.lane.b32.xlu0 %v473, 24
    %v2063 = vpop.permute.xlu0 %2062
    %2064 = vrot.lane.b32.xlu0 %v474, 24
    %v2065 = vpop.permute.xlu0 %2064
    %2066 = vrot.lane.b32.xlu0 %v475, 24
    %v2067 = vpop.permute.xlu0 %2066
    %2068 = vrot.lane.b32.xlu0 %v476, 24
    %v2069 = vpop.permute.xlu0 %2068
    %2070 = vrot.lane.b32.xlu0 %v477, 24
    %v2071 = vpop.permute.xlu0 %2070
    %2072 = vrot.lane.b32.xlu0 %v478, 24
    %v2073 = vpop.permute.xlu0 %2072
    %2074 = vrot.lane.b32.xlu0 %v479, 24
    %v2075 = vpop.permute.xlu0 %2074
    %2076 = vrot.lane.b32.xlu0 %v480, 24
    %v2077 = vpop.permute.xlu0 %2076
    %2078 = vrot.lane.b32.xlu0 %v481, 24
    %v2079 = vpop.permute.xlu0 %2078
    %2080 = vrot.lane.b32.xlu0 %v482, 24
    %v2081 = vpop.permute.xlu0 %2080
    %2082 = vrot.lane.b32.xlu0 %v483, 24
    %v2083 = vpop.permute.xlu0 %2082
    %2212 = vrot.lane.b32.xlu0 %v484, 28
    %v2213 = vpop.permute.xlu0 %2212
    %2214 = vrot.lane.b32.xlu0 %v485, 28
    %v2215 = vpop.permute.xlu0 %2214
    %2216 = vrot.lane.b32.xlu0 %v486, 28
    %v2217 = vpop.permute.xlu0 %2216
    %2218 = vrot.lane.b32.xlu0 %v487, 28
    %v2219 = vpop.permute.xlu0 %2218
    %2220 = vrot.lane.b32.xlu0 %v488, 28
    %v2221 = vpop.permute.xlu0 %2220
    %2222 = vrot.lane.b32.xlu0 %v489, 28
    %v2223 = vpop.permute.xlu0 %2222
    %2224 = vrot.lane.b32.xlu0 %v490, 28
    %v2225 = vpop.permute.xlu0 %2224
    %2226 = vrot.lane.b32.xlu0 %v491, 28
    %v2227 = vpop.permute.xlu0 %2226
    %2228 = vrot.lane.b32.xlu0 %v492, 28
    %v2229 = vpop.permute.xlu0 %2228
    %2230 = vrot.lane.b32.xlu0 %v493, 28
    %v2231 = vpop.permute.xlu0 %2230
    %2232 = vrot.lane.b32.xlu0 %v494, 28
    %v2233 = vpop.permute.xlu0 %2232
    %2234 = vrot.lane.b32.xlu0 %v495, 28
    %v2235 = vpop.permute.xlu0 %2234
    %2236 = vrot.lane.b32.xlu0 %v496, 28
    %v2237 = vpop.permute.xlu0 %2236
    %2238 = vrot.lane.b32.xlu0 %v497, 28
    %v2239 = vpop.permute.xlu0 %2238
    %2240 = vrot.lane.b32.xlu0 %v498, 28
    %v2241 = vpop.permute.xlu0 %2240
    %2242 = vrot.lane.b32.xlu0 %v499, 28
    %v2243 = vpop.permute.xlu0 %2242
    %2244 = vrot.lane.b32.xlu0 %v500, 28
    %v2245 = vpop.permute.xlu0 %2244
    %2246 = vrot.lane.b32.xlu0 %v501, 28
    %v2247 = vpop.permute.xlu0 %2246
    %2248 = vrot.lane.b32.xlu0 %v502, 28
    %v2249 = vpop.permute.xlu0 %2248
    %2250 = vrot.lane.b32.xlu0 %v503, 28
    %v2251 = vpop.permute.xlu0 %2250
    %2252 = vrot.lane.b32.xlu0 %v504, 28
    %v2253 = vpop.permute.xlu0 %2252
    %2254 = vrot.lane.b32.xlu0 %v505, 28
    %v2255 = vpop.permute.xlu0 %2254
    %2256 = vrot.lane.b32.xlu0 %v506, 28
    %v2257 = vpop.permute.xlu0 %2256
    %2258 = vrot.lane.b32.xlu0 %v507, 28
    %v2259 = vpop.permute.xlu0 %2258
    %2260 = vrot.lane.b32.xlu0 %v508, 28
    %v2261 = vpop.permute.xlu0 %2260
    %2262 = vrot.lane.b32.xlu0 %v509, 28
    %v2263 = vpop.permute.xlu0 %2262
    %2264 = vrot.lane.b32.xlu0 %v510, 28
    %v2265 = vpop.permute.xlu0 %2264
    %2266 = vrot.lane.b32.xlu0 %v511, 28
    %v2267 = vpop.permute.xlu0 %2266
    %2268 = vrot.lane.b32.xlu0 %v512, 28
    %v2269 = vpop.permute.xlu0 %2268
    %2270 = vrot.lane.b32.xlu0 %v513, 28
    %v2271 = vpop.permute.xlu0 %2270
    %2272 = vrot.lane.b32.xlu0 %v514, 28
    %v2273 = vpop.permute.xlu0 %2272
    %2274 = vrot.lane.b32.xlu0 %v515, 28
    %v2275 = vpop.permute.xlu0 %2274
    %2276 = vrot.lane.b32.xlu0 %v516, 28
    %v2277 = vpop.permute.xlu0 %2276
    %2278 = vrot.lane.b32.xlu0 %v517, 28
    %v2279 = vpop.permute.xlu0 %2278
    %2280 = vrot.lane.b32.xlu0 %v518, 28
    %v2281 = vpop.permute.xlu0 %2280
    %2282 = vrot.lane.b32.xlu0 %v519, 28
    %v2283 = vpop.permute.xlu0 %2282
    %2284 = vrot.lane.b32.xlu0 %v520, 28
    %v2285 = vpop.permute.xlu0 %2284
    %2286 = vrot.lane.b32.xlu0 %v521, 28
    %v2287 = vpop.permute.xlu0 %2286
    %2288 = vrot.lane.b32.xlu0 %v522, 28
    %v2289 = vpop.permute.xlu0 %2288
    %2290 = vrot.lane.b32.xlu0 %v523, 28
    %v2291 = vpop.permute.xlu0 %2290
    %2292 = vrot.lane.b32.xlu0 %v524, 28
    %v2293 = vpop.permute.xlu0 %2292
    %2294 = vrot.lane.b32.xlu0 %v525, 28
    %v2295 = vpop.permute.xlu0 %2294
    %2296 = vrot.lane.b32.xlu0 %v526, 28
    %v2297 = vpop.permute.xlu0 %2296
    %2298 = vrot.lane.b32.xlu0 %v527, 28
    %v2299 = vpop.permute.xlu0 %2298
    %2300 = vrot.lane.b32.xlu0 %v528, 28
    %v2301 = vpop.permute.xlu0 %2300
    %2302 = vrot.lane.b32.xlu0 %v529, 28
    %v2303 = vpop.permute.xlu0 %2302
    %2304 = vrot.lane.b32.xlu0 %v530, 28
    %v2305 = vpop.permute.xlu0 %2304
    %2306 = vrot.lane.b32.xlu0 %v531, 28
    %v2307 = vpop.permute.xlu0 %2306
    %2308 = vrot.lane.b32.xlu0 %v532, 28
    %v2309 = vpop.permute.xlu0 %2308
    %2310 = vrot.lane.b32.xlu0 %v533, 28
    %v2311 = vpop.permute.xlu0 %2310
    %2312 = vrot.lane.b32.xlu0 %v534, 28
    %v2313 = vpop.permute.xlu0 %2312
    %2314 = vrot.lane.b32.xlu0 %v535, 28
    %v2315 = vpop.permute.xlu0 %2314
    %2316 = vrot.lane.b32.xlu0 %v536, 28
    %v2317 = vpop.permute.xlu0 %2316
    %2318 = vrot.lane.b32.xlu0 %v537, 28
    %v2319 = vpop.permute.xlu0 %2318
    %2320 = vrot.lane.b32.xlu0 %v538, 28
    %v2321 = vpop.permute.xlu0 %2320
    %2322 = vrot.lane.b32.xlu0 %v539, 28
    %v2323 = vpop.permute.xlu0 %2322
    %2324 = vrot.lane.b32.xlu0 %v540, 28
    %v2325 = vpop.permute.xlu0 %2324
    %2326 = vrot.lane.b32.xlu0 %v541, 28
    %v2327 = vpop.permute.xlu0 %2326
    %2328 = vrot.lane.b32.xlu0 %v542, 28
    %v2329 = vpop.permute.xlu0 %2328
    %2330 = vrot.lane.b32.xlu0 %v543, 28
    %v2331 = vpop.permute.xlu0 %2330
    %2332 = vrot.lane.b32.xlu0 %v544, 28
    %v2333 = vpop.permute.xlu0 %2332
    %2334 = vrot.lane.b32.xlu0 %v545, 28
    %v2335 = vpop.permute.xlu0 %2334
    %2336 = vrot.lane.b32.xlu0 %v546, 28
    %v2337 = vpop.permute.xlu0 %2336
    %2338 = vrot.lane.b32.xlu0 %v547, 28
    %v2339 = vpop.permute.xlu0 %2338
    %2468 = vrot.lane.b32.xlu0 %v548, 32
    %v2469 = vpop.permute.xlu0 %2468
    %2470 = vrot.lane.b32.xlu0 %v549, 32
    %v2471 = vpop.permute.xlu0 %2470
    %2472 = vrot.lane.b32.xlu0 %v550, 32
    %v2473 = vpop.permute.xlu0 %2472
    %2474 = vrot.lane.b32.xlu0 %v551, 32
    %v2475 = vpop.permute.xlu0 %2474
    %2476 = vrot.lane.b32.xlu0 %v552, 32
    %v2477 = vpop.permute.xlu0 %2476
    %2478 = vrot.lane.b32.xlu0 %v553, 32
    %v2479 = vpop.permute.xlu0 %2478
    %2480 = vrot.lane.b32.xlu0 %v554, 32
    %v2481 = vpop.permute.xlu0 %2480
    %2482 = vrot.lane.b32.xlu0 %v555, 32
    %v2483 = vpop.permute.xlu0 %2482
    %2484 = vrot.lane.b32.xlu0 %v556, 32
    %v2485 = vpop.permute.xlu0 %2484
    %2486 = vrot.lane.b32.xlu0 %v557, 32
    %v2487 = vpop.permute.xlu0 %2486
    %2488 = vrot.lane.b32.xlu0 %v558, 32
    %v2489 = vpop.permute.xlu0 %2488
    %2490 = vrot.lane.b32.xlu0 %v559, 32
    %v2491 = vpop.permute.xlu0 %2490
    %2492 = vrot.lane.b32.xlu0 %v560, 32
    %v2493 = vpop.permute.xlu0 %2492
    %2494 = vrot.lane.b32.xlu0 %v561, 32
    %v2495 = vpop.permute.xlu0 %2494
    %2496 = vrot.lane.b32.xlu0 %v562, 32
    %v2497 = vpop.permute.xlu0 %2496
    %2498 = vrot.lane.b32.xlu0 %v563, 32
    %v2499 = vpop.permute.xlu0 %2498
    %2500 = vrot.lane.b32.xlu0 %v564, 32
    %v2501 = vpop.permute.xlu0 %2500
    %2502 = vrot.lane.b32.xlu0 %v565, 32
    %v2503 = vpop.permute.xlu0 %2502
    %2504 = vrot.lane.b32.xlu0 %v566, 32
    %v2505 = vpop.permute.xlu0 %2504
    %2506 = vrot.lane.b32.xlu0 %v567, 32
    %v2507 = vpop.permute.xlu0 %2506
    %2508 = vrot.lane.b32.xlu0 %v568, 32
    %v2509 = vpop.permute.xlu0 %2508
    %2510 = vrot.lane.b32.xlu0 %v569, 32
    %v2511 = vpop.permute.xlu0 %2510
    %2512 = vrot.lane.b32.xlu0 %v570, 32
    %v2513 = vpop.permute.xlu0 %2512
    %2514 = vrot.lane.b32.xlu0 %v571, 32
    %v2515 = vpop.permute.xlu0 %2514
    %2516 = vrot.lane.b32.xlu0 %v572, 32
    %v2517 = vpop.permute.xlu0 %2516
    %2518 = vrot.lane.b32.xlu0 %v573, 32
    %v2519 = vpop.permute.xlu0 %2518
    %2520 = vrot.lane.b32.xlu0 %v574, 32
    %v2521 = vpop.permute.xlu0 %2520
    %2522 = vrot.lane.b32.xlu0 %v575, 32
    %v2523 = vpop.permute.xlu0 %2522
    %2524 = vrot.lane.b32.xlu0 %v576, 32
    %v2525 = vpop.permute.xlu0 %2524
    %2526 = vrot.lane.b32.xlu0 %v577, 32
    %v2527 = vpop.permute.xlu0 %2526
    %2528 = vrot.lane.b32.xlu0 %v578, 32
    %v2529 = vpop.permute.xlu0 %2528
    %2530 = vrot.lane.b32.xlu0 %v579, 32
    %v2531 = vpop.permute.xlu0 %2530
    %2532 = vrot.lane.b32.xlu0 %v580, 32
    %v2533 = vpop.permute.xlu0 %2532
    %2534 = vrot.lane.b32.xlu0 %v581, 32
    %v2535 = vpop.permute.xlu0 %2534
    %2536 = vrot.lane.b32.xlu0 %v582, 32
    %v2537 = vpop.permute.xlu0 %2536
    %2538 = vrot.lane.b32.xlu0 %v583, 32
    %v2539 = vpop.permute.xlu0 %2538
    %2540 = vrot.lane.b32.xlu0 %v584, 32
    %v2541 = vpop.permute.xlu0 %2540
    %2542 = vrot.lane.b32.xlu0 %v585, 32
    %v2543 = vpop.permute.xlu0 %2542
    %2544 = vrot.lane.b32.xlu0 %v586, 32
    %v2545 = vpop.permute.xlu0 %2544
    %2546 = vrot.lane.b32.xlu0 %v587, 32
    %v2547 = vpop.permute.xlu0 %2546
    %2548 = vrot.lane.b32.xlu0 %v588, 32
    %v2549 = vpop.permute.xlu0 %2548
    %2550 = vrot.lane.b32.xlu0 %v589, 32
    %v2551 = vpop.permute.xlu0 %2550
    %2552 = vrot.lane.b32.xlu0 %v590, 32
    %v2553 = vpop.permute.xlu0 %2552
    %2554 = vrot.lane.b32.xlu0 %v591, 32
    %v2555 = vpop.permute.xlu0 %2554
    %2556 = vrot.lane.b32.xlu0 %v592, 32
    %v2557 = vpop.permute.xlu0 %2556
    %2558 = vrot.lane.b32.xlu0 %v593, 32
    %v2559 = vpop.permute.xlu0 %2558
    %2560 = vrot.lane.b32.xlu0 %v594, 32
    %v2561 = vpop.permute.xlu0 %2560
    %2562 = vrot.lane.b32.xlu0 %v595, 32
    %v2563 = vpop.permute.xlu0 %2562
    %2564 = vrot.lane.b32.xlu0 %v596, 32
    %v2565 = vpop.permute.xlu0 %2564
    %2566 = vrot.lane.b32.xlu0 %v597, 32
    %v2567 = vpop.permute.xlu0 %2566
    %2568 = vrot.lane.b32.xlu0 %v598, 32
    %v2569 = vpop.permute.xlu0 %2568
    %2570 = vrot.lane.b32.xlu0 %v599, 32
    %v2571 = vpop.permute.xlu0 %2570
    %2572 = vrot.lane.b32.xlu0 %v600, 32
    %v2573 = vpop.permute.xlu0 %2572
    %2574 = vrot.lane.b32.xlu0 %v601, 32
    %v2575 = vpop.permute.xlu0 %2574
    %2576 = vrot.lane.b32.xlu0 %v602, 32
    %v2577 = vpop.permute.xlu0 %2576
    %2578 = vrot.lane.b32.xlu0 %v603, 32
    %v2579 = vpop.permute.xlu0 %2578
    %2580 = vrot.lane.b32.xlu0 %v604, 32
    %v2581 = vpop.permute.xlu0 %2580
    %2582 = vrot.lane.b32.xlu0 %v605, 32
    %v2583 = vpop.permute.xlu0 %2582
    %2584 = vrot.lane.b32.xlu0 %v606, 32
    %v2585 = vpop.permute.xlu0 %2584
    %2586 = vrot.lane.b32.xlu0 %v607, 32
    %v2587 = vpop.permute.xlu0 %2586
    %2588 = vrot.lane.b32.xlu0 %v608, 32
    %v2589 = vpop.permute.xlu0 %2588
    %2590 = vrot.lane.b32.xlu0 %v609, 32
    %v2591 = vpop.permute.xlu0 %2590
    %2592 = vrot.lane.b32.xlu0 %v610, 32
    %v2593 = vpop.permute.xlu0 %2592
    %2594 = vrot.lane.b32.xlu0 %v611, 32
    %v2595 = vpop.permute.xlu0 %2594
    %vm2660 = vcmask 31744
    %v2661 = vsel %vm2660, %v34, %v677
    %v2662 = vsel %vm2660, %v35, %v679
    %v2663 = vsel %vm2660, %v36, %v681
    %v2664 = vsel %vm2660, %v37, %v683
    %v2665 = vsel %vm2660, %v38, %v685
    %v2666 = vsel %vm2660, %v39, %v687
    %v2667 = vsel %vm2660, %v40, %v689
    %v2668 = vsel %vm2660, %v41, %v691
    %v2669 = vsel %vm2660, %v42, %v693
    %v2670 = vsel %vm2660, %v43, %v695
    %v2671 = vsel %vm2660, %v44, %v697
    %v2672 = vsel %vm2660, %v45, %v699
    %v2673 = vsel %vm2660, %v46, %v701
    %v2674 = vsel %vm2660, %v47, %v703
    %v2675 = vsel %vm2660, %v48, %v705
    %v2676 = vsel %vm2660, %v49, %v707
    %v2677 = vsel %vm2660, %v50, %v709
    %v2678 = vsel %vm2660, %v51, %v711
    %v2679 = vsel %vm2660, %v52, %v713
    %v2680 = vsel %vm2660, %v53, %v715
    %v2681 = vsel %vm2660, %v54, %v717
    %v2682 = vsel %vm2660, %v55, %v719
    %v2683 = vsel %vm2660, %v56, %v721
    %v2684 = vsel %vm2660, %v57, %v723
    %v2685 = vsel %vm2660, %v58, %v725
    %v2686 = vsel %vm2660, %v59, %v727
    %v2687 = vsel %vm2660, %v60, %v729
    %v2688 = vsel %vm2660, %v61, %v731
    %v2689 = vsel %vm2660, %v62, %v733
    %v2690 = vsel %vm2660, %v63, %v735
    %v2691 = vsel %vm2660, %v64, %v737
    %v2692 = vsel %vm2660, %v65, %v739
    %v2693 = vsel %vm2660, %v66, %v741
    %v2694 = vsel %vm2660, %v67, %v743
    %v2695 = vsel %vm2660, %v68, %v745
    %v2696 = vsel %vm2660, %v69, %v747
    %v2697 = vsel %vm2660, %v70, %v749
    %v2698 = vsel %vm2660, %v71, %v751
    %v2699 = vsel %vm2660, %v72, %v753
    %v2700 = vsel %vm2660, %v73, %v755
    %v2701 = vsel %vm2660, %v74, %v757
    %v2702 = vsel %vm2660, %v75, %v759
    %v2703 = vsel %vm2660, %v76, %v761
    %v2704 = vsel %vm2660, %v77, %v763
    %v2705 = vsel %vm2660, %v78, %v765
    %v2706 = vsel %vm2660, %v79, %v767
    %v2707 = vsel %vm2660, %v80, %v769
    %v2708 = vsel %vm2660, %v81, %v771
    %v2709 = vsel %vm2660, %v82, %v773
    %v2710 = vsel %vm2660, %v83, %v775
    %v2711 = vsel %vm2660, %v84, %v777
    %v2712 = vsel %vm2660, %v85, %v779
    %v2713 = vsel %vm2660, %v86, %v781
    %v2714 = vsel %vm2660, %v87, %v783
    %v2715 = vsel %vm2660, %v88, %v785
    %v2716 = vsel %vm2660, %v89, %v787
    %v2717 = vsel %vm2660, %v90, %v789
    %v2718 = vsel %vm2660, %v91, %v791
    %v2719 = vsel %vm2660, %v92, %v793
    %v2720 = vsel %vm2660, %v93, %v795
    %v2721 = vsel %vm2660, %v94, %v797
    %v2722 = vsel %vm2660, %v95, %v799
    %v2723 = vsel %vm2660, %v96, %v801
    %v2724 = vsel %vm2660, %v97, %v803
    %vm2725 = vcmask 64512
    %v2726 = vsel %vm2725, %v2661, %v933
    %v2727 = vsel %vm2725, %v2662, %v935
    %v2728 = vsel %vm2725, %v2663, %v937
    %v2729 = vsel %vm2725, %v2664, %v939
    %v2730 = vsel %vm2725, %v2665, %v941
    %v2731 = vsel %vm2725, %v2666, %v943
    %v2732 = vsel %vm2725, %v2667, %v945
    %v2733 = vsel %vm2725, %v2668, %v947
    %v2734 = vsel %vm2725, %v2669, %v949
    %v2735 = vsel %vm2725, %v2670, %v951
    %v2736 = vsel %vm2725, %v2671, %v953
    %v2737 = vsel %vm2725, %v2672, %v955
    %v2738 = vsel %vm2725, %v2673, %v957
    %v2739 = vsel %vm2725, %v2674, %v959
    %v2740 = vsel %vm2725, %v2675, %v961
    %v2741 = vsel %vm2725, %v2676, %v963
    %v2742 = vsel %vm2725, %v2677, %v965
    %v2743 = vsel %vm2725, %v2678, %v967
    %v2744 = vsel %vm2725, %v2679, %v969
    %v2745 = vsel %vm2725, %v2680, %v971
    %v2746 = vsel %vm2725, %v2681, %v973
    %v2747 = vsel %vm2725, %v2682, %v975
    %v2748 = vsel %vm2725, %v2683, %v977
    %v2749 = vsel %vm2725, %v2684, %v979
    %v2750 = vsel %vm2725, %v2685, %v981
    %v2751 = vsel %vm2725, %v2686, %v983
    %v2752 = vsel %vm2725, %v2687, %v985
    %v2753 = vsel %vm2725, %v2688, %v987
    %v2754 = vsel %vm2725, %v2689, %v989
    %v2755 = vsel %vm2725, %v2690, %v991
    %v2756 = vsel %vm2725, %v2691, %v993
    %v2757 = vsel %vm2725, %v2692, %v995
    %v2758 = vsel %vm2725, %v2693, %v997
    %v2759 = vsel %vm2725, %v2694, %v999
    %v2760 = vsel %vm2725, %v2695, %v1001
    %v2761 = vsel %vm2725, %v2696, %v1003
    %v2762 = vsel %vm2725, %v2697, %v1005
    %v2763 = vsel %vm2725, %v2698, %v1007
    %v2764 = vsel %vm2725, %v2699, %v1009
    %v2765 = vsel %vm2725, %v2700, %v1011
    %v2766 = vsel %vm2725, %v2701, %v1013
    %v2767 = vsel %vm2725, %v2702, %v1015
    %v2768 = vsel %vm2725, %v2703, %v1017
    %v2769 = vsel %vm2725, %v2704, %v1019
    %v2770 = vsel %vm2725, %v2705, %v1021
    %v2771 = vsel %vm2725, %v2706, %v1023
    %v2772 = vsel %vm2725, %v2707, %v1025
    %v2773 = vsel %vm2725, %v2708, %v1027
    %v2774 = vsel %vm2725, %v2709, %v1029
    %v2775 = vsel %vm2725, %v2710, %v1031
    %v2776 = vsel %vm2725, %v2711, %v1033
    %v2777 = vsel %vm2725, %v2712, %v1035
    %v2778 = vsel %vm2725, %v2713, %v1037
    %v2779 = vsel %vm2725, %v2714, %v1039
    %v2780 = vsel %vm2725, %v2715, %v1041
    %v2781 = vsel %vm2725, %v2716, %v1043
    %v2782 = vsel %vm2725, %v2717, %v1045
    %v2783 = vsel %vm2725, %v2718, %v1047
    %v2784 = vsel %vm2725, %v2719, %v1049
    %v2785 = vsel %vm2725, %v2720, %v1051
    %v2786 = vsel %vm2725, %v2721, %v1053
    %v2787 = vsel %vm2725, %v2722, %v1055
    %v2788 = vsel %vm2725, %v2723, %v1057
    %v2789 = vsel %vm2725, %v2724, %v1059
    %vm2790 = vcmask 97280
    %v2791 = vsel %vm2790, %v2726, %v1189
    %v2792 = vsel %vm2790, %v2727, %v1191
    %v2793 = vsel %vm2790, %v2728, %v1193
    %v2794 = vsel %vm2790, %v2729, %v1195
    %v2795 = vsel %vm2790, %v2730, %v1197
    %v2796 = vsel %vm2790, %v2731, %v1199
    %v2797 = vsel %vm2790, %v2732, %v1201
    %v2798 = vsel %vm2790, %v2733, %v1203
    %v2799 = vsel %vm2790, %v2734, %v1205
    %v2800 = vsel %vm2790, %v2735, %v1207
    %v2801 = vsel %vm2790, %v2736, %v1209
    %v2802 = vsel %vm2790, %v2737, %v1211
    %v2803 = vsel %vm2790, %v2738, %v1213
    %v2804 = vsel %vm2790, %v2739, %v1215
    %v2805 = vsel %vm2790, %v2740, %v1217
    %v2806 = vsel %vm2790, %v2741, %v1219
    %v2807 = vsel %vm2790, %v2742, %v1221
    %v2808 = vsel %vm2790, %v2743, %v1223
    %v2809 = vsel %vm2790, %v2744, %v1225
    %v2810 = vsel %vm2790, %v2745, %v1227
    %v2811 = vsel %vm2790, %v2746, %v1229
    %v2812 = vsel %vm2790, %v2747, %v1231
    %v2813 = vsel %vm2790, %v2748, %v1233
    %v2814 = vsel %vm2790, %v2749, %v1235
    %v2815 = vsel %vm2790, %v2750, %v1237
    %v2816 = vsel %vm2790, %v2751, %v1239
    %v2817 = vsel %vm2790, %v2752, %v1241
    %v2818 = vsel %vm2790, %v2753, %v1243
    %v2819 = vsel %vm2790, %v2754, %v1245
    %v2820 = vsel %vm2790, %v2755, %v1247
    %v2821 = vsel %vm2790, %v2756, %v1249
    %v2822 = vsel %vm2790, %v2757, %v1251
    %v2823 = vsel %vm2790, %v2758, %v1253
    %v2824 = vsel %vm2790, %v2759, %v1255
    %v2825 = vsel %vm2790, %v2760, %v1257
    %v2826 = vsel %vm2790, %v2761, %v1259
    %v2827 = vsel %vm2790, %v2762, %v1261
    %v2828 = vsel %vm2790, %v2763, %v1263
    %v2829 = vsel %vm2790, %v2764, %v1265
    %v2830 = vsel %vm2790, %v2765, %v1267
    %v2831 = vsel %vm2790, %v2766, %v1269
    %v2832 = vsel %vm2790, %v2767, %v1271
    %v2833 = vsel %vm2790, %v2768, %v1273
    %v2834 = vsel %vm2790, %v2769, %v1275
    %v2835 = vsel %vm2790, %v2770, %v1277
    %v2836 = vsel %vm2790, %v2771, %v1279
    %v2837 = vsel %vm2790, %v2772, %v1281
    %v2838 = vsel %vm2790, %v2773, %v1283
    %v2839 = vsel %vm2790, %v2774, %v1285
    %v2840 = vsel %vm2790, %v2775, %v1287
    %v2841 = vsel %vm2790, %v2776, %v1289
    %v2842 = vsel %vm2790, %v2777, %v1291
    %v2843 = vsel %vm2790, %v2778, %v1293
    %v2844 = vsel %vm2790, %v2779, %v1295
    %v2845 = vsel %vm2790, %v2780, %v1297
    %v2846 = vsel %vm2790, %v2781, %v1299
    %v2847 = vsel %vm2790, %v2782, %v1301
    %v2848 = vsel %vm2790, %v2783, %v1303
    %v2849 = vsel %vm2790, %v2784, %v1305
    %v2850 = vsel %vm2790, %v2785, %v1307
    %v2851 = vsel %vm2790, %v2786, %v1309
    %v2852 = vsel %vm2790, %v2787, %v1311
    %v2853 = vsel %vm2790, %v2788, %v1313
    %v2854 = vsel %vm2790, %v2789, %v1315
    %vm2855 = vcmask 130048
    %v2856 = vsel %vm2855, %v2791, %v1445
    %v2857 = vsel %vm2855, %v2792, %v1447
    %v2858 = vsel %vm2855, %v2793, %v1449
    %v2859 = vsel %vm2855, %v2794, %v1451
    %v2860 = vsel %vm2855, %v2795, %v1453
    %v2861 = vsel %vm2855, %v2796, %v1455
    %v2862 = vsel %vm2855, %v2797, %v1457
    %v2863 = vsel %vm2855, %v2798, %v1459
    %v2864 = vsel %vm2855, %v2799, %v1461
    %v2865 = vsel %vm2855, %v2800, %v1463
    %v2866 = vsel %vm2855, %v2801, %v1465
    %v2867 = vsel %vm2855, %v2802, %v1467
    %v2868 = vsel %vm2855, %v2803, %v1469
    %v2869 = vsel %vm2855, %v2804, %v1471
    %v2870 = vsel %vm2855, %v2805, %v1473
    %v2871 = vsel %vm2855, %v2806, %v1475
    %v2872 = vsel %vm2855, %v2807, %v1477
    %v2873 = vsel %vm2855, %v2808, %v1479
    %v2874 = vsel %vm2855, %v2809, %v1481
    %v2875 = vsel %vm2855, %v2810, %v1483
    %v2876 = vsel %vm2855, %v2811, %v1485
    %v2877 = vsel %vm2855, %v2812, %v1487
    %v2878 = vsel %vm2855, %v2813, %v1489
    %v2879 = vsel %vm2855, %v2814, %v1491
    %v2880 = vsel %vm2855, %v2815, %v1493
    %v2881 = vsel %vm2855, %v2816, %v1495
    %v2882 = vsel %vm2855, %v2817, %v1497
    %v2883 = vsel %vm2855, %v2818, %v1499
    %v2884 = vsel %vm2855, %v2819, %v1501
    %v2885 = vsel %vm2855, %v2820, %v1503
    %v2886 = vsel %vm2855, %v2821, %v1505
    %v2887 = vsel %vm2855, %v2822, %v1507
    %v2888 = vsel %vm2855, %v2823, %v1509
    %v2889 = vsel %vm2855, %v2824, %v1511
    %v2890 = vsel %vm2855, %v2825, %v1513
    %v2891 = vsel %vm2855, %v2826, %v1515
    %v2892 = vsel %vm2855, %v2827, %v1517
    %v2893 = vsel %vm2855, %v2828, %v1519
    %v2894 = vsel %vm2855, %v2829, %v1521
    %v2895 = vsel %vm2855, %v2830, %v1523
    %v2896 = vsel %vm2855, %v2831, %v1525
    %v2897 = vsel %vm2855, %v2832, %v1527
    %v2898 = vsel %vm2855, %v2833, %v1529
    %v2899 = vsel %vm2855, %v2834, %v1531
    %v2900 = vsel %vm2855, %v2835, %v1533
    %v2901 = vsel %vm2855, %v2836, %v1535
    %v2902 = vsel %vm2855, %v2837, %v1537
    %v2903 = vsel %vm2855, %v2838, %v1539
    %v2904 = vsel %vm2855, %v2839, %v1541
    %v2905 = vsel %vm2855, %v2840, %v1543
    %v2906 = vsel %vm2855, %v2841, %v1545
    %v2907 = vsel %vm2855, %v2842, %v1547
    %v2908 = vsel %vm2855, %v2843, %v1549
    %v2909 = vsel %vm2855, %v2844, %v1551
    %v2910 = vsel %vm2855, %v2845, %v1553
    %v2911 = vsel %vm2855, %v2846, %v1555
    %v2912 = vsel %vm2855, %v2847, %v1557
    %v2913 = vsel %vm2855, %v2848, %v1559
    %v2914 = vsel %vm2855, %v2849, %v1561
    %v2915 = vsel %vm2855, %v2850, %v1563
    %v2916 = vsel %vm2855, %v2851, %v1565
    %v2917 = vsel %vm2855, %v2852, %v1567
    %v2918 = vsel %vm2855, %v2853, %v1569
    %v2919 = vsel %vm2855, %v2854, %v1571
    %vm2920 = vcmask 162816
    %v2921 = vsel %vm2920, %v2856, %v1701
    %v2922 = vsel %vm2920, %v2857, %v1703
    %v2923 = vsel %vm2920, %v2858, %v1705
    %v2924 = vsel %vm2920, %v2859, %v1707
    %v2925 = vsel %vm2920, %v2860, %v1709
    %v2926 = vsel %vm2920, %v2861, %v1711
    %v2927 = vsel %vm2920, %v2862, %v1713
    %v2928 = vsel %vm2920, %v2863, %v1715
    %v2929 = vsel %vm2920, %v2864, %v1717
    %v2930 = vsel %vm2920, %v2865, %v1719
    %v2931 = vsel %vm2920, %v2866, %v1721
    %v2932 = vsel %vm2920, %v2867, %v1723
    %v2933 = vsel %vm2920, %v2868, %v1725
    %v2934 = vsel %vm2920, %v2869, %v1727
    %v2935 = vsel %vm2920, %v2870, %v1729
    %v2936 = vsel %vm2920, %v2871, %v1731
    %v2937 = vsel %vm2920, %v2872, %v1733
    %v2938 = vsel %vm2920, %v2873, %v1735
    %v2939 = vsel %vm2920, %v2874, %v1737
    %v2940 = vsel %vm2920, %v2875, %v1739
    %v2941 = vsel %vm2920, %v2876, %v1741
    %v2942 = vsel %vm2920, %v2877, %v1743
    %v2943 = vsel %vm2920, %v2878, %v1745
    %v2944 = vsel %vm2920, %v2879, %v1747
    %v2945 = vsel %vm2920, %v2880, %v1749
    %v2946 = vsel %vm2920, %v2881, %v1751
    %v2947 = vsel %vm2920, %v2882, %v1753
    %v2948 = vsel %vm2920, %v2883, %v1755
    %v2949 = vsel %vm2920, %v2884, %v1757
    %v2950 = vsel %vm2920, %v2885, %v1759
    %v2951 = vsel %vm2920, %v2886, %v1761
    %v2952 = vsel %vm2920, %v2887, %v1763
    %v2953 = vsel %vm2920, %v2888, %v1765
    %v2954 = vsel %vm2920, %v2889, %v1767
    %v2955 = vsel %vm2920, %v2890, %v1769
    %v2956 = vsel %vm2920, %v2891, %v1771
    %v2957 = vsel %vm2920, %v2892, %v1773
    %v2958 = vsel %vm2920, %v2893, %v1775
    %v2959 = vsel %vm2920, %v2894, %v1777
    %v2960 = vsel %vm2920, %v2895, %v1779
    %v2961 = vsel %vm2920, %v2896, %v1781
    %v2962 = vsel %vm2920, %v2897, %v1783
    %v2963 = vsel %vm2920, %v2898, %v1785
    %v2964 = vsel %vm2920, %v2899, %v1787
    %v2965 = vsel %vm2920, %v2900, %v1789
    %v2966 = vsel %vm2920, %v2901, %v1791
    %v2967 = vsel %vm2920, %v2902, %v1793
    %v2968 = vsel %vm2920, %v2903, %v1795
    %v2969 = vsel %vm2920, %v2904, %v1797
    %v2970 = vsel %vm2920, %v2905, %v1799
    %v2971 = vsel %vm2920, %v2906, %v1801
    %v2972 = vsel %vm2920, %v2907, %v1803
    %v2973 = vsel %vm2920, %v2908, %v1805
    %v2974 = vsel %vm2920, %v2909, %v1807
    %v2975 = vsel %vm2920, %v2910, %v1809
    %v2976 = vsel %vm2920, %v2911, %v1811
    %v2977 = vsel %vm2920, %v2912, %v1813
    %v2978 = vsel %vm2920, %v2913, %v1815
    %v2979 = vsel %vm2920, %v2914, %v1817
    %v2980 = vsel %vm2920, %v2915, %v1819
    %v2981 = vsel %vm2920, %v2916, %v1821
    %v2982 = vsel %vm2920, %v2917, %v1823
    %v2983 = vsel %vm2920, %v2918, %v1825
    %v2984 = vsel %vm2920, %v2919, %v1827
    %vm2985 = vcmask 195584
    %v2986 = vsel %vm2985, %v2921, %v1957
    %v2987 = vsel %vm2985, %v2922, %v1959
    %v2988 = vsel %vm2985, %v2923, %v1961
    %v2989 = vsel %vm2985, %v2924, %v1963
    %v2990 = vsel %vm2985, %v2925, %v1965
    %v2991 = vsel %vm2985, %v2926, %v1967
    %v2992 = vsel %vm2985, %v2927, %v1969
    %v2993 = vsel %vm2985, %v2928, %v1971
    %v2994 = vsel %vm2985, %v2929, %v1973
    %v2995 = vsel %vm2985, %v2930, %v1975
    %v2996 = vsel %vm2985, %v2931, %v1977
    %v2997 = vsel %vm2985, %v2932, %v1979
    %v2998 = vsel %vm2985, %v2933, %v1981
    %v2999 = vsel %vm2985, %v2934, %v1983
    %v3000 = vsel %vm2985, %v2935, %v1985
    %v3001 = vsel %vm2985, %v2936, %v1987
    %v3002 = vsel %vm2985, %v2937, %v1989
    %v3003 = vsel %vm2985, %v2938, %v1991
    %v3004 = vsel %vm2985, %v2939, %v1993
    %v3005 = vsel %vm2985, %v2940, %v1995
    %v3006 = vsel %vm2985, %v2941, %v1997
    %v3007 = vsel %vm2985, %v2942, %v1999
    %v3008 = vsel %vm2985, %v2943, %v2001
    %v3009 = vsel %vm2985, %v2944, %v2003
    %v3010 = vsel %vm2985, %v2945, %v2005
    %v3011 = vsel %vm2985, %v2946, %v2007
    %v3012 = vsel %vm2985, %v2947, %v2009
    %v3013 = vsel %vm2985, %v2948, %v2011
    %v3014 = vsel %vm2985, %v2949, %v2013
    %v3015 = vsel %vm2985, %v2950, %v2015
    %v3016 = vsel %vm2985, %v2951, %v2017
    %v3017 = vsel %vm2985, %v2952, %v2019
    %v3018 = vsel %vm2985, %v2953, %v2021
    %v3019 = vsel %vm2985, %v2954, %v2023
    %v3020 = vsel %vm2985, %v2955, %v2025
    %v3021 = vsel %vm2985, %v2956, %v2027
    %v3022 = vsel %vm2985, %v2957, %v2029
    %v3023 = vsel %vm2985, %v2958, %v2031
    %v3024 = vsel %vm2985, %v2959, %v2033
    %v3025 = vsel %vm2985, %v2960, %v2035
    %v3026 = vsel %vm2985, %v2961, %v2037
    %v3027 = vsel %vm2985, %v2962, %v2039
    %v3028 = vsel %vm2985, %v2963, %v2041
    %v3029 = vsel %vm2985, %v2964, %v2043
    %v3030 = vsel %vm2985, %v2965, %v2045
    %v3031 = vsel %vm2985, %v2966, %v2047
    %v3032 = vsel %vm2985, %v2967, %v2049
    %v3033 = vsel %vm2985, %v2968, %v2051
    %v3034 = vsel %vm2985, %v2969, %v2053
    %v3035 = vsel %vm2985, %v2970, %v2055
    %v3036 = vsel %vm2985, %v2971, %v2057
    %v3037 = vsel %vm2985, %v2972, %v2059
    %v3038 = vsel %vm2985, %v2973, %v2061
    %v3039 = vsel %vm2985, %v2974, %v2063
    %v3040 = vsel %vm2985, %v2975, %v2065
    %v3041 = vsel %vm2985, %v2976, %v2067
    %v3042 = vsel %vm2985, %v2977, %v2069
    %v3043 = vsel %vm2985, %v2978, %v2071
    %v3044 = vsel %vm2985, %v2979, %v2073
    %v3045 = vsel %vm2985, %v2980, %v2075
    %v3046 = vsel %vm2985, %v2981, %v2077
    %v3047 = vsel %vm2985, %v2982, %v2079
    %v3048 = vsel %vm2985, %v2983, %v2081
    %v3049 = vsel %vm2985, %v2984, %v2083
    %vm3050 = vcmask 228352
    %v3051 = vsel %vm3050, %v2986, %v2213
    %v3052 = vsel %vm3050, %v2987, %v2215
    %v3053 = vsel %vm3050, %v2988, %v2217
    %v3054 = vsel %vm3050, %v2989, %v2219
    %v3055 = vsel %vm3050, %v2990, %v2221
    %v3056 = vsel %vm3050, %v2991, %v2223
    %v3057 = vsel %vm3050, %v2992, %v2225
    %v3058 = vsel %vm3050, %v2993, %v2227
    %v3059 = vsel %vm3050, %v2994, %v2229
    %v3060 = vsel %vm3050, %v2995, %v2231
    %v3061 = vsel %vm3050, %v2996, %v2233
    %v3062 = vsel %vm3050, %v2997, %v2235
    %v3063 = vsel %vm3050, %v2998, %v2237
    %v3064 = vsel %vm3050, %v2999, %v2239
    %v3065 = vsel %vm3050, %v3000, %v2241
    %v3066 = vsel %vm3050, %v3001, %v2243
    %v3067 = vsel %vm3050, %v3002, %v2245
    %v3068 = vsel %vm3050, %v3003, %v2247
    %v3069 = vsel %vm3050, %v3004, %v2249
    %v3070 = vsel %vm3050, %v3005, %v2251
    %v3071 = vsel %vm3050, %v3006, %v2253
    %v3072 = vsel %vm3050, %v3007, %v2255
    %v3073 = vsel %vm3050, %v3008, %v2257
    %v3074 = vsel %vm3050, %v3009, %v2259
    %v3075 = vsel %vm3050, %v3010, %v2261
    %v3076 = vsel %vm3050, %v3011, %v2263
    %v3077 = vsel %vm3050, %v3012, %v2265
    %v3078 = vsel %vm3050, %v3013, %v2267
    %v3079 = vsel %vm3050, %v3014, %v2269
    %v3080 = vsel %vm3050, %v3015, %v2271
    %v3081 = vsel %vm3050, %v3016, %v2273
    %v3082 = vsel %vm3050, %v3017, %v2275
    %v3083 = vsel %vm3050, %v3018, %v2277
    %v3084 = vsel %vm3050, %v3019, %v2279
    %v3085 = vsel %vm3050, %v3020, %v2281
    %v3086 = vsel %vm3050, %v3021, %v2283
    %v3087 = vsel %vm3050, %v3022, %v2285
    %v3088 = vsel %vm3050, %v3023, %v2287
    %v3089 = vsel %vm3050, %v3024, %v2289
    %v3090 = vsel %vm3050, %v3025, %v2291
    %v3091 = vsel %vm3050, %v3026, %v2293
    %v3092 = vsel %vm3050, %v3027, %v2295
    %v3093 = vsel %vm3050, %v3028, %v2297
    %v3094 = vsel %vm3050, %v3029, %v2299
    %v3095 = vsel %vm3050, %v3030, %v2301
    %v3096 = vsel %vm3050, %v3031, %v2303
    %v3097 = vsel %vm3050, %v3032, %v2305
    %v3098 = vsel %vm3050, %v3033, %v2307
    %v3099 = vsel %vm3050, %v3034, %v2309
    %v3100 = vsel %vm3050, %v3035, %v2311
    %v3101 = vsel %vm3050, %v3036, %v2313
    %v3102 = vsel %vm3050, %v3037, %v2315
    %v3103 = vsel %vm3050, %v3038, %v2317
    %v3104 = vsel %vm3050, %v3039, %v2319
    %v3105 = vsel %vm3050, %v3040, %v2321
    %v3106 = vsel %vm3050, %v3041, %v2323
    %v3107 = vsel %vm3050, %v3042, %v2325
    %v3108 = vsel %vm3050, %v3043, %v2327
    %v3109 = vsel %vm3050, %v3044, %v2329
    %v3110 = vsel %vm3050, %v3045, %v2331
    %v3111 = vsel %vm3050, %v3046, %v2333
    %v3112 = vsel %vm3050, %v3047, %v2335
    %v3113 = vsel %vm3050, %v3048, %v2337
    %v3114 = vsel %vm3050, %v3049, %v2339
    %vm3115 = vcmask 261120
    %v3116 = vsel %vm3115, %v3051, %v2469
    %v3117 = vsel %vm3115, %v3052, %v2471
    %v3118 = vsel %vm3115, %v3053, %v2473
    %v3119 = vsel %vm3115, %v3054, %v2475
    %v3120 = vsel %vm3115, %v3055, %v2477
    %v3121 = vsel %vm3115, %v3056, %v2479
    %v3122 = vsel %vm3115, %v3057, %v2481
    %v3123 = vsel %vm3115, %v3058, %v2483
    %v3124 = vsel %vm3115, %v3059, %v2485
    %v3125 = vsel %vm3115, %v3060, %v2487
    %v3126 = vsel %vm3115, %v3061, %v2489
    %v3127 = vsel %vm3115, %v3062, %v2491
    %v3128 = vsel %vm3115, %v3063, %v2493
    %v3129 = vsel %vm3115, %v3064, %v2495
    %v3130 = vsel %vm3115, %v3065, %v2497
    %v3131 = vsel %vm3115, %v3066, %v2499
    %v3132 = vsel %vm3115, %v3067, %v2501
    %v3133 = vsel %vm3115, %v3068, %v2503
    %v3134 = vsel %vm3115, %v3069, %v2505
    %v3135 = vsel %vm3115, %v3070, %v2507
    %v3136 = vsel %vm3115, %v3071, %v2509
    %v3137 = vsel %vm3115, %v3072, %v2511
    %v3138 = vsel %vm3115, %v3073, %v2513
    %v3139 = vsel %vm3115, %v3074, %v2515
    %v3140 = vsel %vm3115, %v3075, %v2517
    %v3141 = vsel %vm3115, %v3076, %v2519
    %v3142 = vsel %vm3115, %v3077, %v2521
    %v3143 = vsel %vm3115, %v3078, %v2523
    %v3144 = vsel %vm3115, %v3079, %v2525
    %v3145 = vsel %vm3115, %v3080, %v2527
    %v3146 = vsel %vm3115, %v3081, %v2529
    %v3147 = vsel %vm3115, %v3082, %v2531
    %v3148 = vsel %vm3115, %v3083, %v2533
    %v3149 = vsel %vm3115, %v3084, %v2535
    %v3150 = vsel %vm3115, %v3085, %v2537
    %v3151 = vsel %vm3115, %v3086, %v2539
    %v3152 = vsel %vm3115, %v3087, %v2541
    %v3153 = vsel %vm3115, %v3088, %v2543
    %v3154 = vsel %vm3115, %v3089, %v2545
    %v3155 = vsel %vm3115, %v3090, %v2547
    %v3156 = vsel %vm3115, %v3091, %v2549
    %v3157 = vsel %vm3115, %v3092, %v2551
    %v3158 = vsel %vm3115, %v3093, %v2553
    %v3159 = vsel %vm3115, %v3094, %v2555
    %v3160 = vsel %vm3115, %v3095, %v2557
    %v3161 = vsel %vm3115, %v3096, %v2559
    %v3162 = vsel %vm3115, %v3097, %v2561
    %v3163 = vsel %vm3115, %v3098, %v2563
    %v3164 = vsel %vm3115, %v3099, %v2565
    %v3165 = vsel %vm3115, %v3100, %v2567
    %v3166 = vsel %vm3115, %v3101, %v2569
    %v3167 = vsel %vm3115, %v3102, %v2571
    %v3168 = vsel %vm3115, %v3103, %v2573
    %v3169 = vsel %vm3115, %v3104, %v2575
    %v3170 = vsel %vm3115, %v3105, %v2577
    %v3171 = vsel %vm3115, %v3106, %v2579
    %v3172 = vsel %vm3115, %v3107, %v2581
    %v3173 = vsel %vm3115, %v3108, %v2583
    %v3174 = vsel %vm3115, %v3109, %v2585
    %v3175 = vsel %vm3115, %v3110, %v2587
    %v3176 = vsel %vm3115, %v3111, %v2589
    %v3177 = vsel %vm3115, %v3112, %v2591
    %v3178 = vsel %vm3115, %v3113, %v2593
    %v3179 = vsel %vm3115, %v3114, %v2595
    %v3180 = vpack.c.bf16 %v3117, %v3116
    %v3181 = vpack.c.bf16 %v3119, %v3118
    %v3182 = vpack.c.bf16 %v3121, %v3120
    %v3183 = vpack.c.bf16 %v3123, %v3122
    %v3184 = vpack.c.bf16 %v3125, %v3124
    %v3185 = vpack.c.bf16 %v3127, %v3126
    %v3186 = vpack.c.bf16 %v3129, %v3128
    %v3187 = vpack.c.bf16 %v3131, %v3130
    %v3188 = vpack.c.bf16 %v3133, %v3132
    %v3189 = vpack.c.bf16 %v3135, %v3134
    %v3190 = vpack.c.bf16 %v3137, %v3136
    %v3191 = vpack.c.bf16 %v3139, %v3138
    %v3192 = vpack.c.bf16 %v3141, %v3140
    %v3193 = vpack.c.bf16 %v3143, %v3142
    %v3194 = vpack.c.bf16 %v3145, %v3144
    %v3195 = vpack.c.bf16 %v3147, %v3146
    %v3196 = vpack.c.bf16 %v3149, %v3148
    %v3197 = vpack.c.bf16 %v3151, %v3150
    %v3198 = vpack.c.bf16 %v3153, %v3152
    %v3199 = vpack.c.bf16 %v3155, %v3154
    %v3200 = vpack.c.bf16 %v3157, %v3156
    %v3201 = vpack.c.bf16 %v3159, %v3158
    %v3202 = vpack.c.bf16 %v3161, %v3160
    %v3203 = vpack.c.bf16 %v3163, %v3162
    %v3204 = vpack.c.bf16 %v3165, %v3164
    %v3205 = vpack.c.bf16 %v3167, %v3166
    %v3206 = vpack.c.bf16 %v3169, %v3168
    %v3207 = vpack.c.bf16 %v3171, %v3170
    %v3208 = vpack.c.bf16 %v3173, %v3172
    %v3209 = vpack.c.bf16 %v3175, %v3174
    %v3210 = vpack.c.bf16 %v3177, %v3176
    %v3211 = vpack.c.bf16 %v3179, %v3178
    %v3212 = vld [vmem:[%s1] sm:$0xf]
    %v3213 = vld [vmem:[%s1 + $0x4] sm:$0xf]
    %v3214 = vld [vmem:[%s1 + $0x8] sm:$0xf]
    %v3215 = vld [vmem:[%s1 + $0xc] sm:$0xf]
    %v3216 = vld [vmem:[%s1 + $0x10] sm:$0x3]
    %v3217 = vld [vmem:[%s2] sm:$0x1]
    %v3219 = vperm.slane %v3217, 0
    %v3226 = vunpack.c.l.b16 %v3212
    %v3227 = vunpack.c.l.b16 %v3213
    %v3228 = vunpack.c.l.b16 %v3214
    %v3229 = vunpack.c.l.b16 %v3215
    %v3230 = vunpack.c.l.b16 %v3216
    %v3231 = vpack.c.b16 %v3227, %v3226
    %v3232 = vpack.c.b16 %v3229, %v3228
    %v3233 = vpack.c.b16 %v3230, %v3230
    %vm3236 = vcmask 293888
    %v3238 = vsel %vm3236, %v3180, 0
    %v3241 = vsel %vm3236, %v3181, 0
    %v3244 = vsel %vm3236, %v3182, 0
    %v3247 = vsel %vm3236, %v3183, 0
    %v3250 = vsel %vm3236, %v3184, 0
    %v3253 = vsel %vm3236, %v3185, 0
    %v3256 = vsel %vm3236, %v3186, 0
    %v3259 = vsel %vm3236, %v3187, 0
    %v3262 = vsel %vm3236, %v3188, 0
    %v3265 = vsel %vm3236, %v3189, 0
    %v3268 = vsel %vm3236, %v3190, 0
    %v3271 = vsel %vm3236, %v3191, 0
    %v3274 = vsel %vm3236, %v3192, 0
    %v3277 = vsel %vm3236, %v3193, 0
    %v3280 = vsel %vm3236, %v3194, 0
    %v3283 = vsel %vm3236, %v3195, 0
    %v3286 = vsel %vm3236, %v3196, 0
    %v3289 = vsel %vm3236, %v3197, 0
    %v3292 = vsel %vm3236, %v3198, 0
    %v3295 = vsel %vm3236, %v3199, 0
    %v3298 = vsel %vm3236, %v3200, 0
    %v3301 = vsel %vm3236, %v3201, 0
    %v3304 = vsel %vm3236, %v3202, 0
    %v3307 = vsel %vm3236, %v3203, 0
    %v3310 = vsel %vm3236, %v3204, 0
    %v3313 = vsel %vm3236, %v3205, 0
    %v3316 = vsel %vm3236, %v3206, 0
    %v3319 = vsel %vm3236, %v3207, 0
    %v3322 = vsel %vm3236, %v3208, 0
    %v3325 = vsel %vm3236, %v3209, 0
    %v3328 = vsel %vm3236, %v3210, 0
    %v3331 = vsel %vm3236, %v3211, 0
    %vm3333 = vcmask 1041408
    %v3335 = vsel %vm3333, %v3233, 0
    %3337 = vmatpush.bf16.msra.mxu0 0
    %3338 = vmatpush.bf16.msra.mxu0 0
    %3339 = vmatpush.bf16.msra.mxu0 0
    %3340 = vmatpush.bf16.msra.mxu0 0
    %3341 = vmatpush.bf16.msra.mxu0 0
    %3342 = vmatpush.bf16.msra.mxu0 %v3335
    %3343 = vmatpush.bf16.msra.mxu0 %v3232
    %3344 = vmatpush.bf16.msra.mxu0 %v3231
    %3345 = vmatmul.bf16.gmra.mxu0 %v3238
    %v3346 = vpop.f32.mrf.mxu0
    %v3347 = vadd.f32 %v3219, %v3346
    %v3348 = vpop.f32.mrf.mxu0
    %v3349 = vadd.f32 %v3219, %v3348
    %3350 = vmatmul.bf16.gmra.mxu0 %v3241
    %v3351 = vpop.f32.mrf.mxu0
    %v3352 = vadd.f32 %v3219, %v3351
    %v3353 = vpop.f32.mrf.mxu0
    %v3354 = vadd.f32 %v3219, %v3353
    %3355 = vmatmul.bf16.gmra.mxu0 %v3244
    %v3356 = vpop.f32.mrf.mxu0
    %v3357 = vadd.f32 %v3219, %v3356
    %v3358 = vpop.f32.mrf.mxu0
    %v3359 = vadd.f32 %v3219, %v3358
    %3360 = vmatmul.bf16.gmra.mxu0 %v3247
    %v3361 = vpop.f32.mrf.mxu0
    %v3362 = vadd.f32 %v3219, %v3361
    %v3363 = vpop.f32.mrf.mxu0
    %v3364 = vadd.f32 %v3219, %v3363
    %3365 = vmatmul.bf16.gmra.mxu0 %v3250
    %v3366 = vpop.f32.mrf.mxu0
    %v3367 = vadd.f32 %v3219, %v3366
    %v3368 = vpop.f32.mrf.mxu0
    %v3369 = vadd.f32 %v3219, %v3368
    %3370 = vmatmul.bf16.gmra.mxu0 %v3253
    %v3371 = vpop.f32.mrf.mxu0
    %v3372 = vadd.f32 %v3219, %v3371
    %v3373 = vpop.f32.mrf.mxu0
    %v3374 = vadd.f32 %v3219, %v3373
    %3375 = vmatmul.bf16.gmra.mxu0 %v3256
    %v3376 = vpop.f32.mrf.mxu0
    %v3377 = vadd.f32 %v3219, %v3376
    %v3378 = vpop.f32.mrf.mxu0
    %v3379 = vadd.f32 %v3219, %v3378
    %3380 = vmatmul.bf16.gmra.mxu0 %v3259
    %v3381 = vpop.f32.mrf.mxu0
    %v3382 = vadd.f32 %v3219, %v3381
    %v3383 = vpop.f32.mrf.mxu0
    %v3384 = vadd.f32 %v3219, %v3383
    %3385 = vmatmul.bf16.gmra.mxu0 %v3262
    %v3386 = vpop.f32.mrf.mxu0
    %v3387 = vadd.f32 %v3219, %v3386
    %v3388 = vpop.f32.mrf.mxu0
    %v3389 = vadd.f32 %v3219, %v3388
    %3390 = vmatmul.bf16.gmra.mxu0 %v3265
    %v3391 = vpop.f32.mrf.mxu0
    %v3392 = vadd.f32 %v3219, %v3391
    %v3393 = vpop.f32.mrf.mxu0
    %v3394 = vadd.f32 %v3219, %v3393
    %3395 = vmatmul.bf16.gmra.mxu0 %v3268
    %v3396 = vpop.f32.mrf.mxu0
    %v3397 = vadd.f32 %v3219, %v3396
    %v3398 = vpop.f32.mrf.mxu0
    %v3399 = vadd.f32 %v3219, %v3398
    %3400 = vmatmul.bf16.gmra.mxu0 %v3271
    %v3401 = vpop.f32.mrf.mxu0
    %v3402 = vadd.f32 %v3219, %v3401
    %v3403 = vpop.f32.mrf.mxu0
    %v3404 = vadd.f32 %v3219, %v3403
    %3405 = vmatmul.bf16.gmra.mxu0 %v3274
    %v3406 = vpop.f32.mrf.mxu0
    %v3407 = vadd.f32 %v3219, %v3406
    %v3408 = vpop.f32.mrf.mxu0
    %v3409 = vadd.f32 %v3219, %v3408
    %3410 = vmatmul.bf16.gmra.mxu0 %v3277
    %v3411 = vpop.f32.mrf.mxu0
    %v3412 = vadd.f32 %v3219, %v3411
    %v3413 = vpop.f32.mrf.mxu0
    %v3414 = vadd.f32 %v3219, %v3413
    %3415 = vmatmul.bf16.gmra.mxu0 %v3280
    %v3416 = vpop.f32.mrf.mxu0
    %v3417 = vadd.f32 %v3219, %v3416
    %v3418 = vpop.f32.mrf.mxu0
    %v3419 = vadd.f32 %v3219, %v3418
    %3420 = vmatmul.bf16.gmra.mxu0 %v3283
    %v3421 = vpop.f32.mrf.mxu0
    %v3422 = vadd.f32 %v3219, %v3421
    %v3423 = vpop.f32.mrf.mxu0
    %v3424 = vadd.f32 %v3219, %v3423
    %3425 = vmatmul.bf16.gmra.mxu0 %v3286
    %v3426 = vpop.f32.mrf.mxu0
    %v3427 = vadd.f32 %v3219, %v3426
    %v3428 = vpop.f32.mrf.mxu0
    %v3429 = vadd.f32 %v3219, %v3428
    %3430 = vmatmul.bf16.gmra.mxu0 %v3289
    %v3431 = vpop.f32.mrf.mxu0
    %v3432 = vadd.f32 %v3219, %v3431
    %v3433 = vpop.f32.mrf.mxu0
    %v3434 = vadd.f32 %v3219, %v3433
    %3435 = vmatmul.bf16.gmra.mxu0 %v3292
    %v3436 = vpop.f32.mrf.mxu0
    %v3437 = vadd.f32 %v3219, %v3436
    %v3438 = vpop.f32.mrf.mxu0
    %v3439 = vadd.f32 %v3219, %v3438
    %3440 = vmatmul.bf16.gmra.mxu0 %v3295
    %v3441 = vpop.f32.mrf.mxu0
    %v3442 = vadd.f32 %v3219, %v3441
    %v3443 = vpop.f32.mrf.mxu0
    %v3444 = vadd.f32 %v3219, %v3443
    %3445 = vmatmul.bf16.gmra.mxu0 %v3298
    %v3446 = vpop.f32.mrf.mxu0
    %v3447 = vadd.f32 %v3219, %v3446
    %v3448 = vpop.f32.mrf.mxu0
    %v3449 = vadd.f32 %v3219, %v3448
    %3450 = vmatmul.bf16.gmra.mxu0 %v3301
    %v3451 = vpop.f32.mrf.mxu0
    %v3452 = vadd.f32 %v3219, %v3451
    %v3453 = vpop.f32.mrf.mxu0
    %v3454 = vadd.f32 %v3219, %v3453
    %3455 = vmatmul.bf16.gmra.mxu0 %v3304
    %v3456 = vpop.f32.mrf.mxu0
    %v3457 = vadd.f32 %v3219, %v3456
    %v3458 = vpop.f32.mrf.mxu0
    %v3459 = vadd.f32 %v3219, %v3458
    %3460 = vmatmul.bf16.gmra.mxu0 %v3307
    %v3461 = vpop.f32.mrf.mxu0
    %v3462 = vadd.f32 %v3219, %v3461
    %v3463 = vpop.f32.mrf.mxu0
    %v3464 = vadd.f32 %v3219, %v3463
    %3465 = vmatmul.bf16.gmra.mxu0 %v3310
    %v3466 = vpop.f32.mrf.mxu0
    %v3467 = vadd.f32 %v3219, %v3466
    %v3468 = vpop.f32.mrf.mxu0
    %v3469 = vadd.f32 %v3219, %v3468
    %3470 = vmatmul.bf16.gmra.mxu0 %v3313
    %v3471 = vpop.f32.mrf.mxu0
    %v3472 = vadd.f32 %v3219, %v3471
    %v3473 = vpop.f32.mrf.mxu0
    %v3474 = vadd.f32 %v3219, %v3473
    %3475 = vmatmul.bf16.gmra.mxu0 %v3316
    %v3476 = vpop.f32.mrf.mxu0
    %v3477 = vadd.f32 %v3219, %v3476
    %v3478 = vpop.f32.mrf.mxu0
    %v3479 = vadd.f32 %v3219, %v3478
    %3480 = vmatmul.bf16.gmra.mxu0 %v3319
    %v3481 = vpop.f32.mrf.mxu0
    %v3482 = vadd.f32 %v3219, %v3481
    %v3483 = vpop.f32.mrf.mxu0
    %v3484 = vadd.f32 %v3219, %v3483
    %3485 = vmatmul.bf16.gmra.mxu0 %v3322
    %v3486 = vpop.f32.mrf.mxu0
    %v3487 = vadd.f32 %v3219, %v3486
    %v3488 = vpop.f32.mrf.mxu0
    %v3489 = vadd.f32 %v3219, %v3488
    %3490 = vmatmul.bf16.gmra.mxu0 %v3325
    %v3491 = vpop.f32.mrf.mxu0
    %v3492 = vadd.f32 %v3219, %v3491
    %v3493 = vpop.f32.mrf.mxu0
    %v3494 = vadd.f32 %v3219, %v3493
    %3495 = vmatmul.bf16.gmra.mxu0 %v3328
    %v3496 = vpop.f32.mrf.mxu0
    %v3497 = vadd.f32 %v3219, %v3496
    %v3498 = vpop.f32.mrf.mxu0
    %v3499 = vadd.f32 %v3219, %v3498
    %3500 = vmatmul.bf16.gmra.mxu0 %v3331
    %v3501 = vpop.f32.mrf.mxu0
    %v3502 = vadd.f32 %v3219, %v3501
    %v3503 = vpop.f32.mrf.mxu0
    %v3504 = vadd.f32 %v3219, %v3503
    %3505 = vdwg.mxu0
    %v3506 = vmax.f32 %v3347, 0.0
    %v3507 = vmax.f32 %v3349, 0.0
    %v3508 = vmax.f32 %v3352, 0.0
    %v3509 = vmax.f32 %v3354, 0.0
    %v3510 = vmax.f32 %v3357, 0.0
    %v3511 = vmax.f32 %v3359, 0.0
    %v3512 = vmax.f32 %v3362, 0.0
    %v3513 = vmax.f32 %v3364, 0.0
    %v3514 = vmax.f32 %v3367, 0.0
    %v3515 = vmax.f32 %v3369, 0.0
    %v3516 = vmax.f32 %v3372, 0.0
    %v3517 = vmax.f32 %v3374, 0.0
    %v3518 = vmax.f32 %v3377, 0.0
    %v3519 = vmax.f32 %v3379, 0.0
    %v3520 = vmax.f32 %v3382, 0.0
    %v3521 = vmax.f32 %v3384, 0.0
    %v3522 = vmax.f32 %v3387, 0.0
    %v3523 = vmax.f32 %v3389, 0.0
    %v3524 = vmax.f32 %v3392, 0.0
    %v3525 = vmax.f32 %v3394, 0.0
    %v3526 = vmax.f32 %v3397, 0.0
    %v3527 = vmax.f32 %v3399, 0.0
    %v3528 = vmax.f32 %v3402, 0.0
    %v3529 = vmax.f32 %v3404, 0.0
    %v3530 = vmax.f32 %v3407, 0.0
    %v3531 = vmax.f32 %v3409, 0.0
    %v3532 = vmax.f32 %v3412, 0.0
    %v3533 = vmax.f32 %v3414, 0.0
    %v3534 = vmax.f32 %v3417, 0.0
    %v3535 = vmax.f32 %v3419, 0.0
    %v3536 = vmax.f32 %v3422, 0.0
    %v3537 = vmax.f32 %v3424, 0.0
    %v3538 = vmax.f32 %v3427, 0.0
    %v3539 = vmax.f32 %v3429, 0.0
    %v3540 = vmax.f32 %v3432, 0.0
    %v3541 = vmax.f32 %v3434, 0.0
    %v3542 = vmax.f32 %v3437, 0.0
    %v3543 = vmax.f32 %v3439, 0.0
    %v3544 = vmax.f32 %v3442, 0.0
    %v3545 = vmax.f32 %v3444, 0.0
    %v3546 = vmax.f32 %v3447, 0.0
    %v3547 = vmax.f32 %v3449, 0.0
    %v3548 = vmax.f32 %v3452, 0.0
    %v3549 = vmax.f32 %v3454, 0.0
    %v3550 = vmax.f32 %v3457, 0.0
    %v3551 = vmax.f32 %v3459, 0.0
    %v3552 = vmax.f32 %v3462, 0.0
    %v3553 = vmax.f32 %v3464, 0.0
    %v3554 = vmax.f32 %v3467, 0.0
    %v3555 = vmax.f32 %v3469, 0.0
    %v3556 = vmax.f32 %v3472, 0.0
    %v3557 = vmax.f32 %v3474, 0.0
    %v3558 = vmax.f32 %v3477, 0.0
    %v3559 = vmax.f32 %v3479, 0.0
    %v3560 = vmax.f32 %v3482, 0.0
    %v3561 = vmax.f32 %v3484, 0.0
    %v3562 = vmax.f32 %v3487, 0.0
    %v3563 = vmax.f32 %v3489, 0.0
    %v3564 = vmax.f32 %v3492, 0.0
    %v3565 = vmax.f32 %v3494, 0.0
    %v3566 = vmax.f32 %v3497, 0.0
    %v3567 = vmax.f32 %v3499, 0.0
    %v3568 = vmax.f32 %v3502, 0.0
    %v3569 = vmax.f32 %v3504, 0.0
    %v3570 = vmax.f32 %v3506, %v3508
    %v3571 = vmax.f32 %v3507, %v3509
    %v3572 = vmax.f32 %v3510, %v3512
    %v3573 = vmax.f32 %v3511, %v3513
    %v3574 = vmax.f32 %v3514, %v3516
    %v3575 = vmax.f32 %v3515, %v3517
    %v3576 = vmax.f32 %v3518, %v3520
    %v3577 = vmax.f32 %v3519, %v3521
    %v3578 = vmax.f32 %v3522, %v3524
    %v3579 = vmax.f32 %v3523, %v3525
    %v3580 = vmax.f32 %v3526, %v3528
    %v3581 = vmax.f32 %v3527, %v3529
    %v3582 = vmax.f32 %v3530, %v3532
    %v3583 = vmax.f32 %v3531, %v3533
    %v3584 = vmax.f32 %v3534, %v3536
    %v3585 = vmax.f32 %v3535, %v3537
    %v3586 = vmax.f32 %v3538, %v3540
    %v3587 = vmax.f32 %v3539, %v3541
    %v3588 = vmax.f32 %v3542, %v3544
    %v3589 = vmax.f32 %v3543, %v3545
    %v3590 = vmax.f32 %v3546, %v3548
    %v3591 = vmax.f32 %v3547, %v3549
    %v3592 = vmax.f32 %v3550, %v3552
    %v3593 = vmax.f32 %v3551, %v3553
    %v3594 = vmax.f32 %v3554, %v3556
    %v3595 = vmax.f32 %v3555, %v3557
    %v3596 = vmax.f32 %v3558, %v3560
    %v3597 = vmax.f32 %v3559, %v3561
    %v3598 = vmax.f32 %v3562, %v3564
    %v3599 = vmax.f32 %v3563, %v3565
    %v3600 = vmax.f32 %v3566, %v3568
    %v3601 = vmax.f32 %v3567, %v3569
    %v3602 = vrot.slane %v3574, 4
    %vm3603 = vcmask 1047556
    %v3604 = vsel %vm3603, %v3602, %v3570
    %v3605 = vrot.slane %v3570, 4
    %v3606 = vsel %vm3603, %v3574, %v3605
    %v3608 = vunpack.c.l.s4 1983009808
    %v3609 = vunpack.c.0.s8 %v3608
    %v3610 = vperm.slane %v3604, %v3609
    %v3612 = vunpack.c.l.s4 1983009808
    %v3613 = vunpack.c.0.s8 %v3612
    %v3614 = vperm.slane %v3606, %v3613
    %v3615 = vrot.slane %v3576, 4
    %v3616 = vsel %vm3603, %v3615, %v3572
    %v3617 = vrot.slane %v3572, 4
    %v3618 = vsel %vm3603, %v3576, %v3617
    %v3620 = vunpack.c.l.s4 1983009808
    %v3621 = vunpack.c.0.s8 %v3620
    %v3622 = vperm.slane %v3616, %v3621
    %v3624 = vunpack.c.l.s4 1983009808
    %v3625 = vunpack.c.0.s8 %v3624
    %v3626 = vperm.slane %v3618, %v3625
    %v3627 = vrot.slane %v3582, 4
    %v3628 = vsel %vm3603, %v3627, %v3578
    %v3629 = vrot.slane %v3578, 4
    %v3630 = vsel %vm3603, %v3582, %v3629
    %v3632 = vunpack.c.l.s4 1983009808
    %v3633 = vunpack.c.0.s8 %v3632
    %v3634 = vperm.slane %v3628, %v3633
    %v3636 = vunpack.c.l.s4 1983009808
    %v3637 = vunpack.c.0.s8 %v3636
    %v3638 = vperm.slane %v3630, %v3637
    %v3639 = vrot.slane %v3584, 4
    %v3640 = vsel %vm3603, %v3639, %v3580
    %v3641 = vrot.slane %v3580, 4
    %v3642 = vsel %vm3603, %v3584, %v3641
    %v3644 = vunpack.c.l.s4 1983009808
    %v3645 = vunpack.c.0.s8 %v3644
    %v3646 = vperm.slane %v3640, %v3645
    %v3648 = vunpack.c.l.s4 1983009808
    %v3649 = vunpack.c.0.s8 %v3648
    %v3650 = vperm.slane %v3642, %v3649
    %v3651 = vrot.slane %v3622, 4
    %v3652 = vsel %vm3603, %v3651, %v3610
    %v3653 = vrot.slane %v3610, 4
    %v3654 = vsel %vm3603, %v3622, %v3653
    %v3656 = vunpack.c.l.s4 1934713408
    %v3657 = vunpack.c.0.s8 %v3656
    %v3658 = vperm.slane %v3652, %v3657
    %v3660 = vunpack.c.l.s4 1934713408
    %v3661 = vunpack.c.0.s8 %v3660
    %v3662 = vperm.slane %v3654, %v3661
    %v3663 = vrot.slane %v3626, 4
    %v3664 = vsel %vm3603, %v3663, %v3614
    %v3665 = vrot.slane %v3614, 4
    %v3666 = vsel %vm3603, %v3626, %v3665
    %v3668 = vunpack.c.l.s4 1934713408
    %v3669 = vunpack.c.0.s8 %v3668
    %v3670 = vperm.slane %v3664, %v3669
    %v3672 = vunpack.c.l.s4 1934713408
    %v3673 = vunpack.c.0.s8 %v3672
    %v3674 = vperm.slane %v3666, %v3673
    %v3675 = vrot.slane %v3646, 4
    %v3676 = vsel %vm3603, %v3675, %v3634
    %v3677 = vrot.slane %v3634, 4
    %v3678 = vsel %vm3603, %v3646, %v3677
    %v3680 = vunpack.c.l.s4 1934713408
    %v3681 = vunpack.c.0.s8 %v3680
    %v3682 = vperm.slane %v3676, %v3681
    %v3684 = vunpack.c.l.s4 1934713408
    %v3685 = vunpack.c.0.s8 %v3684
    %v3686 = vperm.slane %v3678, %v3685
    %v3687 = vrot.slane %v3650, 4
    %v3688 = vsel %vm3603, %v3687, %v3638
    %v3689 = vrot.slane %v3638, 4
    %v3690 = vsel %vm3603, %v3650, %v3689
    %v3692 = vunpack.c.l.s4 1934713408
    %v3693 = vunpack.c.0.s8 %v3692
    %v3694 = vperm.slane %v3688, %v3693
    %v3696 = vunpack.c.l.s4 1934713408
    %v3697 = vunpack.c.0.s8 %v3696
    %v3698 = vperm.slane %v3690, %v3697
    %v3699 = vrot.slane %v3682, 4
    %v3700 = vsel %vm3603, %v3699, %v3658
    %v3701 = vrot.slane %v3658, 4
    %v3702 = vsel %vm3603, %v3682, %v3701
    %v3703 = vrot.slane %v3686, 4
    %v3704 = vsel %vm3603, %v3703, %v3662
    %v3705 = vrot.slane %v3662, 4
    %v3706 = vsel %vm3603, %v3686, %v3705
    %v3707 = vrot.slane %v3694, 4
    %v3708 = vsel %vm3603, %v3707, %v3670
    %v3709 = vrot.slane %v3670, 4
    %v3710 = vsel %vm3603, %v3694, %v3709
    %v3711 = vrot.slane %v3698, 4
    %v3712 = vsel %vm3603, %v3711, %v3674
    %v3713 = vrot.slane %v3674, 4
    %v3714 = vsel %vm3603, %v3698, %v3713
    %v3715 = vrot.slane %v3590, 4
    %v3716 = vsel %vm3603, %v3715, %v3586
    %v3717 = vrot.slane %v3586, 4
    %v3718 = vsel %vm3603, %v3590, %v3717
    %v3720 = vunpack.c.l.s4 1983009808
    %v3721 = vunpack.c.0.s8 %v3720
    %v3722 = vperm.slane %v3716, %v3721
    %v3724 = vunpack.c.l.s4 1983009808
    %v3725 = vunpack.c.0.s8 %v3724
    %v3726 = vperm.slane %v3718, %v3725
    %v3727 = vrot.slane %v3592, 4
    %v3728 = vsel %vm3603, %v3727, %v3588
    %v3729 = vrot.slane %v3588, 4
    %v3730 = vsel %vm3603, %v3592, %v3729
    %v3732 = vunpack.c.l.s4 1983009808
    %v3733 = vunpack.c.0.s8 %v3732
    %v3734 = vperm.slane %v3728, %v3733
    %v3736 = vunpack.c.l.s4 1983009808
    %v3737 = vunpack.c.0.s8 %v3736
    %v3738 = vperm.slane %v3730, %v3737
    %v3739 = vrot.slane %v3598, 4
    %v3740 = vsel %vm3603, %v3739, %v3594
    %v3741 = vrot.slane %v3594, 4
    %v3742 = vsel %vm3603, %v3598, %v3741
    %v3744 = vunpack.c.l.s4 1983009808
    %v3745 = vunpack.c.0.s8 %v3744
    %v3746 = vperm.slane %v3740, %v3745
    %v3748 = vunpack.c.l.s4 1983009808
    %v3749 = vunpack.c.0.s8 %v3748
    %v3750 = vperm.slane %v3742, %v3749
    %v3751 = vrot.slane %v3600, 4
    %v3752 = vsel %vm3603, %v3751, %v3596
    %v3753 = vrot.slane %v3596, 4
    %v3754 = vsel %vm3603, %v3600, %v3753
    %v3756 = vunpack.c.l.s4 1983009808
    %v3757 = vunpack.c.0.s8 %v3756
    %v3758 = vperm.slane %v3752, %v3757
    %v3760 = vunpack.c.l.s4 1983009808
    %v3761 = vunpack.c.0.s8 %v3760
    %v3762 = vperm.slane %v3754, %v3761
    %v3763 = vrot.slane %v3734, 4
    %v3764 = vsel %vm3603, %v3763, %v3722
    %v3765 = vrot.slane %v3722, 4
    %v3766 = vsel %vm3603, %v3734, %v3765
    %v3768 = vunpack.c.l.s4 1934713408
    %v3769 = vunpack.c.0.s8 %v3768
    %v3770 = vperm.slane %v3764, %v3769
    %v3772 = vunpack.c.l.s4 1934713408
    %v3773 = vunpack.c.0.s8 %v3772
    %v3774 = vperm.slane %v3766, %v3773
    %v3775 = vrot.slane %v3738, 4
    %v3776 = vsel %vm3603, %v3775, %v3726
    %v3777 = vrot.slane %v3726, 4
    %v3778 = vsel %vm3603, %v3738, %v3777
    %v3780 = vunpack.c.l.s4 1934713408
    %v3781 = vunpack.c.0.s8 %v3780
    %v3782 = vperm.slane %v3776, %v3781
    %v3784 = vunpack.c.l.s4 1934713408
    %v3785 = vunpack.c.0.s8 %v3784
    %v3786 = vperm.slane %v3778, %v3785
    %v3787 = vrot.slane %v3758, 4
    %v3788 = vsel %vm3603, %v3787, %v3746
    %v3789 = vrot.slane %v3746, 4
    %v3790 = vsel %vm3603, %v3758, %v3789
    %v3792 = vunpack.c.l.s4 1934713408
    %v3793 = vunpack.c.0.s8 %v3792
    %v3794 = vperm.slane %v3788, %v3793
    %v3796 = vunpack.c.l.s4 1934713408
    %v3797 = vunpack.c.0.s8 %v3796
    %v3798 = vperm.slane %v3790, %v3797
    %v3799 = vrot.slane %v3762, 4
    %v3800 = vsel %vm3603, %v3799, %v3750
    %v3801 = vrot.slane %v3750, 4
    %v3802 = vsel %vm3603, %v3762, %v3801
    %v3804 = vunpack.c.l.s4 1934713408
    %v3805 = vunpack.c.0.s8 %v3804
    %v3806 = vperm.slane %v3800, %v3805
    %v3808 = vunpack.c.l.s4 1934713408
    %v3809 = vunpack.c.0.s8 %v3808
    %v3810 = vperm.slane %v3802, %v3809
    %v3811 = vrot.slane %v3794, 4
    %v3812 = vsel %vm3603, %v3811, %v3770
    %v3813 = vrot.slane %v3770, 4
    %v3814 = vsel %vm3603, %v3794, %v3813
    %v3815 = vrot.slane %v3798, 4
    %v3816 = vsel %vm3603, %v3815, %v3774
    %v3817 = vrot.slane %v3774, 4
    %v3818 = vsel %vm3603, %v3798, %v3817
    %v3819 = vrot.slane %v3806, 4
    %v3820 = vsel %vm3603, %v3819, %v3782
    %v3821 = vrot.slane %v3782, 4
    %v3822 = vsel %vm3603, %v3806, %v3821
    %v3823 = vrot.slane %v3810, 4
    %v3824 = vsel %vm3603, %v3823, %v3786
    %v3825 = vrot.slane %v3786, 4
    %v3826 = vsel %vm3603, %v3810, %v3825
    %v3827 = vrot.slane %v3575, 4
    %v3828 = vsel %vm3603, %v3827, %v3571
    %v3829 = vrot.slane %v3571, 4
    %v3830 = vsel %vm3603, %v3575, %v3829
    %v3832 = vunpack.c.l.s4 1983009808
    %v3833 = vunpack.c.0.s8 %v3832
    %v3834 = vperm.slane %v3828, %v3833
    %v3836 = vunpack.c.l.s4 1983009808
    %v3837 = vunpack.c.0.s8 %v3836
    %v3838 = vperm.slane %v3830, %v3837
    %v3839 = vrot.slane %v3577, 4
    %v3840 = vsel %vm3603, %v3839, %v3573
    %v3841 = vrot.slane %v3573, 4
    %v3842 = vsel %vm3603, %v3577, %v3841
    %v3844 = vunpack.c.l.s4 1983009808
    %v3845 = vunpack.c.0.s8 %v3844
    %v3846 = vperm.slane %v3840, %v3845
    %v3848 = vunpack.c.l.s4 1983009808
    %v3849 = vunpack.c.0.s8 %v3848
    %v3850 = vperm.slane %v3842, %v3849
    %v3851 = vrot.slane %v3583, 4
    %v3852 = vsel %vm3603, %v3851, %v3579
    %v3853 = vrot.slane %v3579, 4
    %v3854 = vsel %vm3603, %v3583, %v3853
    %v3856 = vunpack.c.l.s4 1983009808
    %v3857 = vunpack.c.0.s8 %v3856
    %v3858 = vperm.slane %v3852, %v3857
    %v3860 = vunpack.c.l.s4 1983009808
    %v3861 = vunpack.c.0.s8 %v3860
    %v3862 = vperm.slane %v3854, %v3861
    %v3863 = vrot.slane %v3585, 4
    %v3864 = vsel %vm3603, %v3863, %v3581
    %v3865 = vrot.slane %v3581, 4
    %v3866 = vsel %vm3603, %v3585, %v3865
    %v3868 = vunpack.c.l.s4 1983009808
    %v3869 = vunpack.c.0.s8 %v3868
    %v3870 = vperm.slane %v3864, %v3869
    %v3872 = vunpack.c.l.s4 1983009808
    %v3873 = vunpack.c.0.s8 %v3872
    %v3874 = vperm.slane %v3866, %v3873
    %v3875 = vrot.slane %v3846, 4
    %v3876 = vsel %vm3603, %v3875, %v3834
    %v3877 = vrot.slane %v3834, 4
    %v3878 = vsel %vm3603, %v3846, %v3877
    %v3880 = vunpack.c.l.s4 1934713408
    %v3881 = vunpack.c.0.s8 %v3880
    %v3882 = vperm.slane %v3876, %v3881
    %v3884 = vunpack.c.l.s4 1934713408
    %v3885 = vunpack.c.0.s8 %v3884
    %v3886 = vperm.slane %v3878, %v3885
    %v3887 = vrot.slane %v3850, 4
    %v3888 = vsel %vm3603, %v3887, %v3838
    %v3889 = vrot.slane %v3838, 4
    %v3890 = vsel %vm3603, %v3850, %v3889
    %v3892 = vunpack.c.l.s4 1934713408
    %v3893 = vunpack.c.0.s8 %v3892
    %v3894 = vperm.slane %v3888, %v3893
    %v3896 = vunpack.c.l.s4 1934713408
    %v3897 = vunpack.c.0.s8 %v3896
    %v3898 = vperm.slane %v3890, %v3897
    %v3899 = vrot.slane %v3870, 4
    %v3900 = vsel %vm3603, %v3899, %v3858
    %v3901 = vrot.slane %v3858, 4
    %v3902 = vsel %vm3603, %v3870, %v3901
    %v3904 = vunpack.c.l.s4 1934713408
    %v3905 = vunpack.c.0.s8 %v3904
    %v3906 = vperm.slane %v3900, %v3905
    %v3908 = vunpack.c.l.s4 1934713408
    %v3909 = vunpack.c.0.s8 %v3908
    %v3910 = vperm.slane %v3902, %v3909
    %v3911 = vrot.slane %v3874, 4
    %v3912 = vsel %vm3603, %v3911, %v3862
    %v3913 = vrot.slane %v3862, 4
    %v3914 = vsel %vm3603, %v3874, %v3913
    %v3916 = vunpack.c.l.s4 1934713408
    %v3917 = vunpack.c.0.s8 %v3916
    %v3918 = vperm.slane %v3912, %v3917
    %v3920 = vunpack.c.l.s4 1934713408
    %v3921 = vunpack.c.0.s8 %v3920
    %v3922 = vperm.slane %v3914, %v3921
    %v3923 = vrot.slane %v3906, 4
    %v3924 = vsel %vm3603, %v3923, %v3882
    %v3925 = vrot.slane %v3882, 4
    %v3926 = vsel %vm3603, %v3906, %v3925
    %v3927 = vrot.slane %v3910, 4
    %v3928 = vsel %vm3603, %v3927, %v3886
    %v3929 = vrot.slane %v3886, 4
    %v3930 = vsel %vm3603, %v3910, %v3929
    %v3931 = vrot.slane %v3918, 4
    %v3932 = vsel %vm3603, %v3931, %v3894
    %v3933 = vrot.slane %v3894, 4
    %v3934 = vsel %vm3603, %v3918, %v3933
    %v3935 = vrot.slane %v3922, 4
    %v3936 = vsel %vm3603, %v3935, %v3898
    %v3937 = vrot.slane %v3898, 4
    %v3938 = vsel %vm3603, %v3922, %v3937
    %v3939 = vrot.slane %v3591, 4
    %v3940 = vsel %vm3603, %v3939, %v3587
    %v3941 = vrot.slane %v3587, 4
    %v3942 = vsel %vm3603, %v3591, %v3941
    %v3944 = vunpack.c.l.s4 1983009808
    %v3945 = vunpack.c.0.s8 %v3944
    %v3946 = vperm.slane %v3940, %v3945
    %v3948 = vunpack.c.l.s4 1983009808
    %v3949 = vunpack.c.0.s8 %v3948
    %v3950 = vperm.slane %v3942, %v3949
    %v3951 = vrot.slane %v3593, 4
    %v3952 = vsel %vm3603, %v3951, %v3589
    %v3953 = vrot.slane %v3589, 4
    %v3954 = vsel %vm3603, %v3593, %v3953
    %v3956 = vunpack.c.l.s4 1983009808
    %v3957 = vunpack.c.0.s8 %v3956
    %v3958 = vperm.slane %v3952, %v3957
    %v3960 = vunpack.c.l.s4 1983009808
    %v3961 = vunpack.c.0.s8 %v3960
    %v3962 = vperm.slane %v3954, %v3961
    %v3963 = vrot.slane %v3599, 4
    %v3964 = vsel %vm3603, %v3963, %v3595
    %v3965 = vrot.slane %v3595, 4
    %v3966 = vsel %vm3603, %v3599, %v3965
    %v3968 = vunpack.c.l.s4 1983009808
    %v3969 = vunpack.c.0.s8 %v3968
    %v3970 = vperm.slane %v3964, %v3969
    %v3972 = vunpack.c.l.s4 1983009808
    %v3973 = vunpack.c.0.s8 %v3972
    %v3974 = vperm.slane %v3966, %v3973
    %v3975 = vrot.slane %v3601, 4
    %v3976 = vsel %vm3603, %v3975, %v3597
    %v3977 = vrot.slane %v3597, 4
    %v3978 = vsel %vm3603, %v3601, %v3977
    %v3980 = vunpack.c.l.s4 1983009808
    %v3981 = vunpack.c.0.s8 %v3980
    %v3982 = vperm.slane %v3976, %v3981
    %v3984 = vunpack.c.l.s4 1983009808
    %v3985 = vunpack.c.0.s8 %v3984
    %v3986 = vperm.slane %v3978, %v3985
    %v3987 = vrot.slane %v3958, 4
    %v3988 = vsel %vm3603, %v3987, %v3946
    %v3989 = vrot.slane %v3946, 4
    %v3990 = vsel %vm3603, %v3958, %v3989
    %v3992 = vunpack.c.l.s4 1934713408
    %v3993 = vunpack.c.0.s8 %v3992
    %v3994 = vperm.slane %v3988, %v3993
    %v3996 = vunpack.c.l.s4 1934713408
    %v3997 = vunpack.c.0.s8 %v3996
    %v3998 = vperm.slane %v3990, %v3997
    %v3999 = vrot.slane %v3962, 4
    %v4000 = vsel %vm3603, %v3999, %v3950
    %v4001 = vrot.slane %v3950, 4
    %v4002 = vsel %vm3603, %v3962, %v4001
    %v4004 = vunpack.c.l.s4 1934713408
    %v4005 = vunpack.c.0.s8 %v4004
    %v4006 = vperm.slane %v4000, %v4005
    %v4008 = vunpack.c.l.s4 1934713408
    %v4009 = vunpack.c.0.s8 %v4008
    %v4010 = vperm.slane %v4002, %v4009
    %v4011 = vrot.slane %v3982, 4
    %v4012 = vsel %vm3603, %v4011, %v3970
    %v4013 = vrot.slane %v3970, 4
    %v4014 = vsel %vm3603, %v3982, %v4013
    %v4016 = vunpack.c.l.s4 1934713408
    %v4017 = vunpack.c.0.s8 %v4016
    %v4018 = vperm.slane %v4012, %v4017
    %v4020 = vunpack.c.l.s4 1934713408
    %v4021 = vunpack.c.0.s8 %v4020
    %v4022 = vperm.slane %v4014, %v4021
    %v4023 = vrot.slane %v3986, 4
    %v4024 = vsel %vm3603, %v4023, %v3974
    %v4025 = vrot.slane %v3974, 4
    %v4026 = vsel %vm3603, %v3986, %v4025
    %v4028 = vunpack.c.l.s4 1934713408
    %v4029 = vunpack.c.0.s8 %v4028
    %v4030 = vperm.slane %v4024, %v4029
    %v4032 = vunpack.c.l.s4 1934713408
    %v4033 = vunpack.c.0.s8 %v4032
    %v4034 = vperm.slane %v4026, %v4033
    %v4035 = vrot.slane %v4018, 4
    %v4036 = vsel %vm3603, %v4035, %v3994
    %v4037 = vrot.slane %v3994, 4
    %v4038 = vsel %vm3603, %v4018, %v4037
    %v4039 = vrot.slane %v4022, 4
    %v4040 = vsel %vm3603, %v4039, %v3998
    %v4041 = vrot.slane %v3998, 4
    %v4042 = vsel %vm3603, %v4022, %v4041
    %v4043 = vrot.slane %v4030, 4
    %v4044 = vsel %vm3603, %v4043, %v4006
    %v4045 = vrot.slane %v4006, 4
    %v4046 = vsel %vm3603, %v4030, %v4045
    %v4047 = vrot.slane %v4034, 4
    %v4048 = vsel %vm3603, %v4047, %v4010
    %v4049 = vrot.slane %v4010, 4
    %v4050 = vsel %vm3603, %v4034, %v4049
    %v4051 = vmax.f32 %v3700, %v3702
    %v4052 = vmax.f32 %v3812, %v3814
    %v4053 = vmax.f32 %v3704, %v3706
    %v4054 = vmax.f32 %v3816, %v3818
    %v4055 = vmax.f32 %v3708, %v3710
    %v4056 = vmax.f32 %v3820, %v3822
    %v4057 = vmax.f32 %v3712, %v3714
    %v4058 = vmax.f32 %v3824, %v3826
    %v4059 = vmax.f32 %v3924, %v3926
    %v4060 = vmax.f32 %v4036, %v4038
    %v4061 = vmax.f32 %v3928, %v3930
    %v4062 = vmax.f32 %v4040, %v4042
    %v4063 = vmax.f32 %v3932, %v3934
    %v4064 = vmax.f32 %v4044, %v4046
    %v4065 = vmax.f32 %v3936, %v3938
    %v4066 = vmax.f32 %v4048, %v4050
    %v4067 = vrot.slane %v4055, 4
    %v4068 = vsel %vm3603, %v4067, %v4051
    %v4069 = vrot.slane %v4051, 4
    %v4070 = vsel %vm3603, %v4055, %v4069
    %v4072 = vunpack.c.l.s4 1983009808
    %v4073 = vunpack.c.0.s8 %v4072
    %v4074 = vperm.slane %v4068, %v4073
    %v4076 = vunpack.c.l.s4 1983009808
    %v4077 = vunpack.c.0.s8 %v4076
    %v4078 = vperm.slane %v4070, %v4077
    %v4079 = vrot.slane %v4057, 4
    %v4080 = vsel %vm3603, %v4079, %v4053
    %v4081 = vrot.slane %v4053, 4
    %v4082 = vsel %vm3603, %v4057, %v4081
    %v4084 = vunpack.c.l.s4 1983009808
    %v4085 = vunpack.c.0.s8 %v4084
    %v4086 = vperm.slane %v4080, %v4085
    %v4088 = vunpack.c.l.s4 1983009808
    %v4089 = vunpack.c.0.s8 %v4088
    %v4090 = vperm.slane %v4082, %v4089
    %v4091 = vrot.slane %v4063, 4
    %v4092 = vsel %vm3603, %v4091, %v4059
    %v4093 = vrot.slane %v4059, 4
    %v4094 = vsel %vm3603, %v4063, %v4093
    %v4096 = vunpack.c.l.s4 1983009808
    %v4097 = vunpack.c.0.s8 %v4096
    %v4098 = vperm.slane %v4092, %v4097
    %v4100 = vunpack.c.l.s4 1983009808
    %v4101 = vunpack.c.0.s8 %v4100
    %v4102 = vperm.slane %v4094, %v4101
    %v4103 = vrot.slane %v4065, 4
    %v4104 = vsel %vm3603, %v4103, %v4061
    %v4105 = vrot.slane %v4061, 4
    %v4106 = vsel %vm3603, %v4065, %v4105
    %v4108 = vunpack.c.l.s4 1983009808
    %v4109 = vunpack.c.0.s8 %v4108
    %v4110 = vperm.slane %v4104, %v4109
    %v4112 = vunpack.c.l.s4 1983009808
    %v4113 = vunpack.c.0.s8 %v4112
    %v4114 = vperm.slane %v4106, %v4113
    %v4115 = vrot.slane %v4086, 4
    %v4116 = vsel %vm3603, %v4115, %v4074
    %v4117 = vrot.slane %v4074, 4
    %v4118 = vsel %vm3603, %v4086, %v4117
    %v4120 = vunpack.c.l.s4 1934713408
    %v4121 = vunpack.c.0.s8 %v4120
    %v4122 = vperm.slane %v4116, %v4121
    %v4124 = vunpack.c.l.s4 1934713408
    %v4125 = vunpack.c.0.s8 %v4124
    %v4126 = vperm.slane %v4118, %v4125
    %v4127 = vrot.slane %v4090, 4
    %v4128 = vsel %vm3603, %v4127, %v4078
    %v4129 = vrot.slane %v4078, 4
    %v4130 = vsel %vm3603, %v4090, %v4129
    %v4132 = vunpack.c.l.s4 1934713408
    %v4133 = vunpack.c.0.s8 %v4132
    %v4134 = vperm.slane %v4128, %v4133
    %v4136 = vunpack.c.l.s4 1934713408
    %v4137 = vunpack.c.0.s8 %v4136
    %v4138 = vperm.slane %v4130, %v4137
    %v4139 = vrot.slane %v4110, 4
    %v4140 = vsel %vm3603, %v4139, %v4098
    %v4141 = vrot.slane %v4098, 4
    %v4142 = vsel %vm3603, %v4110, %v4141
    %v4144 = vunpack.c.l.s4 1934713408
    %v4145 = vunpack.c.0.s8 %v4144
    %v4146 = vperm.slane %v4140, %v4145
    %v4148 = vunpack.c.l.s4 1934713408
    %v4149 = vunpack.c.0.s8 %v4148
    %v4150 = vperm.slane %v4142, %v4149
    %v4151 = vrot.slane %v4114, 4
    %v4152 = vsel %vm3603, %v4151, %v4102
    %v4153 = vrot.slane %v4102, 4
    %v4154 = vsel %vm3603, %v4114, %v4153
    %v4156 = vunpack.c.l.s4 1934713408
    %v4157 = vunpack.c.0.s8 %v4156
    %v4158 = vperm.slane %v4152, %v4157
    %v4160 = vunpack.c.l.s4 1934713408
    %v4161 = vunpack.c.0.s8 %v4160
    %v4162 = vperm.slane %v4154, %v4161
    %v4163 = vrot.slane %v4146, 4
    %v4164 = vsel %vm3603, %v4163, %v4122
    %v4165 = vrot.slane %v4122, 4
    %v4166 = vsel %vm3603, %v4146, %v4165
    %v4167 = vrot.slane %v4150, 4
    %v4168 = vsel %vm3603, %v4167, %v4126
    %v4169 = vrot.slane %v4126, 4
    %v4170 = vsel %vm3603, %v4150, %v4169
    %v4171 = vrot.slane %v4158, 4
    %v4172 = vsel %vm3603, %v4171, %v4134
    %v4173 = vrot.slane %v4134, 4
    %v4174 = vsel %vm3603, %v4158, %v4173
    %v4175 = vrot.slane %v4162, 4
    %v4176 = vsel %vm3603, %v4175, %v4138
    %v4177 = vrot.slane %v4138, 4
    %v4178 = vsel %vm3603, %v4162, %v4177
    %v4179 = vrot.slane %v4056, 4
    %v4180 = vsel %vm3603, %v4179, %v4052
    %v4181 = vrot.slane %v4052, 4
    %v4182 = vsel %vm3603, %v4056, %v4181
    %v4184 = vunpack.c.l.s4 1983009808
    %v4185 = vunpack.c.0.s8 %v4184
    %v4186 = vperm.slane %v4180, %v4185
    %v4188 = vunpack.c.l.s4 1983009808
    %v4189 = vunpack.c.0.s8 %v4188
    %v4190 = vperm.slane %v4182, %v4189
    %v4191 = vrot.slane %v4058, 4
    %v4192 = vsel %vm3603, %v4191, %v4054
    %v4193 = vrot.slane %v4054, 4
    %v4194 = vsel %vm3603, %v4058, %v4193
    %v4196 = vunpack.c.l.s4 1983009808
    %v4197 = vunpack.c.0.s8 %v4196
    %v4198 = vperm.slane %v4192, %v4197
    %v4200 = vunpack.c.l.s4 1983009808
    %v4201 = vunpack.c.0.s8 %v4200
    %v4202 = vperm.slane %v4194, %v4201
    %v4203 = vrot.slane %v4064, 4
    %v4204 = vsel %vm3603, %v4203, %v4060
    %v4205 = vrot.slane %v4060, 4
    %v4206 = vsel %vm3603, %v4064, %v4205
    %v4208 = vunpack.c.l.s4 1983009808
    %v4209 = vunpack.c.0.s8 %v4208
    %v4210 = vperm.slane %v4204, %v4209
    %v4212 = vunpack.c.l.s4 1983009808
    %v4213 = vunpack.c.0.s8 %v4212
    %v4214 = vperm.slane %v4206, %v4213
    %v4215 = vrot.slane %v4066, 4
    %v4216 = vsel %vm3603, %v4215, %v4062
    %v4217 = vrot.slane %v4062, 4
    %v4218 = vsel %vm3603, %v4066, %v4217
    %v4220 = vunpack.c.l.s4 1983009808
    %v4221 = vunpack.c.0.s8 %v4220
    %v4222 = vperm.slane %v4216, %v4221
    %v4224 = vunpack.c.l.s4 1983009808
    %v4225 = vunpack.c.0.s8 %v4224
    %v4226 = vperm.slane %v4218, %v4225
    %v4227 = vrot.slane %v4198, 4
    %v4228 = vsel %vm3603, %v4227, %v4186
    %v4229 = vrot.slane %v4186, 4
    %v4230 = vsel %vm3603, %v4198, %v4229
    %v4232 = vunpack.c.l.s4 1934713408
    %v4233 = vunpack.c.0.s8 %v4232
    %v4234 = vperm.slane %v4228, %v4233
    %v4236 = vunpack.c.l.s4 1934713408
    %v4237 = vunpack.c.0.s8 %v4236
    %v4238 = vperm.slane %v4230, %v4237
    %v4239 = vrot.slane %v4202, 4
    %v4240 = vsel %vm3603, %v4239, %v4190
    %v4241 = vrot.slane %v4190, 4
    %v4242 = vsel %vm3603, %v4202, %v4241
    %v4244 = vunpack.c.l.s4 1934713408
    %v4245 = vunpack.c.0.s8 %v4244
    %v4246 = vperm.slane %v4240, %v4245
    %v4248 = vunpack.c.l.s4 1934713408
    %v4249 = vunpack.c.0.s8 %v4248
    %v4250 = vperm.slane %v4242, %v4249
    %v4251 = vrot.slane %v4222, 4
    %v4252 = vsel %vm3603, %v4251, %v4210
    %v4253 = vrot.slane %v4210, 4
    %v4254 = vsel %vm3603, %v4222, %v4253
    %v4256 = vunpack.c.l.s4 1934713408
    %v4257 = vunpack.c.0.s8 %v4256
    %v4258 = vperm.slane %v4252, %v4257
    %v4260 = vunpack.c.l.s4 1934713408
    %v4261 = vunpack.c.0.s8 %v4260
    %v4262 = vperm.slane %v4254, %v4261
    %v4263 = vrot.slane %v4226, 4
    %v4264 = vsel %vm3603, %v4263, %v4214
    %v4265 = vrot.slane %v4214, 4
    %v4266 = vsel %vm3603, %v4226, %v4265
    %v4268 = vunpack.c.l.s4 1934713408
    %v4269 = vunpack.c.0.s8 %v4268
    %v4270 = vperm.slane %v4264, %v4269
    %v4272 = vunpack.c.l.s4 1934713408
    %v4273 = vunpack.c.0.s8 %v4272
    %v4274 = vperm.slane %v4266, %v4273
    %v4275 = vrot.slane %v4258, 4
    %v4276 = vsel %vm3603, %v4275, %v4234
    %v4277 = vrot.slane %v4234, 4
    %v4278 = vsel %vm3603, %v4258, %v4277
    %v4279 = vrot.slane %v4262, 4
    %v4280 = vsel %vm3603, %v4279, %v4238
    %v4281 = vrot.slane %v4238, 4
    %v4282 = vsel %vm3603, %v4262, %v4281
    %v4283 = vrot.slane %v4270, 4
    %v4284 = vsel %vm3603, %v4283, %v4246
    %v4285 = vrot.slane %v4246, 4
    %v4286 = vsel %vm3603, %v4270, %v4285
    %v4287 = vrot.slane %v4274, 4
    %v4288 = vsel %vm3603, %v4287, %v4250
    %v4289 = vrot.slane %v4250, 4
    %v4290 = vsel %vm3603, %v4274, %v4289
    %p4291 = scmp.eq.s32.totalorder 0, 0
    // Predicated region
    $region38: #{cifar_forward.1} parent=1 // pred_check
      %p4292 = pneg %p4291
    $region39: #{cifar_forward.1} parent=1 // pred_check_branch
      %4294 = sbr.rel (%p4292) target = $region41
    $region40: #{cifar_forward.1} parent=1 // pred_region
      %4295 = vst.msk [vmem:[#allocation2] sm:$0xff] %vm2725, 0.0
      %vm4296 = vcmask 58368
      %4297 = vst.msk [vmem:[#allocation2 + $0x8] sm:$0x3] %vm4296, 0.0
      %4298 = vst.msk [vmem:[#allocation2 + $0x10] sm:$0xff] %vm2725, 0.0
      %4299 = vst.msk [vmem:[#allocation2 + $0x18] sm:$0x3] %vm4296, 0.0
      %4300 = vst.msk [vmem:[#allocation2 + $0x20] sm:$0xff] %vm2725, 0.0
      %4301 = vst.msk [vmem:[#allocation2 + $0x28] sm:$0x3] %vm4296, 0.0
      %4302 = vst.msk [vmem:[#allocation2 + $0x30] sm:$0xff] %vm2725, 0.0
      %4303 = vst.msk [vmem:[#allocation2 + $0x38] sm:$0x3] %vm4296, 0.0
      %4304 = vst.msk [vmem:[#allocation2 + $0x40] sm:$0xff] %vm2725, 0.0
      %4305 = vst.msk [vmem:[#allocation2 + $0x48] sm:$0x3] %vm4296, 0.0
      %4306 = vst.msk [vmem:[#allocation2 + $0x50] sm:$0xff] %vm2725, 0.0
      %4307 = vst.msk [vmem:[#allocation2 + $0x58] sm:$0x3] %vm4296, 0.0
      %4308 = vst.msk [vmem:[#allocation2 + $0x60] sm:$0xff] %vm2725, 0.0
      %4309 = vst.msk [vmem:[#allocation2 + $0x68] sm:$0x3] %vm4296, 0.0
      %4310 = vst.msk [vmem:[#allocation2 + $0x70] sm:$0xff] %vm2725, 0.0
      %4311 = vst.msk [vmem:[#allocation2 + $0x78] sm:$0x3] %vm4296, 0.0
      %4312 = vst.msk [vmem:[#allocation2 + $0x80] sm:$0xff] %vm2725, 0.0
      %4313 = vst.msk [vmem:[#allocation2 + $0x88] sm:$0x3] %vm4296, 0.0
      %4314 = vst.msk [vmem:[#allocation2 + $0x90] sm:$0xff] %vm2725, 0.0
      %4315 = vst.msk [vmem:[#allocation2 + $0x98] sm:$0x3] %vm4296, 0.0
      %4316 = vst.msk [vmem:[#allocation2 + $0xa0] sm:$0xff] %vm2725, 0.0
      %4317 = vst.msk [vmem:[#allocation2 + $0xa8] sm:$0x3] %vm4296, 0.0
      %4318 = vst.msk [vmem:[#allocation2 + $0xb0] sm:$0xff] %vm2725, 0.0
      %4319 = vst.msk [vmem:[#allocation2 + $0xb8] sm:$0x3] %vm4296, 0.0
      %4320 = vst.msk [vmem:[#allocation2 + $0xc0] sm:$0xff] %vm2725, 0.0
      %4321 = vst.msk [vmem:[#allocation2 + $0xc8] sm:$0x3] %vm4296, 0.0
      %4322 = vst.msk [vmem:[#allocation2 + $0xd0] sm:$0xff] %vm2725, 0.0
      %4323 = vst.msk [vmem:[#allocation2 + $0xd8] sm:$0x3] %vm4296, 0.0
      %4324 = vst.msk [vmem:[#allocation2 + $0xe0] sm:$0xff] %vm2725, 0.0
      %4325 = vst.msk [vmem:[#allocation2 + $0xe8] sm:$0x3] %vm4296, 0.0
      %4326 = vst.msk [vmem:[#allocation2 + $0xf0] sm:$0xff] %vm2725, 0.0
      %4327 = vst.msk [vmem:[#allocation2 + $0xf8] sm:$0x3] %vm4296, 0.0
      %4328 = vst.msk [vmem:[#allocation2 + $0x100] sm:$0xff] %vm2725, 0.0
      %4329 = vst.msk [vmem:[#allocation2 + $0x108] sm:$0x3] %vm4296, 0.0
      %4330 = vst.msk [vmem:[#allocation2 + $0x110] sm:$0xff] %vm2725, 0.0
      %4331 = vst.msk [vmem:[#allocation2 + $0x118] sm:$0x3] %vm4296, 0.0
      %4332 = vst.msk [vmem:[#allocation2 + $0x120] sm:$0xff] %vm2725, 0.0
      %4333 = vst.msk [vmem:[#allocation2 + $0x128] sm:$0x3] %vm4296, 0.0
      %4334 = vst.msk [vmem:[#allocation2 + $0x130] sm:$0xff] %vm2725, 0.0
      %4335 = vst.msk [vmem:[#allocation2 + $0x138] sm:$0x3] %vm4296, 0.0
    $region41: #{cifar_forward.1} parent=1 // pred_fallthru
      _
    %s4336 = scalar_lea.vmem [#allocation2], 16
    %4337 = vst.msk [vmem:[%s4336 + $0x1] sm:$0xff] %vm2725, %v4164
    %4338 = vst.msk [vmem:[%s4336 + $0x11] sm:$0xff] %vm2725, %v4166
    %4339 = vst.msk [vmem:[%s4336 + $0x21] sm:$0xff] %vm2725, %v4168
    %4340 = vst.msk [vmem:[%s4336 + $0x31] sm:$0xff] %vm2725, %v4170
    %4341 = vst.msk [vmem:[%s4336 + $0x41] sm:$0xff] %vm2725, %v4172
    %4342 = vst.msk [vmem:[%s4336 + $0x51] sm:$0xff] %vm2725, %v4174
    %4343 = vst.msk [vmem:[%s4336 + $0x61] sm:$0xff] %vm2725, %v4176
    %4344 = vst.msk [vmem:[%s4336 + $0x71] sm:$0xff] %vm2725, %v4178
    %4345 = vst.msk [vmem:[%s4336 + $0xa1] sm:$0xff] %vm2725, %v4276
    %4346 = vst.msk [vmem:[%s4336 + $0xb1] sm:$0xff] %vm2725, %v4278
    %4347 = vst.msk [vmem:[%s4336 + $0xc1] sm:$0xff] %vm2725, %v4280
    %4348 = vst.msk [vmem:[%s4336 + $0xd1] sm:$0xff] %vm2725, %v4282
    %4349 = vst.msk [vmem:[%s4336 + $0xe1] sm:$0xff] %vm2725, %v4284
    %4350 = vst.msk [vmem:[%s4336 + $0xf1] sm:$0xff] %vm2725, %v4286
    %4351 = vst.msk [vmem:[%s4336 + $0x101] sm:$0xff] %vm2725, %v4288
    %4352 = vst.msk [vmem:[%s4336 + $0x111] sm:$0xff] %vm2725, %v4290
    %v4353 = vld [vmem:[#allocation2] sm:$0xff]
    %v4354 = vld [vmem:[#allocation2 + $0x10] sm:$0xff]
    %v4355 = vld [vmem:[#allocation2 + $0x20] sm:$0xff]
    %v4356 = vld [vmem:[#allocation2 + $0x30] sm:$0xff]
    %v4357 = vld [vmem:[#allocation2 + $0x40] sm:$0xff]
    %v4358 = vld [vmem:[#allocation2 + $0x50] sm:$0xff]
    %v4359 = vld [vmem:[#allocation2 + $0x60] sm:$0xff]
    %v4360 = vld [vmem:[#allocation2 + $0x70] sm:$0xff]
    %v4361 = vld [vmem:[#allocation2 + $0xa0] sm:$0xff]
    %v4362 = vld [vmem:[#allocation2 + $0xb0] sm:$0xff]
    %v4363 = vld [vmem:[#allocation2 + $0xc0] sm:$0xff]
    %v4364 = vld [vmem:[#allocation2 + $0xd0] sm:$0xff]
    %v4365 = vld [vmem:[#allocation2 + $0xe0] sm:$0xff]
    %v4366 = vld [vmem:[#allocation2 + $0xf0] sm:$0xff]
    %v4367 = vld [vmem:[#allocation2 + $0x100] sm:$0xff]
    %v4368 = vld [vmem:[#allocation2 + $0x110] sm:$0xff]
    %v4369 = vld [vmem:[#allocation2 + $0x1] sm:$0xff]
    %v4370 = vld [vmem:[#allocation2 + $0x11] sm:$0xff]
    %v4371 = vld [vmem:[#allocation2 + $0x21] sm:$0xff]
    %v4372 = vld [vmem:[#allocation2 + $0x31] sm:$0xff]
    %v4373 = vld [vmem:[#allocation2 + $0x41] sm:$0xff]
    %v4374 = vld [vmem:[#allocation2 + $0x51] sm:$0xff]
    %v4375 = vld [vmem:[#allocation2 + $0x61] sm:$0xff]
    %v4376 = vld [vmem:[#allocation2 + $0x71] sm:$0xff]
    %v4377 = vld [vmem:[#allocation2 + $0xa1] sm:$0xff]
    %v4378 = vld [vmem:[#allocation2 + $0xb1] sm:$0xff]
    %v4379 = vld [vmem:[#allocation2 + $0xc1] sm:$0xff]
    %v4380 = vld [vmem:[#allocation2 + $0xd1] sm:$0xff]
    %v4381 = vld [vmem:[#allocation2 + $0xe1] sm:$0xff]
    %v4382 = vld [vmem:[#allocation2 + $0xf1] sm:$0xff]
    %v4383 = vld [vmem:[#allocation2 + $0x101] sm:$0xff]
    %v4384 = vld [vmem:[#allocation2 + $0x111] sm:$0xff]
    %v4385 = vld [vmem:[#allocation2 + $0x2] sm:$0xff]
    %v4386 = vld [vmem:[#allocation2 + $0x12] sm:$0xff]
    %v4387 = vld [vmem:[#allocation2 + $0x22] sm:$0xff]
    %v4388 = vld [vmem:[#allocation2 + $0x32] sm:$0xff]
    %v4389 = vld [vmem:[#allocation2 + $0x42] sm:$0xff]
    %v4390 = vld [vmem:[#allocation2 + $0x52] sm:$0xff]
    %v4391 = vld [vmem:[#allocation2 + $0x62] sm:$0xff]
    %v4392 = vld [vmem:[#allocation2 + $0x72] sm:$0xff]
    %v4393 = vld [vmem:[#allocation2 + $0xa2] sm:$0xff]
    %v4394 = vld [vmem:[#allocation2 + $0xb2] sm:$0xff]
    %v4395 = vld [vmem:[#allocation2 + $0xc2] sm:$0xff]
    %v4396 = vld [vmem:[#allocation2 + $0xd2] sm:$0xff]
    %v4397 = vld [vmem:[#allocation2 + $0xe2] sm:$0xff]
    %v4398 = vld [vmem:[#allocation2 + $0xf2] sm:$0xff]
    %v4399 = vld [vmem:[#allocation2 + $0x102] sm:$0xff]
    %v4400 = vld [vmem:[#allocation2 + $0x112] sm:$0xff]
    %v4401 = vld [vmem:[%s4336] sm:$0xff]
    %v4402 = vld [vmem:[%s4336 + $0x10] sm:$0xff]
    %v4403 = vld [vmem:[%s4336 + $0x20] sm:$0xff]
    %v4404 = vld [vmem:[%s4336 + $0x30] sm:$0xff]
    %v4405 = vld [vmem:[%s4336 + $0x40] sm:$0xff]
    %v4406 = vld [vmem:[%s4336 + $0x50] sm:$0xff]
    %v4407 = vld [vmem:[%s4336 + $0x60] sm:$0xff]
    %v4408 = vld [vmem:[%s4336 + $0x70] sm:$0xff]
    %v4409 = vld [vmem:[%s4336 + $0xa0] sm:$0xff]
    %v4410 = vld [vmem:[%s4336 + $0xb0] sm:$0xff]
    %v4411 = vld [vmem:[%s4336 + $0xc0] sm:$0xff]
    %v4412 = vld [vmem:[%s4336 + $0xd0] sm:$0xff]
    %v4413 = vld [vmem:[%s4336 + $0xe0] sm:$0xff]
    %v4414 = vld [vmem:[%s4336 + $0xf0] sm:$0xff]
    %v4415 = vld [vmem:[%s4336 + $0x100] sm:$0xff]
    %v4416 = vld [vmem:[%s4336 + $0x110] sm:$0xff]
    %v4417 = vld [vmem:[%s4336 + $0x1] sm:$0xff]
    %v4418 = vld [vmem:[%s4336 + $0x11] sm:$0xff]
    %v4419 = vld [vmem:[%s4336 + $0x21] sm:$0xff]
    %v4420 = vld [vmem:[%s4336 + $0x31] sm:$0xff]
    %v4421 = vld [vmem:[%s4336 + $0x41] sm:$0xff]
    %v4422 = vld [vmem:[%s4336 + $0x51] sm:$0xff]
    %v4423 = vld [vmem:[%s4336 + $0x61] sm:$0xff]
    %v4424 = vld [vmem:[%s4336 + $0x71] sm:$0xff]
    %v4425 = vld [vmem:[%s4336 + $0xa1] sm:$0xff]
    %v4426 = vld [vmem:[%s4336 + $0xb1] sm:$0xff]
    %v4427 = vld [vmem:[%s4336 + $0xc1] sm:$0xff]
    %v4428 = vld [vmem:[%s4336 + $0xd1] sm:$0xff]
    %v4429 = vld [vmem:[%s4336 + $0xe1] sm:$0xff]
    %v4430 = vld [vmem:[%s4336 + $0xf1] sm:$0xff]
    %v4431 = vld [vmem:[%s4336 + $0x101] sm:$0xff]
    %v4432 = vld [vmem:[%s4336 + $0x111] sm:$0xff]
    %v4433 = vld [vmem:[%s4336 + $0x2] sm:$0xff]
    %v4434 = vld [vmem:[%s4336 + $0x12] sm:$0xff]
    %v4435 = vld [vmem:[%s4336 + $0x22] sm:$0xff]
    %v4436 = vld [vmem:[%s4336 + $0x32] sm:$0xff]
    %v4437 = vld [vmem:[%s4336 + $0x42] sm:$0xff]
    %v4438 = vld [vmem:[%s4336 + $0x52] sm:$0xff]
    %v4439 = vld [vmem:[%s4336 + $0x62] sm:$0xff]
    %v4440 = vld [vmem:[%s4336 + $0x72] sm:$0xff]
    %v4441 = vld [vmem:[%s4336 + $0xa2] sm:$0xff]
    %v4442 = vld [vmem:[%s4336 + $0xb2] sm:$0xff]
    %v4443 = vld [vmem:[%s4336 + $0xc2] sm:$0xff]
    %v4444 = vld [vmem:[%s4336 + $0xd2] sm:$0xff]
    %v4445 = vld [vmem:[%s4336 + $0xe2] sm:$0xff]
    %v4446 = vld [vmem:[%s4336 + $0xf2] sm:$0xff]
    %v4447 = vld [vmem:[%s4336 + $0x102] sm:$0xff]
    %v4448 = vld [vmem:[%s4336 + $0x112] sm:$0xff]
    %s4449 = scalar_lea.vmem [#allocation2], 32
    %v4450 = vld [vmem:[%s4449] sm:$0xff]
    %v4451 = vld [vmem:[%s4449 + $0x10] sm:$0xff]
    %v4452 = vld [vmem:[%s4449 + $0x20] sm:$0xff]
    %v4453 = vld [vmem:[%s4449 + $0x30] sm:$0xff]
    %v4454 = vld [vmem:[%s4449 + $0x40] sm:$0xff]
    %v4455 = vld [vmem:[%s4449 + $0x50] sm:$0xff]
    %v4456 = vld [vmem:[%s4449 + $0x60] sm:$0xff]
    %v4457 = vld [vmem:[%s4449 + $0x70] sm:$0xff]
    %v4458 = vld [vmem:[%s4449 + $0xa0] sm:$0xff]
    %v4459 = vld [vmem:[%s4449 + $0xb0] sm:$0xff]
    %v4460 = vld [vmem:[%s4449 + $0xc0] sm:$0xff]
    %v4461 = vld [vmem:[%s4449 + $0xd0] sm:$0xff]
    %v4462 = vld [vmem:[%s4449 + $0xe0] sm:$0xff]
    %v4463 = vld [vmem:[%s4449 + $0xf0] sm:$0xff]
    %v4464 = vld [vmem:[%s4449 + $0x100] sm:$0xff]
    %v4465 = vld [vmem:[%s4449 + $0x110] sm:$0xff]
    %v4466 = vld [vmem:[%s4449 + $0x1] sm:$0xff]
    %v4467 = vld [vmem:[%s4449 + $0x11] sm:$0xff]
    %v4468 = vld [vmem:[%s4449 + $0x21] sm:$0xff]
    %v4469 = vld [vmem:[%s4449 + $0x31] sm:$0xff]
    %v4470 = vld [vmem:[%s4449 + $0x41] sm:$0xff]
    %v4471 = vld [vmem:[%s4449 + $0x51] sm:$0xff]
    %v4472 = vld [vmem:[%s4449 + $0x61] sm:$0xff]
    %v4473 = vld [vmem:[%s4449 + $0x71] sm:$0xff]
    %v4474 = vld [vmem:[%s4449 + $0xa1] sm:$0xff]
    %v4475 = vld [vmem:[%s4449 + $0xb1] sm:$0xff]
    %v4476 = vld [vmem:[%s4449 + $0xc1] sm:$0xff]
    %v4477 = vld [vmem:[%s4449 + $0xd1] sm:$0xff]
    %v4478 = vld [vmem:[%s4449 + $0xe1] sm:$0xff]
    %v4479 = vld [vmem:[%s4449 + $0xf1] sm:$0xff]
    %v4480 = vld [vmem:[%s4449 + $0x101] sm:$0xff]
    %v4481 = vld [vmem:[%s4449 + $0x111] sm:$0xff]
    %v4482 = vld [vmem:[%s4449 + $0x2] sm:$0xff]
    %v4483 = vld [vmem:[%s4449 + $0x12] sm:$0xff]
    %v4484 = vld [vmem:[%s4449 + $0x22] sm:$0xff]
    %v4485 = vld [vmem:[%s4449 + $0x32] sm:$0xff]
    %v4486 = vld [vmem:[%s4449 + $0x42] sm:$0xff]
    %v4487 = vld [vmem:[%s4449 + $0x52] sm:$0xff]
    %v4488 = vld [vmem:[%s4449 + $0x62] sm:$0xff]
    %v4489 = vld [vmem:[%s4449 + $0x72] sm:$0xff]
    %v4490 = vld [vmem:[%s4449 + $0xa2] sm:$0xff]
    %v4491 = vld [vmem:[%s4449 + $0xb2] sm:$0xff]
    %v4492 = vld [vmem:[%s4449 + $0xc2] sm:$0xff]
    %v4493 = vld [vmem:[%s4449 + $0xd2] sm:$0xff]
    %v4494 = vld [vmem:[%s4449 + $0xe2] sm:$0xff]
    %v4495 = vld [vmem:[%s4449 + $0xf2] sm:$0xff]
    %v4496 = vld [vmem:[%s4449 + $0x102] sm:$0xff]
    %v4497 = vld [vmem:[%s4449 + $0x112] sm:$0xff]
    %4514 = vrot.lane.b32.xlu0 %v4369, 8
    %v4515 = vpop.permute.xlu0 %4514
    %4516 = vrot.lane.b32.xlu0 %v4370, 8
    %v4517 = vpop.permute.xlu0 %4516
    %4518 = vrot.lane.b32.xlu0 %v4371, 8
    %v4519 = vpop.permute.xlu0 %4518
    %4520 = vrot.lane.b32.xlu0 %v4372, 8
    %v4521 = vpop.permute.xlu0 %4520
    %4522 = vrot.lane.b32.xlu0 %v4373, 8
    %v4523 = vpop.permute.xlu0 %4522
    %4524 = vrot.lane.b32.xlu0 %v4374, 8
    %v4525 = vpop.permute.xlu0 %4524
    %4526 = vrot.lane.b32.xlu0 %v4375, 8
    %v4527 = vpop.permute.xlu0 %4526
    %4528 = vrot.lane.b32.xlu0 %v4376, 8
    %v4529 = vpop.permute.xlu0 %4528
    %4530 = vrot.lane.b32.xlu0 %v4377, 8
    %v4531 = vpop.permute.xlu0 %4530
    %4532 = vrot.lane.b32.xlu0 %v4378, 8
    %v4533 = vpop.permute.xlu0 %4532
    %4534 = vrot.lane.b32.xlu0 %v4379, 8
    %v4535 = vpop.permute.xlu0 %4534
    %4536 = vrot.lane.b32.xlu0 %v4380, 8
    %v4537 = vpop.permute.xlu0 %4536
    %4538 = vrot.lane.b32.xlu0 %v4381, 8
    %v4539 = vpop.permute.xlu0 %4538
    %4540 = vrot.lane.b32.xlu0 %v4382, 8
    %v4541 = vpop.permute.xlu0 %4540
    %4542 = vrot.lane.b32.xlu0 %v4383, 8
    %v4543 = vpop.permute.xlu0 %4542
    %4544 = vrot.lane.b32.xlu0 %v4384, 8
    %v4545 = vpop.permute.xlu0 %4544
    %4578 = vrot.lane.b32.xlu0 %v4385, 16
    %v4579 = vpop.permute.xlu0 %4578
    %4580 = vrot.lane.b32.xlu0 %v4386, 16
    %v4581 = vpop.permute.xlu0 %4580
    %4582 = vrot.lane.b32.xlu0 %v4387, 16
    %v4583 = vpop.permute.xlu0 %4582
    %4584 = vrot.lane.b32.xlu0 %v4388, 16
    %v4585 = vpop.permute.xlu0 %4584
    %4586 = vrot.lane.b32.xlu0 %v4389, 16
    %v4587 = vpop.permute.xlu0 %4586
    %4588 = vrot.lane.b32.xlu0 %v4390, 16
    %v4589 = vpop.permute.xlu0 %4588
    %4590 = vrot.lane.b32.xlu0 %v4391, 16
    %v4591 = vpop.permute.xlu0 %4590
    %4592 = vrot.lane.b32.xlu0 %v4392, 16
    %v4593 = vpop.permute.xlu0 %4592
    %4594 = vrot.lane.b32.xlu0 %v4393, 16
    %v4595 = vpop.permute.xlu0 %4594
    %4596 = vrot.lane.b32.xlu0 %v4394, 16
    %v4597 = vpop.permute.xlu0 %4596
    %4598 = vrot.lane.b32.xlu0 %v4395, 16
    %v4599 = vpop.permute.xlu0 %4598
    %4600 = vrot.lane.b32.xlu0 %v4396, 16
    %v4601 = vpop.permute.xlu0 %4600
    %4602 = vrot.lane.b32.xlu0 %v4397, 16
    %v4603 = vpop.permute.xlu0 %4602
    %4604 = vrot.lane.b32.xlu0 %v4398, 16
    %v4605 = vpop.permute.xlu0 %4604
    %4606 = vrot.lane.b32.xlu0 %v4399, 16
    %v4607 = vpop.permute.xlu0 %4606
    %4608 = vrot.lane.b32.xlu0 %v4400, 16
    %v4609 = vpop.permute.xlu0 %4608
    %4642 = vrot.lane.b32.xlu0 %v4401, 24
    %v4643 = vpop.permute.xlu0 %4642
    %4644 = vrot.lane.b32.xlu0 %v4402, 24
    %v4645 = vpop.permute.xlu0 %4644
    %4646 = vrot.lane.b32.xlu0 %v4403, 24
    %v4647 = vpop.permute.xlu0 %4646
    %4648 = vrot.lane.b32.xlu0 %v4404, 24
    %v4649 = vpop.permute.xlu0 %4648
    %4650 = vrot.lane.b32.xlu0 %v4405, 24
    %v4651 = vpop.permute.xlu0 %4650
    %4652 = vrot.lane.b32.xlu0 %v4406, 24
    %v4653 = vpop.permute.xlu0 %4652
    %4654 = vrot.lane.b32.xlu0 %v4407, 24
    %v4655 = vpop.permute.xlu0 %4654
    %4656 = vrot.lane.b32.xlu0 %v4408, 24
    %v4657 = vpop.permute.xlu0 %4656
    %4658 = vrot.lane.b32.xlu0 %v4409, 24
    %v4659 = vpop.permute.xlu0 %4658
    %4660 = vrot.lane.b32.xlu0 %v4410, 24
    %v4661 = vpop.permute.xlu0 %4660
    %4662 = vrot.lane.b32.xlu0 %v4411, 24
    %v4663 = vpop.permute.xlu0 %4662
    %4664 = vrot.lane.b32.xlu0 %v4412, 24
    %v4665 = vpop.permute.xlu0 %4664
    %4666 = vrot.lane.b32.xlu0 %v4413, 24
    %v4667 = vpop.permute.xlu0 %4666
    %4668 = vrot.lane.b32.xlu0 %v4414, 24
    %v4669 = vpop.permute.xlu0 %4668
    %4670 = vrot.lane.b32.xlu0 %v4415, 24
    %v4671 = vpop.permute.xlu0 %4670
    %4672 = vrot.lane.b32.xlu0 %v4416, 24
    %v4673 = vpop.permute.xlu0 %4672
    %4706 = vrot.lane.b32.xlu0 %v4417, 32
    %v4707 = vpop.permute.xlu0 %4706
    %4708 = vrot.lane.b32.xlu0 %v4418, 32
    %v4709 = vpop.permute.xlu0 %4708
    %4710 = vrot.lane.b32.xlu0 %v4419, 32
    %v4711 = vpop.permute.xlu0 %4710
    %4712 = vrot.lane.b32.xlu0 %v4420, 32
    %v4713 = vpop.permute.xlu0 %4712
    %4714 = vrot.lane.b32.xlu0 %v4421, 32
    %v4715 = vpop.permute.xlu0 %4714
    %4716 = vrot.lane.b32.xlu0 %v4422, 32
    %v4717 = vpop.permute.xlu0 %4716
    %4718 = vrot.lane.b32.xlu0 %v4423, 32
    %v4719 = vpop.permute.xlu0 %4718
    %4720 = vrot.lane.b32.xlu0 %v4424, 32
    %v4721 = vpop.permute.xlu0 %4720
    %4722 = vrot.lane.b32.xlu0 %v4425, 32
    %v4723 = vpop.permute.xlu0 %4722
    %4724 = vrot.lane.b32.xlu0 %v4426, 32
    %v4725 = vpop.permute.xlu0 %4724
    %4726 = vrot.lane.b32.xlu0 %v4427, 32
    %v4727 = vpop.permute.xlu0 %4726
    %4728 = vrot.lane.b32.xlu0 %v4428, 32
    %v4729 = vpop.permute.xlu0 %4728
    %4730 = vrot.lane.b32.xlu0 %v4429, 32
    %v4731 = vpop.permute.xlu0 %4730
    %4732 = vrot.lane.b32.xlu0 %v4430, 32
    %v4733 = vpop.permute.xlu0 %4732
    %4734 = vrot.lane.b32.xlu0 %v4431, 32
    %v4735 = vpop.permute.xlu0 %4734
    %4736 = vrot.lane.b32.xlu0 %v4432, 32
    %v4737 = vpop.permute.xlu0 %4736
    %4770 = vrot.lane.b32.xlu0 %v4433, 40
    %v4771 = vpop.permute.xlu0 %4770
    %4772 = vrot.lane.b32.xlu0 %v4434, 40
    %v4773 = vpop.permute.xlu0 %4772
    %4774 = vrot.lane.b32.xlu0 %v4435, 40
    %v4775 = vpop.permute.xlu0 %4774
    %4776 = vrot.lane.b32.xlu0 %v4436, 40
    %v4777 = vpop.permute.xlu0 %4776
    %4778 = vrot.lane.b32.xlu0 %v4437, 40
    %v4779 = vpop.permute.xlu0 %4778
    %4780 = vrot.lane.b32.xlu0 %v4438, 40
    %v4781 = vpop.permute.xlu0 %4780
    %4782 = vrot.lane.b32.xlu0 %v4439, 40
    %v4783 = vpop.permute.xlu0 %4782
    %4784 = vrot.lane.b32.xlu0 %v4440, 40
    %v4785 = vpop.permute.xlu0 %4784
    %4786 = vrot.lane.b32.xlu0 %v4441, 40
    %v4787 = vpop.permute.xlu0 %4786
    %4788 = vrot.lane.b32.xlu0 %v4442, 40
    %v4789 = vpop.permute.xlu0 %4788
    %4790 = vrot.lane.b32.xlu0 %v4443, 40
    %v4791 = vpop.permute.xlu0 %4790
    %4792 = vrot.lane.b32.xlu0 %v4444, 40
    %v4793 = vpop.permute.xlu0 %4792
    %4794 = vrot.lane.b32.xlu0 %v4445, 40
    %v4795 = vpop.permute.xlu0 %4794
    %4796 = vrot.lane.b32.xlu0 %v4446, 40
    %v4797 = vpop.permute.xlu0 %4796
    %4798 = vrot.lane.b32.xlu0 %v4447, 40
    %v4799 = vpop.permute.xlu0 %4798
    %4800 = vrot.lane.b32.xlu0 %v4448, 40
    %v4801 = vpop.permute.xlu0 %4800
    %4834 = vrot.lane.b32.xlu0 %v4450, 48
    %v4835 = vpop.permute.xlu0 %4834
    %4836 = vrot.lane.b32.xlu0 %v4451, 48
    %v4837 = vpop.permute.xlu0 %4836
    %4838 = vrot.lane.b32.xlu0 %v4452, 48
    %v4839 = vpop.permute.xlu0 %4838
    %4840 = vrot.lane.b32.xlu0 %v4453, 48
    %v4841 = vpop.permute.xlu0 %4840
    %4842 = vrot.lane.b32.xlu0 %v4454, 48
    %v4843 = vpop.permute.xlu0 %4842
    %4844 = vrot.lane.b32.xlu0 %v4455, 48
    %v4845 = vpop.permute.xlu0 %4844
    %4846 = vrot.lane.b32.xlu0 %v4456, 48
    %v4847 = vpop.permute.xlu0 %4846
    %4848 = vrot.lane.b32.xlu0 %v4457, 48
    %v4849 = vpop.permute.xlu0 %4848
    %4850 = vrot.lane.b32.xlu0 %v4458, 48
    %v4851 = vpop.permute.xlu0 %4850
    %4852 = vrot.lane.b32.xlu0 %v4459, 48
    %v4853 = vpop.permute.xlu0 %4852
    %4854 = vrot.lane.b32.xlu0 %v4460, 48
    %v4855 = vpop.permute.xlu0 %4854
    %4856 = vrot.lane.b32.xlu0 %v4461, 48
    %v4857 = vpop.permute.xlu0 %4856
    %4858 = vrot.lane.b32.xlu0 %v4462, 48
    %v4859 = vpop.permute.xlu0 %4858
    %4860 = vrot.lane.b32.xlu0 %v4463, 48
    %v4861 = vpop.permute.xlu0 %4860
    %4862 = vrot.lane.b32.xlu0 %v4464, 48
    %v4863 = vpop.permute.xlu0 %4862
    %4864 = vrot.lane.b32.xlu0 %v4465, 48
    %v4865 = vpop.permute.xlu0 %4864
    %4898 = vrot.lane.b32.xlu0 %v4466, 56
    %v4899 = vpop.permute.xlu0 %4898
    %4900 = vrot.lane.b32.xlu0 %v4467, 56
    %v4901 = vpop.permute.xlu0 %4900
    %4902 = vrot.lane.b32.xlu0 %v4468, 56
    %v4903 = vpop.permute.xlu0 %4902
    %4904 = vrot.lane.b32.xlu0 %v4469, 56
    %v4905 = vpop.permute.xlu0 %4904
    %4906 = vrot.lane.b32.xlu0 %v4470, 56
    %v4907 = vpop.permute.xlu0 %4906
    %4908 = vrot.lane.b32.xlu0 %v4471, 56
    %v4909 = vpop.permute.xlu0 %4908
    %4910 = vrot.lane.b32.xlu0 %v4472, 56
    %v4911 = vpop.permute.xlu0 %4910
    %4912 = vrot.lane.b32.xlu0 %v4473, 56
    %v4913 = vpop.permute.xlu0 %4912
    %4914 = vrot.lane.b32.xlu0 %v4474, 56
    %v4915 = vpop.permute.xlu0 %4914
    %4916 = vrot.lane.b32.xlu0 %v4475, 56
    %v4917 = vpop.permute.xlu0 %4916
    %4918 = vrot.lane.b32.xlu0 %v4476, 56
    %v4919 = vpop.permute.xlu0 %4918
    %4920 = vrot.lane.b32.xlu0 %v4477, 56
    %v4921 = vpop.permute.xlu0 %4920
    %4922 = vrot.lane.b32.xlu0 %v4478, 56
    %v4923 = vpop.permute.xlu0 %4922
    %4924 = vrot.lane.b32.xlu0 %v4479, 56
    %v4925 = vpop.permute.xlu0 %4924
    %4926 = vrot.lane.b32.xlu0 %v4480, 56
    %v4927 = vpop.permute.xlu0 %4926
    %4928 = vrot.lane.b32.xlu0 %v4481, 56
    %v4929 = vpop.permute.xlu0 %4928
    %4962 = vrot.lane.b32.xlu0 %v4482, 64
    %v4963 = vpop.permute.xlu0 %4962
    %4964 = vrot.lane.b32.xlu0 %v4483, 64
    %v4965 = vpop.permute.xlu0 %4964
    %4966 = vrot.lane.b32.xlu0 %v4484, 64
    %v4967 = vpop.permute.xlu0 %4966
    %4968 = vrot.lane.b32.xlu0 %v4485, 64
    %v4969 = vpop.permute.xlu0 %4968
    %4970 = vrot.lane.b32.xlu0 %v4486, 64
    %v4971 = vpop.permute.xlu0 %4970
    %4972 = vrot.lane.b32.xlu0 %v4487, 64
    %v4973 = vpop.permute.xlu0 %4972
    %4974 = vrot.lane.b32.xlu0 %v4488, 64
    %v4975 = vpop.permute.xlu0 %4974
    %4976 = vrot.lane.b32.xlu0 %v4489, 64
    %v4977 = vpop.permute.xlu0 %4976
    %4978 = vrot.lane.b32.xlu0 %v4490, 64
    %v4979 = vpop.permute.xlu0 %4978
    %4980 = vrot.lane.b32.xlu0 %v4491, 64
    %v4981 = vpop.permute.xlu0 %4980
    %4982 = vrot.lane.b32.xlu0 %v4492, 64
    %v4983 = vpop.permute.xlu0 %4982
    %4984 = vrot.lane.b32.xlu0 %v4493, 64
    %v4985 = vpop.permute.xlu0 %4984
    %4986 = vrot.lane.b32.xlu0 %v4494, 64
    %v4987 = vpop.permute.xlu0 %4986
    %4988 = vrot.lane.b32.xlu0 %v4495, 64
    %v4989 = vpop.permute.xlu0 %4988
    %4990 = vrot.lane.b32.xlu0 %v4496, 64
    %v4991 = vpop.permute.xlu0 %4990
    %4992 = vrot.lane.b32.xlu0 %v4497, 64
    %v4993 = vpop.permute.xlu0 %4992
    %v5010 = vsel %vm2725, %v4353, %v4515
    %v5011 = vsel %vm2725, %v4354, %v4517
    %v5012 = vsel %vm2725, %v4355, %v4519
    %v5013 = vsel %vm2725, %v4356, %v4521
    %v5014 = vsel %vm2725, %v4357, %v4523
    %v5015 = vsel %vm2725, %v4358, %v4525
    %v5016 = vsel %vm2725, %v4359, %v4527
    %v5017 = vsel %vm2725, %v4360, %v4529
    %v5018 = vsel %vm2725, %v4361, %v4531
    %v5019 = vsel %vm2725, %v4362, %v4533
    %v5020 = vsel %vm2725, %v4363, %v4535
    %v5021 = vsel %vm2725, %v4364, %v4537
    %v5022 = vsel %vm2725, %v4365, %v4539
    %v5023 = vsel %vm2725, %v4366, %v4541
    %v5024 = vsel %vm2725, %v4367, %v4543
    %v5025 = vsel %vm2725, %v4368, %v4545
    %v5026 = vsel %vm2855, %v5010, %v4579
    %v5027 = vsel %vm2855, %v5011, %v4581
    %v5028 = vsel %vm2855, %v5012, %v4583
    %v5029 = vsel %vm2855, %v5013, %v4585
    %v5030 = vsel %vm2855, %v5014, %v4587
    %v5031 = vsel %vm2855, %v5015, %v4589
    %v5032 = vsel %vm2855, %v5016, %v4591
    %v5033 = vsel %vm2855, %v5017, %v4593
    %v5034 = vsel %vm2855, %v5018, %v4595
    %v5035 = vsel %vm2855, %v5019, %v4597
    %v5036 = vsel %vm2855, %v5020, %v4599
    %v5037 = vsel %vm2855, %v5021, %v4601
    %v5038 = vsel %vm2855, %v5022, %v4603
    %v5039 = vsel %vm2855, %v5023, %v4605
    %v5040 = vsel %vm2855, %v5024, %v4607
    %v5041 = vsel %vm2855, %v5025, %v4609
    %v5042 = vsel %vm2985, %v5026, %v4643
    %v5043 = vsel %vm2985, %v5027, %v4645
    %v5044 = vsel %vm2985, %v5028, %v4647
    %v5045 = vsel %vm2985, %v5029, %v4649
    %v5046 = vsel %vm2985, %v5030, %v4651
    %v5047 = vsel %vm2985, %v5031, %v4653
    %v5048 = vsel %vm2985, %v5032, %v4655
    %v5049 = vsel %vm2985, %v5033, %v4657
    %v5050 = vsel %vm2985, %v5034, %v4659
    %v5051 = vsel %vm2985, %v5035, %v4661
    %v5052 = vsel %vm2985, %v5036, %v4663
    %v5053 = vsel %vm2985, %v5037, %v4665
    %v5054 = vsel %vm2985, %v5038, %v4667
    %v5055 = vsel %vm2985, %v5039, %v4669
    %v5056 = vsel %vm2985, %v5040, %v4671
    %v5057 = vsel %vm2985, %v5041, %v4673
    %v5058 = vsel %vm3115, %v5042, %v4707
    %v5059 = vsel %vm3115, %v5043, %v4709
    %v5060 = vsel %vm3115, %v5044, %v4711
    %v5061 = vsel %vm3115, %v5045, %v4713
    %v5062 = vsel %vm3115, %v5046, %v4715
    %v5063 = vsel %vm3115, %v5047, %v4717
    %v5064 = vsel %vm3115, %v5048, %v4719
    %v5065 = vsel %vm3115, %v5049, %v4721
    %v5066 = vsel %vm3115, %v5050, %v4723
    %v5067 = vsel %vm3115, %v5051, %v4725
    %v5068 = vsel %vm3115, %v5052, %v4727
    %v5069 = vsel %vm3115, %v5053, %v4729
    %v5070 = vsel %vm3115, %v5054, %v4731
    %v5071 = vsel %vm3115, %v5055, %v4733
    %v5072 = vsel %vm3115, %v5056, %v4735
    %v5073 = vsel %vm3115, %v5057, %v4737
    %vm5074 = vcmask 326656
    %v5075 = vsel %vm5074, %v5058, %v4771
    %v5076 = vsel %vm5074, %v5059, %v4773
    %v5077 = vsel %vm5074, %v5060, %v4775
    %v5078 = vsel %vm5074, %v5061, %v4777
    %v5079 = vsel %vm5074, %v5062, %v4779
    %v5080 = vsel %vm5074, %v5063, %v4781
    %v5081 = vsel %vm5074, %v5064, %v4783
    %v5082 = vsel %vm5074, %v5065, %v4785
    %v5083 = vsel %vm5074, %v5066, %v4787
    %v5084 = vsel %vm5074, %v5067, %v4789
    %v5085 = vsel %vm5074, %v5068, %v4791
    %v5086 = vsel %vm5074, %v5069, %v4793
    %v5087 = vsel %vm5074, %v5070, %v4795
    %v5088 = vsel %vm5074, %v5071, %v4797
    %v5089 = vsel %vm5074, %v5072, %v4799
    %v5090 = vsel %vm5074, %v5073, %v4801
    %vm5091 = vcmask 392192
    %v5092 = vsel %vm5091, %v5075, %v4835
    %v5093 = vsel %vm5091, %v5076, %v4837
    %v5094 = vsel %vm5091, %v5077, %v4839
    %v5095 = vsel %vm5091, %v5078, %v4841
    %v5096 = vsel %vm5091, %v5079, %v4843
    %v5097 = vsel %vm5091, %v5080, %v4845
    %v5098 = vsel %vm5091, %v5081, %v4847
    %v5099 = vsel %vm5091, %v5082, %v4849
    %v5100 = vsel %vm5091, %v5083, %v4851
    %v5101 = vsel %vm5091, %v5084, %v4853
    %v5102 = vsel %vm5091, %v5085, %v4855
    %v5103 = vsel %vm5091, %v5086, %v4857
    %v5104 = vsel %vm5091, %v5087, %v4859
    %v5105 = vsel %vm5091, %v5088, %v4861
    %v5106 = vsel %vm5091, %v5089, %v4863
    %v5107 = vsel %vm5091, %v5090, %v4865
    %vm5108 = vcmask 457728
    %v5109 = vsel %vm5108, %v5092, %v4899
    %v5110 = vsel %vm5108, %v5093, %v4901
    %v5111 = vsel %vm5108, %v5094, %v4903
    %v5112 = vsel %vm5108, %v5095, %v4905
    %v5113 = vsel %vm5108, %v5096, %v4907
    %v5114 = vsel %vm5108, %v5097, %v4909
    %v5115 = vsel %vm5108, %v5098, %v4911
    %v5116 = vsel %vm5108, %v5099, %v4913
    %v5117 = vsel %vm5108, %v5100, %v4915
    %v5118 = vsel %vm5108, %v5101, %v4917
    %v5119 = vsel %vm5108, %v5102, %v4919
    %v5120 = vsel %vm5108, %v5103, %v4921
    %v5121 = vsel %vm5108, %v5104, %v4923
    %v5122 = vsel %vm5108, %v5105, %v4925
    %v5123 = vsel %vm5108, %v5106, %v4927
    %v5124 = vsel %vm5108, %v5107, %v4929
    %vm5125 = vcmask 523264
    %v5126 = vsel %vm5125, %v5109, %v4963
    %v5127 = vsel %vm5125, %v5110, %v4965
    %v5128 = vsel %vm5125, %v5111, %v4967
    %v5129 = vsel %vm5125, %v5112, %v4969
    %v5130 = vsel %vm5125, %v5113, %v4971
    %v5131 = vsel %vm5125, %v5114, %v4973
    %v5132 = vsel %vm5125, %v5115, %v4975
    %v5133 = vsel %vm5125, %v5116, %v4977
    %v5134 = vsel %vm5125, %v5117, %v4979
    %v5135 = vsel %vm5125, %v5118, %v4981
    %v5136 = vsel %vm5125, %v5119, %v4983
    %v5137 = vsel %vm5125, %v5120, %v4985
    %v5138 = vsel %vm5125, %v5121, %v4987
    %v5139 = vsel %vm5125, %v5122, %v4989
    %v5140 = vsel %vm5125, %v5123, %v4991
    %v5141 = vsel %vm5125, %v5124, %v4993
    %v5142 = vpack.c.bf16 %v5127, %v5126
    %v5143 = vpack.c.bf16 %v5129, %v5128
    %v5144 = vpack.c.bf16 %v5131, %v5130
    %v5145 = vpack.c.bf16 %v5133, %v5132
    %v5146 = vpack.c.bf16 %v5135, %v5134
    %v5147 = vpack.c.bf16 %v5137, %v5136
    %v5148 = vpack.c.bf16 %v5139, %v5138
    %v5149 = vpack.c.bf16 %v5141, %v5140
    %v5150 = vld [vmem:[%s3] sm:$0xf]
    %v5151 = vld [vmem:[%s3 + $0x4] sm:$0xf]
    %v5152 = vld [vmem:[%s3 + $0x8] sm:$0xf]
    %v5153 = vld [vmem:[%s3 + $0xc] sm:$0xf]
    %v5154 = vld [vmem:[%s3 + $0x10] sm:$0xf]
    %v5155 = vld [vmem:[%s3 + $0x14] sm:$0xf]
    %v5156 = vld [vmem:[%s3 + $0x18] sm:$0xf]
    %v5157 = vld [vmem:[%s3 + $0x1c] sm:$0xf]
    %v5158 = vld [vmem:[%s3 + $0x20] sm:$0xf]
    %v5159 = vld [vmem:[%s4] sm:$0x1]
    %v5161 = vperm.slane %v5159, 0
    %v5172 = vunpack.c.l.b16 %v5150
    %v5173 = vunpack.c.l.b16 %v5151
    %v5174 = vunpack.c.l.b16 %v5152
    %v5175 = vunpack.c.l.b16 %v5153
    %v5176 = vunpack.c.l.b16 %v5154
    %v5177 = vunpack.c.l.b16 %v5155
    %v5178 = vunpack.c.l.b16 %v5156
    %v5179 = vunpack.c.l.b16 %v5157
    %v5180 = vunpack.c.l.b16 %v5158
    %v5181 = vpack.c.b16 %v5173, %v5172
    %v5182 = vpack.c.b16 %v5175, %v5174
    %v5183 = vpack.c.b16 %v5177, %v5176
    %v5184 = vpack.c.b16 %v5179, %v5178
    %v5185 = vpack.c.b16 %v5180, %v5180
    %vm5190 = vcmask 588800
    %v5192 = vsel %vm5190, %v5142, 0
    %v5195 = vsel %vm5190, %v5143, 0
    %v5198 = vsel %vm5190, %v5144, 0
    %v5201 = vsel %vm5190, %v5145, 0
    %v5204 = vsel %vm5190, %v5146, 0
    %v5207 = vsel %vm5190, %v5147, 0
    %v5210 = vsel %vm5190, %v5148, 0
    %v5213 = vsel %vm5190, %v5149, 0
    %vm5215 = vcmask 1043456
    %v5217 = vsel %vm5215, %v5185, 0
    %5219 = vmatpush.bf16.msra.mxu0 0
    %5220 = vmatpush.bf16.msra.mxu0 0
    %5221 = vmatpush.bf16.msra.mxu0 0
    %5222 = vmatpush.bf16.msra.mxu0 %v5217
    %5223 = vmatpush.bf16.msra.mxu0 %v5184
    %5224 = vmatpush.bf16.msra.mxu0 %v5183
    %5225 = vmatpush.bf16.msra.mxu0 %v5182
    %5226 = vmatpush.bf16.msra.mxu0 %v5181
    %5227 = vmatmul.bf16.gmra.mxu0 %v5192
    %v5228 = vpop.f32.mrf.mxu0
    %v5229 = vadd.f32 %v5161, %v5228
    %v5230 = vpop.f32.mrf.mxu0
    %v5231 = vadd.f32 %v5161, %v5230
    %5232 = vmatmul.bf16.gmra.mxu0 %v5195
    %v5233 = vpop.f32.mrf.mxu0
    %v5234 = vadd.f32 %v5161, %v5233
    %v5235 = vpop.f32.mrf.mxu0
    %v5236 = vadd.f32 %v5161, %v5235
    %5237 = vmatmul.bf16.gmra.mxu0 %v5198
    %v5238 = vpop.f32.mrf.mxu0
    %v5239 = vadd.f32 %v5161, %v5238
    %v5240 = vpop.f32.mrf.mxu0
    %v5241 = vadd.f32 %v5161, %v5240
    %5242 = vmatmul.bf16.gmra.mxu0 %v5201
    %v5243 = vpop.f32.mrf.mxu0
    %v5244 = vadd.f32 %v5161, %v5243
    %v5245 = vpop.f32.mrf.mxu0
    %v5246 = vadd.f32 %v5161, %v5245
    %5247 = vmatmul.bf16.gmra.mxu0 %v5204
    %v5248 = vpop.f32.mrf.mxu0
    %v5249 = vadd.f32 %v5161, %v5248
    %v5250 = vpop.f32.mrf.mxu0
    %v5251 = vadd.f32 %v5161, %v5250
    %5252 = vmatmul.bf16.gmra.mxu0 %v5207
    %v5253 = vpop.f32.mrf.mxu0
    %v5254 = vadd.f32 %v5161, %v5253
    %v5255 = vpop.f32.mrf.mxu0
    %v5256 = vadd.f32 %v5161, %v5255
    %5257 = vmatmul.bf16.gmra.mxu0 %v5210
    %v5258 = vpop.f32.mrf.mxu0
    %v5259 = vadd.f32 %v5161, %v5258
    %v5260 = vpop.f32.mrf.mxu0
    %v5261 = vadd.f32 %v5161, %v5260
    %5262 = vmatmul.bf16.gmra.mxu0 %v5213
    %v5263 = vpop.f32.mrf.mxu0
    %v5264 = vadd.f32 %v5161, %v5263
    %v5265 = vpop.f32.mrf.mxu0
    %v5266 = vadd.f32 %v5161, %v5265
    %5267 = vdwg.mxu0
    %v5268 = vmax.f32 %v5229, 0.0
    %v5269 = vmax.f32 %v5231, 0.0
    %v5270 = vmax.f32 %v5234, 0.0
    %v5271 = vmax.f32 %v5236, 0.0
    %v5272 = vmax.f32 %v5239, 0.0
    %v5273 = vmax.f32 %v5241, 0.0
    %v5274 = vmax.f32 %v5244, 0.0
    %v5275 = vmax.f32 %v5246, 0.0
    %v5276 = vmax.f32 %v5249, 0.0
    %v5277 = vmax.f32 %v5251, 0.0
    %v5278 = vmax.f32 %v5254, 0.0
    %v5279 = vmax.f32 %v5256, 0.0
    %v5280 = vmax.f32 %v5259, 0.0
    %v5281 = vmax.f32 %v5261, 0.0
    %v5282 = vmax.f32 %v5264, 0.0
    %v5283 = vmax.f32 %v5266, 0.0
    %v5284 = vmax.f32 %v5268, %v5269
    %v5285 = vmax.f32 %v5270, %v5271
    %v5286 = vmax.f32 %v5272, %v5273
    %v5287 = vmax.f32 %v5274, %v5275
    %v5288 = vmax.f32 %v5276, %v5277
    %v5289 = vmax.f32 %v5278, %v5279
    %v5290 = vmax.f32 %v5280, %v5281
    %v5291 = vmax.f32 %v5282, %v5283
    %v5292 = vrot.slane %v5286, 4
    %v5293 = vsel %vm3603, %v5292, %v5284
    %v5294 = vrot.slane %v5284, 4
    %v5295 = vsel %vm3603, %v5286, %v5294
    %v5297 = vunpack.c.l.s4 1983009808
    %v5298 = vunpack.c.0.s8 %v5297
    %v5299 = vperm.slane %v5293, %v5298
    %v5301 = vunpack.c.l.s4 1983009808
    %v5302 = vunpack.c.0.s8 %v5301
    %v5303 = vperm.slane %v5295, %v5302
    %v5304 = vrot.slane %v5287, 4
    %v5305 = vsel %vm3603, %v5304, %v5285
    %v5306 = vrot.slane %v5285, 4
    %v5307 = vsel %vm3603, %v5287, %v5306
    %v5309 = vunpack.c.l.s4 1983009808
    %v5310 = vunpack.c.0.s8 %v5309
    %v5311 = vperm.slane %v5305, %v5310
    %v5313 = vunpack.c.l.s4 1983009808
    %v5314 = vunpack.c.0.s8 %v5313
    %v5315 = vperm.slane %v5307, %v5314
    %v5316 = vrot.slane %v5290, 4
    %v5317 = vsel %vm3603, %v5316, %v5288
    %v5318 = vrot.slane %v5288, 4
    %v5319 = vsel %vm3603, %v5290, %v5318
    %v5321 = vunpack.c.l.s4 1983009808
    %v5322 = vunpack.c.0.s8 %v5321
    %v5323 = vperm.slane %v5317, %v5322
    %v5325 = vunpack.c.l.s4 1983009808
    %v5326 = vunpack.c.0.s8 %v5325
    %v5327 = vperm.slane %v5319, %v5326
    %v5328 = vrot.slane %v5291, 4
    %v5329 = vsel %vm3603, %v5328, %v5289
    %v5330 = vrot.slane %v5289, 4
    %v5331 = vsel %vm3603, %v5291, %v5330
    %v5333 = vunpack.c.l.s4 1983009808
    %v5334 = vunpack.c.0.s8 %v5333
    %v5335 = vperm.slane %v5329, %v5334
    %v5337 = vunpack.c.l.s4 1983009808
    %v5338 = vunpack.c.0.s8 %v5337
    %v5339 = vperm.slane %v5331, %v5338
    %v5340 = vrot.slane %v5311, 4
    %v5341 = vsel %vm3603, %v5340, %v5299
    %v5342 = vrot.slane %v5299, 4
    %v5343 = vsel %vm3603, %v5311, %v5342
    %v5345 = vunpack.c.l.s4 1934713408
    %v5346 = vunpack.c.0.s8 %v5345
    %v5347 = vperm.slane %v5341, %v5346
    %v5349 = vunpack.c.l.s4 1934713408
    %v5350 = vunpack.c.0.s8 %v5349
    %v5351 = vperm.slane %v5343, %v5350
    %v5352 = vrot.slane %v5315, 4
    %v5353 = vsel %vm3603, %v5352, %v5303
    %v5354 = vrot.slane %v5303, 4
    %v5355 = vsel %vm3603, %v5315, %v5354
    %v5357 = vunpack.c.l.s4 1934713408
    %v5358 = vunpack.c.0.s8 %v5357
    %v5359 = vperm.slane %v5353, %v5358
    %v5361 = vunpack.c.l.s4 1934713408
    %v5362 = vunpack.c.0.s8 %v5361
    %v5363 = vperm.slane %v5355, %v5362
    %v5364 = vrot.slane %v5335, 4
    %v5365 = vsel %vm3603, %v5364, %v5323
    %v5366 = vrot.slane %v5323, 4
    %v5367 = vsel %vm3603, %v5335, %v5366
    %v5369 = vunpack.c.l.s4 1934713408
    %v5370 = vunpack.c.0.s8 %v5369
    %v5371 = vperm.slane %v5365, %v5370
    %v5373 = vunpack.c.l.s4 1934713408
    %v5374 = vunpack.c.0.s8 %v5373
    %v5375 = vperm.slane %v5367, %v5374
    %v5376 = vrot.slane %v5339, 4
    %v5377 = vsel %vm3603, %v5376, %v5327
    %v5378 = vrot.slane %v5327, 4
    %v5379 = vsel %vm3603, %v5339, %v5378
    %v5381 = vunpack.c.l.s4 1934713408
    %v5382 = vunpack.c.0.s8 %v5381
    %v5383 = vperm.slane %v5377, %v5382
    %v5385 = vunpack.c.l.s4 1934713408
    %v5386 = vunpack.c.0.s8 %v5385
    %v5387 = vperm.slane %v5379, %v5386
    %v5388 = vrot.slane %v5371, 4
    %v5389 = vsel %vm3603, %v5388, %v5347
    %v5390 = vrot.slane %v5347, 4
    %v5391 = vsel %vm3603, %v5371, %v5390
    %v5392 = vrot.slane %v5375, 4
    %v5393 = vsel %vm3603, %v5392, %v5351
    %v5394 = vrot.slane %v5351, 4
    %v5395 = vsel %vm3603, %v5375, %v5394
    %v5396 = vrot.slane %v5383, 4
    %v5397 = vsel %vm3603, %v5396, %v5359
    %v5398 = vrot.slane %v5359, 4
    %v5399 = vsel %vm3603, %v5383, %v5398
    %v5400 = vrot.slane %v5387, 4
    %v5401 = vsel %vm3603, %v5400, %v5363
    %v5402 = vrot.slane %v5363, 4
    %v5403 = vsel %vm3603, %v5387, %v5402
    %v5404 = vmax.f32 %v5389, %v5391
    %v5405 = vmax.f32 %v5393, %v5395
    %v5406 = vmax.f32 %v5397, %v5399
    %v5407 = vmax.f32 %v5401, %v5403
    %v5408 = vrot.slane %v5406, 4
    %v5409 = vsel %vm3603, %v5408, %v5404
    %v5410 = vrot.slane %v5404, 4
    %v5411 = vsel %vm3603, %v5406, %v5410
    %v5413 = vunpack.c.l.s4 1983009808
    %v5414 = vunpack.c.0.s8 %v5413
    %v5415 = vperm.slane %v5409, %v5414
    %v5417 = vunpack.c.l.s4 1983009808
    %v5418 = vunpack.c.0.s8 %v5417
    %v5419 = vperm.slane %v5411, %v5418
    %v5420 = vrot.slane %v5407, 4
    %v5421 = vsel %vm3603, %v5420, %v5405
    %v5422 = vrot.slane %v5405, 4
    %v5423 = vsel %vm3603, %v5407, %v5422
    %v5425 = vunpack.c.l.s4 1983009808
    %v5426 = vunpack.c.0.s8 %v5425
    %v5427 = vperm.slane %v5421, %v5426
    %v5429 = vunpack.c.l.s4 1983009808
    %v5430 = vunpack.c.0.s8 %v5429
    %v5431 = vperm.slane %v5423, %v5430
    %v5432 = vrot.slane %v5427, 4
    %v5433 = vsel %vm3603, %v5432, %v5415
    %v5434 = vrot.slane %v5415, 4
    %v5435 = vsel %vm3603, %v5427, %v5434
    %v5437 = vunpack.c.l.s4 1934713408
    %v5438 = vunpack.c.0.s8 %v5437
    %v5439 = vperm.slane %v5433, %v5438
    %v5441 = vunpack.c.l.s4 1934713408
    %v5442 = vunpack.c.0.s8 %v5441
    %v5443 = vperm.slane %v5435, %v5442
    %v5444 = vrot.slane %v5431, 4
    %v5445 = vsel %vm3603, %v5444, %v5419
    %v5446 = vrot.slane %v5419, 4
    %v5447 = vsel %vm3603, %v5431, %v5446
    %v5449 = vunpack.c.l.s4 1934713408
    %v5450 = vunpack.c.0.s8 %v5449
    %v5451 = vperm.slane %v5445, %v5450
    %v5453 = vunpack.c.l.s4 1934713408
    %v5454 = vunpack.c.0.s8 %v5453
    %v5455 = vperm.slane %v5447, %v5454
    %v5456 = vrot.slane %v5439, 4
    %v5457 = vsel %vm3603, 0.0, %v5456
    %v5458 = vrot.slane %v5443, 4
    %v5459 = vsel %vm3603, 0.0, %v5458
    %v5460 = vrot.slane %v5451, 4
    %v5461 = vsel %vm3603, 0.0, %v5460
    %v5462 = vrot.slane %v5455, 4
    %v5463 = vsel %vm3603, 0.0, %v5462
    %v5468 = vrot.slane %v5439, 2
    %v5469 = vrot.slane %v5457, 2
    %v5470 = vrot.slane %v5451, 2
    %v5471 = vrot.slane %v5461, 2
    %vm5472 = vcmask 1040384
    %vm5473 = vcmask 1042434
    %vm5474 = vmor %vm5472, %vm5473
    %vm5475 = vcmask 1044484
    %vm5476 = vmor %vm5474, %vm5475
    %vm5477 = vcmask 1046534
    %vm5478 = vmor %vm5476, %vm5477
    %v5479 = vrot.slane %v5439, 7
    %v5480 = vrot.slane %v5479, 2
    %v5481 = vrot.slane %v5468, 7
    %v5482 = vsel %vm5478, %v5480, %v5481
    %v5483 = vrot.slane %v5457, 7
    %v5484 = vrot.slane %v5483, 2
    %v5485 = vrot.slane %v5469, 7
    %v5486 = vsel %vm5478, %v5484, %v5485
    %v5487 = vrot.slane %v5451, 7
    %v5488 = vrot.slane %v5487, 2
    %v5489 = vrot.slane %v5470, 7
    %v5490 = vsel %vm5478, %v5488, %v5489
    %v5491 = vrot.slane %v5461, 7
    %v5492 = vrot.slane %v5491, 2
    %v5493 = vrot.slane %v5471, 7
    %v5494 = vsel %vm5478, %v5492, %v5493
    %5495 = vst.sshfl [vmem:[#allocation1] sm:$0xff pattern:$0x73625140] %v5439
    %s5496 = scalar_lea.vmem [#allocation1], 1
    %v5497 = vld [vmem:[%s5496] ss:$4 sm:$0xff]
    %5498 = vst.sshfl [vmem:[#allocation1 + $0x20] sm:$0xff pattern:$0x73625140] %v5457
    %s5499 = scalar_lea.vmem [#allocation1], 33
    %v5500 = vld [vmem:[%s5499] ss:$4 sm:$0xff]
    %5501 = vst.sshfl [vmem:[#allocation1] sm:$0xff pattern:$0x73625140] %v5451
    %v5502 = vld [vmem:[%s5496] ss:$4 sm:$0xff]
    %5503 = vst.sshfl [vmem:[#allocation1 + $0x20] sm:$0xff pattern:$0x73625140] %v5461
    %v5504 = vld [vmem:[%s5499] ss:$4 sm:$0xff]
    %v5507 = vrot.slane %v5443, 2
    %v5508 = vrot.slane %v5455, 2
    %v5509 = vrot.slane %v5443, 7
    %v5510 = vrot.slane %v5509, 2
    %v5511 = vrot.slane %v5507, 7
    %v5512 = vsel %vm5478, %v5510, %v5511
    %v5513 = vrot.slane %v5455, 7
    %v5514 = vrot.slane %v5513, 2
    %v5515 = vrot.slane %v5508, 7
    %v5516 = vsel %vm5478, %v5514, %v5515
    %5517 = vst.sshfl [vmem:[#allocation1] sm:$0xff pattern:$0x73625140] %v5457
    %s5518 = scalar_lea.vmem [#allocation1], 1
    %v5519 = vld [vmem:[%s5518] ss:$4 sm:$0xff]
    %5520 = vst.sshfl [vmem:[#allocation1 + $0x20] sm:$0xff pattern:$0x73625140] %v5443
    %s5521 = scalar_lea.vmem [#allocation1], 33
    %v5522 = vld [vmem:[%s5521] ss:$4 sm:$0xff]
    %5523 = vst.sshfl [vmem:[#allocation1] sm:$0xff pattern:$0x73625140] %v5461
    %v5524 = vld [vmem:[%s5518] ss:$4 sm:$0xff]
    %5525 = vst.sshfl [vmem:[#allocation1 + $0x20] sm:$0xff pattern:$0x73625140] %v5455
    %v5526 = vld [vmem:[%s5521] ss:$4 sm:$0xff]
    %v5529 = vrot.slane %v5459, 2
    %v5530 = vrot.slane %v5463, 2
    %v5531 = vrot.slane %v5459, 7
    %v5532 = vrot.slane %v5531, 2
    %v5533 = vrot.slane %v5529, 7
    %v5534 = vsel %vm5478, %v5532, %v5533
    %v5535 = vrot.slane %v5463, 7
    %v5536 = vrot.slane %v5535, 2
    %v5537 = vrot.slane %v5530, 7
    %v5538 = vsel %vm5478, %v5536, %v5537
    %5539 = vst.sshfl [vmem:[#allocation1] sm:$0xff pattern:$0x73625140] %v5443
    %s5540 = scalar_lea.vmem [#allocation1], 1
    %v5541 = vld [vmem:[%s5540] ss:$4 sm:$0xff]
    %5542 = vst.sshfl [vmem:[#allocation1 + $0x20] sm:$0xff pattern:$0x73625140] %v5459
    %s5543 = scalar_lea.vmem [#allocation1], 33
    %v5544 = vld [vmem:[%s5543] ss:$4 sm:$0xff]
    %5545 = vst.sshfl [vmem:[#allocation1] sm:$0xff pattern:$0x73625140] %v5455
    %v5546 = vld [vmem:[%s5540] ss:$4 sm:$0xff]
    %5547 = vst.sshfl [vmem:[#allocation1 + $0x20] sm:$0xff pattern:$0x73625140] %v5463
    %v5548 = vld [vmem:[%s5543] ss:$4 sm:$0xff]
    %5549 = vst [vmem:[#allocation1] ss:$4 sm:$0xff] %v5439
    %s5550 = scalar_lea.vmem [#allocation1], 1
    %5551 = vst [vmem:[%s5550] ss:$4 sm:$0xff] %v5457
    %s5552 = scalar_lea.vmem [#allocation1], 2
    %5553 = vst [vmem:[%s5552] ss:$4 sm:$0xff] %v5451
    %s5554 = scalar_lea.vmem [#allocation1], 3
    %5555 = vst [vmem:[%s5554] ss:$4 sm:$0xff] %v5461
    %v5556 = vld.sshfl [vmem:[#allocation1] sm:$0xff pattern:$0x73625140]
    %5558 = vst [vmem:[#allocation1] ss:$4 sm:$0xff] %v5482
    %s5559 = scalar_lea.vmem [#allocation1], 1
    %5560 = vst [vmem:[%s5559] ss:$4 sm:$0xff] %v5486
    %s5561 = scalar_lea.vmem [#allocation1], 2
    %5562 = vst [vmem:[%s5561] ss:$4 sm:$0xff] %v5490
    %s5563 = scalar_lea.vmem [#allocation1], 3
    %5564 = vst [vmem:[%s5563] ss:$4 sm:$0xff] %v5494
    %v5565 = vld.sshfl [vmem:[#allocation1] sm:$0xff pattern:$0x73625140]
    %5566 = vrot.lane.b32.xlu0 %v5565, 16
    %v5567 = vpop.permute.xlu0 %5566
    %5569 = vst [vmem:[#allocation1] ss:$4 sm:$0xff] %v5497
    %s5570 = scalar_lea.vmem [#allocation1], 1
    %5571 = vst [vmem:[%s5570] ss:$4 sm:$0xff] %v5500
    %s5572 = scalar_lea.vmem [#allocation1], 2
    %5573 = vst [vmem:[%s5572] ss:$4 sm:$0xff] %v5502
    %s5574 = scalar_lea.vmem [#allocation1], 3
    %5575 = vst [vmem:[%s5574] ss:$4 sm:$0xff] %v5504
    %v5576 = vld.sshfl [vmem:[#allocation1] sm:$0xff pattern:$0x73625140]
    %5577 = vrot.lane.b32.xlu0 %v5576, 32
    %v5578 = vpop.permute.xlu0 %5577
    %5580 = vst [vmem:[#allocation1] ss:$4 sm:$0xff] %v5457
    %s5581 = scalar_lea.vmem [#allocation1], 1
    %5582 = vst [vmem:[%s5581] ss:$4 sm:$0xff] %v5443
    %s5583 = scalar_lea.vmem [#allocation1], 2
    %5584 = vst [vmem:[%s5583] ss:$4 sm:$0xff] %v5461
    %s5585 = scalar_lea.vmem [#allocation1], 3
    %5586 = vst [vmem:[%s5585] ss:$4 sm:$0xff] %v5455
    %v5587 = vld.sshfl [vmem:[#allocation1] sm:$0xff pattern:$0x73625140]
    %5588 = vrot.lane.b32.xlu0 %v5587, 48
    %v5589 = vpop.permute.xlu0 %5588
    %5591 = vst [vmem:[#allocation1] ss:$4 sm:$0xff] %v5486
    %s5592 = scalar_lea.vmem [#allocation1], 1
    %5593 = vst [vmem:[%s5592] ss:$4 sm:$0xff] %v5512
    %s5594 = scalar_lea.vmem [#allocation1], 2
    %5595 = vst [vmem:[%s5594] ss:$4 sm:$0xff] %v5494
    %s5596 = scalar_lea.vmem [#allocation1], 3
    %5597 = vst [vmem:[%s5596] ss:$4 sm:$0xff] %v5516
    %v5598 = vld.sshfl [vmem:[#allocation1] sm:$0xff pattern:$0x73625140]
    %5599 = vrot.lane.b32.xlu0 %v5598, 64
    %v5600 = vpop.permute.xlu0 %5599
    %5602 = vst [vmem:[#allocation1] ss:$4 sm:$0xff] %v5519
    %s5603 = scalar_lea.vmem [#allocation1], 1
    %5604 = vst [vmem:[%s5603] ss:$4 sm:$0xff] %v5522
    %s5605 = scalar_lea.vmem [#allocation1], 2
    %5606 = vst [vmem:[%s5605] ss:$4 sm:$0xff] %v5524
    %s5607 = scalar_lea.vmem [#allocation1], 3
    %5608 = vst [vmem:[%s5607] ss:$4 sm:$0xff] %v5526
    %v5609 = vld.sshfl [vmem:[#allocation1] sm:$0xff pattern:$0x73625140]
    %5610 = vrot.lane.b32.xlu0 %v5609, 80
    %v5611 = vpop.permute.xlu0 %5610
    %5613 = vst [vmem:[#allocation1] ss:$4 sm:$0xff] %v5443
    %s5614 = scalar_lea.vmem [#allocation1], 1
    %5615 = vst [vmem:[%s5614] ss:$4 sm:$0xff] %v5459
    %s5616 = scalar_lea.vmem [#allocation1], 2
    %5617 = vst [vmem:[%s5616] ss:$4 sm:$0xff] %v5455
    %s5618 = scalar_lea.vmem [#allocation1], 3
    %5619 = vst [vmem:[%s5618] ss:$4 sm:$0xff] %v5463
    %v5620 = vld.sshfl [vmem:[#allocation1] sm:$0xff pattern:$0x73625140]
    %5621 = vrot.lane.b32.xlu0 %v5620, 96
    %v5622 = vpop.permute.xlu0 %5621
    %5624 = vst [vmem:[#allocation1] ss:$4 sm:$0xff] %v5512
    %s5625 = scalar_lea.vmem [#allocation1], 1
    %5626 = vst [vmem:[%s5625] ss:$4 sm:$0xff] %v5534
    %s5627 = scalar_lea.vmem [#allocation1], 2
    %5628 = vst [vmem:[%s5627] ss:$4 sm:$0xff] %v5516
    %s5629 = scalar_lea.vmem [#allocation1], 3
    %5630 = vst [vmem:[%s5629] ss:$4 sm:$0xff] %v5538
    %v5631 = vld.sshfl [vmem:[#allocation1] sm:$0xff pattern:$0x73625140]
    %5632 = vrot.lane.b32.xlu0 %v5631, 112
    %v5633 = vpop.permute.xlu0 %5632
    %5635 = vst [vmem:[#allocation1] ss:$4 sm:$0xff] %v5541
    %s5636 = scalar_lea.vmem [#allocation1], 1
    %5637 = vst [vmem:[%s5636] ss:$4 sm:$0xff] %v5544
    %s5638 = scalar_lea.vmem [#allocation1], 2
    %5639 = vst [vmem:[%s5638] ss:$4 sm:$0xff] %v5546
    %s5640 = scalar_lea.vmem [#allocation1], 3
    %5641 = vst [vmem:[%s5640] ss:$4 sm:$0xff] %v5548
    %v5642 = vld.sshfl [vmem:[#allocation1] sm:$0xff pattern:$0x73625140]
    %v5644 = vsel %vm2855, %v5556, %v5567
    %v5645 = vsel %vm3115, %v5644, %v5578
    %v5646 = vsel %vm5091, %v5645, %v5589
    %v5647 = vsel %vm5125, %v5646, %v5600
    %vm5648 = vcmask 654336
    %v5649 = vsel %vm5648, %v5647, %v5611
    %vm5650 = vcmask 785408
    %v5651 = vsel %vm5650, %v5649, %v5622
    %vm5652 = vcmask 916480
    %v5653 = vsel %vm5652, %v5651, %v5633
    %v5654 = vpack.c.bf16 %v5653, %v5653
    %v5655 = vpack.c.bf16 %v5642, %v5642
    %v5656 = vld [vmem:[%s5] sm:$0xf]
    %v5657 = vld [vmem:[%s5 + $0x4] sm:$0xf]
    %v5658 = vld [vmem:[%s5 + $0x8] sm:$0xf]
    %v5659 = vld [vmem:[%s5 + $0xc] sm:$0xf]
    %v5660 = vld [vmem:[%s5 + $0x10] sm:$0xf]
    %v5661 = vld [vmem:[%s5 + $0x14] sm:$0xf]
    %v5662 = vld [vmem:[%s5 + $0x18] sm:$0xf]
    %v5663 = vld [vmem:[%s5 + $0x1c] sm:$0xf]
    %v5664 = vld [vmem:[%s5 + $0x20] sm:$0xf]
    %v5665 = vld [vmem:[%s5 + $0x24] sm:$0xf]
    %v5666 = vld [vmem:[%s5 + $0x28] sm:$0xf]
    %v5667 = vld [vmem:[%s5 + $0x2c] sm:$0xf]
    %v5668 = vld [vmem:[%s5 + $0x30] sm:$0xf]
    %v5669 = vld [vmem:[%s5 + $0x34] sm:$0xf]
    %v5670 = vld [vmem:[%s5 + $0x38] sm:$0xf]
    %v5671 = vld [vmem:[%s5 + $0x3c] sm:$0xf]
    %v5672 = vld [vmem:[%s5 + $0x40] sm:$0xf]
    %v5673 = vld [vmem:[%s5 + $0x44] sm:$0xf]
    %v5674 = vld [vmem:[%s6] sm:$0x1]
    %v5676 = vperm.slane %v5674, 0
    %v5696 = vunpack.c.l.b16 %v5656
    %v5697 = vunpack.c.l.b16 %v5657
    %v5698 = vunpack.c.l.b16 %v5658
    %v5699 = vunpack.c.l.b16 %v5659
    %v5700 = vunpack.c.l.b16 %v5660
    %v5701 = vunpack.c.l.b16 %v5661
    %v5702 = vunpack.c.l.b16 %v5662
    %v5703 = vunpack.c.l.b16 %v5663
    %v5704 = vunpack.c.l.b16 %v5664
    %v5705 = vunpack.c.l.b16 %v5665
    %v5706 = vunpack.c.l.b16 %v5666
    %v5707 = vunpack.c.l.b16 %v5667
    %v5708 = vunpack.c.l.b16 %v5668
    %v5709 = vunpack.c.l.b16 %v5669
    %v5710 = vunpack.c.l.b16 %v5670
    %v5711 = vunpack.c.l.b16 %v5671
    %v5712 = vunpack.c.l.b16 %v5672
    %v5713 = vunpack.c.l.b16 %v5673
    %v5714 = vpack.c.b16 %v5697, %v5696
    %v5715 = vpack.c.b16 %v5699, %v5698
    %v5716 = vpack.c.b16 %v5701, %v5700
    %v5717 = vpack.c.b16 %v5703, %v5702
    %v5718 = vpack.c.b16 %v5705, %v5704
    %v5719 = vpack.c.b16 %v5707, %v5706
    %v5720 = vpack.c.b16 %v5709, %v5708
    %v5721 = vpack.c.b16 %v5711, %v5710
    %v5722 = vpack.c.b16 %v5713, %v5712
    %v5733 = vsel %vm2855, %v5655, 0
    %5735 = vmatpush.bf16.msra.mxu0 %v5721
    %5736 = vmatpush.bf16.msra.mxu0 %v5720
    %5737 = vmatpush.bf16.msra.mxu0 %v5719
    %5738 = vmatpush.bf16.msra.mxu0 %v5718
    %5739 = vmatpush.bf16.msra.mxu0 %v5717
    %5740 = vmatpush.bf16.msra.mxu0 %v5716
    %5741 = vmatpush.bf16.msra.mxu0 %v5715
    %5742 = vmatpush.bf16.msra.mxu0 %v5714
    %5743 = vmatmul.bf16.gmra.mxu0 %v5654
    %v5744 = vpop.f32.mrf.mxu0
    %v5745 = vadd.f32 %v5676, %v5744
    %v5746 = vpop.f32.mrf.mxu0
    %5747 = vdwg.mxu0
    %5748 = vmatpush.bf16.msra.mxu0 0
    %5749 = vmatpush.bf16.msra.mxu0 0
    %5750 = vmatpush.bf16.msra.mxu0 0
    %5751 = vmatpush.bf16.msra.mxu0 0
    %5752 = vmatpush.bf16.msra.mxu0 0
    %5753 = vmatpush.bf16.msra.mxu0 0
    %5754 = vmatpush.bf16.msra.mxu0 0
    %5755 = vmatpush.bf16.msra.mxu0 %v5722
    %5756 = vmatmul.bf16.gmra.mxu0 %v5733
    %v5757 = vpop.f32.mrf.mxu0
    %v5758 = vadd.f32 %v5745, %v5757
    %v5759 = vpop.f32.mrf.mxu0
    %5760 = vdwg.mxu0
    %v5761 = vmax.f32 %v5758, 0.0
    %v5763 = vrot.slane %v5761, 2
    %v5764 = vrot.slane %v5761, 4
    %v5765 = vrot.slane %v5761, 6
    %v5769 = vmax.f32 %v5761, %v5763
    %v5770 = vmax.f32 %v5764, %v5765
    %v5771 = vrot.slane %v5770, 4
    %v5772 = vsel %vm3603, %v5771, %v5769
    %v5774 = vunpack.c.l.s4 1934713408
    %v5775 = vunpack.c.0.s8 %v5774
    %v5776 = vperm.slane %v5772, %v5775
    %v5777 = vrot.slane %v5776, 4
    %v5778 = vsel %vm3603, 0.0, %v5777
    %v5779 = vmax.f32 %v5776, %v5778
    %v5781 = vunpack.c.l.s4 1934713408
    %v5782 = vunpack.c.0.s8 %v5781
    %v5783 = vperm.slane %v5779, %v5782
    %v5784 = vrot.slane %v5783, 4
    %v5785 = vsel %vm3603, 0.0, %v5784
    %v5786 = vpack.c.bf16 %v5783, %v5783
    %v5787 = vpack.c.bf16 %v5785, %v5785
    %v5788 = vld [vmem:[%s7] sm:$0xf]
    %v5789 = vld [vmem:[%s7 + $0x4] sm:$0xf]
    %v5790 = vld [vmem:[%s7 + $0x8] sm:$0xf]
    %v5791 = vld [vmem:[%s7 + $0xc] sm:$0xf]
    %v5792 = vld [vmem:[%s8] sm:$0x1]
    %v5794 = vperm.slane %v5792, 0
    %v5798 = vunpack.c.l.b16 %v5786
    %v5799 = vunpack.c.l.b16 %v5787
    %v5800 = vrot.slane %v5799, 7
    %vm5801 = vcmask 1041409
    %v5802 = vsel %vm5801, %v5800, %v5798
    %v5803 = vpack.c.b16 %v5802, %v5802
    %v5808 = vunpack.c.l.b16 %v5788
    %v5809 = vunpack.c.l.b16 %v5789
    %v5810 = vunpack.c.l.b16 %v5790
    %v5811 = vunpack.c.l.b16 %v5791
    %v5812 = vpack.c.b16 %v5809, %v5808
    %v5813 = vpack.c.b16 %v5811, %v5810
    %v5817 = vsel %vm3115, %v5803, 0
    %5819 = vmatpush.bf16.msra.mxu0 0
    %5820 = vmatpush.bf16.msra.mxu0 0
    %5821 = vmatpush.bf16.msra.mxu0 0
    %5822 = vmatpush.bf16.msra.mxu0 0
    %5823 = vmatpush.bf16.msra.mxu0 0
    %5824 = vmatpush.bf16.msra.mxu0 0
    %5825 = vmatpush.bf16.msra.mxu0 %v5813
    %5826 = vmatpush.bf16.msra.mxu0 %v5812
    %5827 = vmatmul.bf16.gmra.mxu0 %v5817
    %v5828 = vpop.f32.mrf.mxu0
    %v5829 = vadd.f32 %v5794, %v5828
    %v5830 = vpop.f32.mrf.mxu0
    %5831 = vdwg.mxu0
    %vm5832 = vcmask 74752
    %5833 = vst.msk [vmem:[#allocation3] sm:$0x3] %vm5832, %v5829
    // Predicated region
    $region42: #{cifar_forward.1} parent=1 // pred_check
      _
    $region43: #{cifar_forward.1} parent=1 // pred_check_branch
      %5835 = sbr.rel (0) target = $region45
    $region44: #{cifar_forward.1} parent=1 // pred_region
      %5837 = vsyncadd [#allocation4], 0
      %s5839 = sshll.u32 [#allocation3], 4
      %s5840 = int_to_ptr.vmem [resolvable:$true] %s5839
      %s5841 = sshll.u32 %s9, 4
      %s5842 = int_to_ptr.hbm [resolvable:$true] %s5841
      %5844 = dma.vmem_to_hbm [thread:$0]  %s5840, 32, %s5842, [#allocation4]
    $region45: #{cifar_forward.1} parent=1 // pred_fallthru
      _
    // Predicated region
    $region46: #{cifar_forward.1} parent=1 // pred_check
      _
    $region47: #{cifar_forward.1} parent=1 // pred_check_branch
      %5846 = sbr.rel (0) target = $region49
    $region48: #{cifar_forward.1} parent=1 // pred_region
      %5848 = dma.done [#allocation4], 32
    $region49: #{cifar_forward.1} parent=1 // pred_fallthru
      _
    %5849 = vsyncpa [#allocation4], 1

</llo_original>
